<compile_context>
chip_gen: v6e
topology: v6e:2x2x1
jax: 0.10.0
libtpu: 0.0.40
codegen_flags: <defaults>
</compile_context>

<pallas_src>
import jax
import jax.numpy as jnp
from jax.experimental import pallas as pl
from jax.experimental.pallas import tpu as pltpu

LANE = 128
SUBLANE = 8


def _round_up(x, m):
    return ((x + m - 1) // m) * m


def _cdiv(a, b):
    return (a + b - 1) // b


# ----------------------------------------------------------------------------
# Kernel
# ----------------------------------------------------------------------------
def decoder_kernel(x_ref,
                   w1_ref, b1_ref,
                   w2_ref, b2_ref,
                   w3_ref, b3_ref,
                   w4_ref, b4_ref,
                   o_ref):
    # Layer 1: (TB, Fp) @ (Fp, 2048) + (1, 2048) -> ReLU
    h = jnp.dot(x_ref[...].astype(jnp.bfloat16), w1_ref[...],
                preferred_element_type=jnp.float32)
    h = jnp.maximum(h + b1_ref[...], 0.0).astype(jnp.bfloat16)
    # Layer 2: (TB, 2048) @ (2048, 512) + (1, 512) -> ReLU
    h = jnp.dot(h, w2_ref[...], preferred_element_type=jnp.float32)
    h = jnp.maximum(h + b2_ref[...], 0.0).astype(jnp.bfloat16)
    # Layer 3: (TB, 512) @ (512, 512) + (1, 512) -> ReLU
    h = jnp.dot(h, w3_ref[...], preferred_element_type=jnp.float32)
    h = jnp.maximum(h + b3_ref[...], 0.0).astype(jnp.bfloat16)
    # Layer 4: (TB, 512) @ (512, Op) + (1, Op)  (no activation)
    h = jnp.dot(h, w4_ref[...], preferred_element_type=jnp.float32)
    o_ref[...] = (h + b4_ref[...]).astype(o_ref.dtype)


# ----------------------------------------------------------------------------
# Parameter prep (off the hot path)
# ----------------------------------------------------------------------------
def _pad_to(arr, shape):
    return jnp.pad(arr, [(0, s - d) for d, s in zip(arr.shape, shape)])


def prepare_decoder_params(params):
    """Zero-pad every dim to a multiple of 128 and cast weights to bf16."""
    prepared = {}
    for li in range(1, 5):
        w, b = params[f"w{li}"], params[f"b{li}"]
        fi, fo = w.shape
        fi_p, fo_p = _round_up(fi, LANE), _round_up(fo, LANE)
        prepared[f"w{li}"] = _pad_to(w, (fi_p, fo_p)).astype(jnp.bfloat16)
        prepared[f"b{li}"] = _pad_to(b, (1, fo_p)).astype(jnp.float32)
    # TODO(synk): quantize w1/w2 to fp8 (v7x) / int8 (v5e/v6e) with per-column
    # scales to halve the weight DMA in the small-batch, weight-bound regime.
    return prepared


# ----------------------------------------------------------------------------
# Chip / VMEM plumbing
# ----------------------------------------------------------------------------
def _supports_buffered():
    try:
        pl.BlockSpec((SUBLANE, LANE), lambda i: (0, 0),
                     pipeline_mode=pl.Buffered(1))
        return True
    except Exception:
        return False


_HAS_BUFFERED = _supports_buffered()


def _chip_config():
    """Returns (default_block_batch, vmem_cap_bytes) for the local TPU."""
    vmem_phys = 128 << 20
    try:
        vmem_phys = int(pltpu.get_tpu_info().vmem_capacity_bytes)
    except Exception:
        pass
    is_v5e = False
    try:
        kind = jax.devices()[0].device_kind.lower()
        is_v5e = ("v5 lite" in kind) or ("v5e" in kind) or ("v5litepod" in kind)
    except Exception:
        pass
    if is_v5e:
        # v5e: 4x128^2 MXU -> per-tile MXU time already dominates overhead at
        # 128 rows; smaller tile cuts f32 intermediates / vreg pressure.
        return 128, min(100 << 20, max(vmem_phys - (16 << 20), 32 << 20))
    if vmem_phys <= (64 << 20):
        # v7x: 64 MiB per TensorCore -> leave headroom, cap at 56 MiB.
        return 512, 56 << 20
    # v6e: 128 MiB physical VMEM.
    return 512, 100 << 20


def _working_set_bytes(tb, prepared, f_pad, out_pad):
    h1 = prepared["w1"].shape[1]
    wb = 1 if _HAS_BUFFERED else 2          # Buffered(1) => single weight copy
    weight_bytes = wb * sum(int(v.size) * v.dtype.itemsize
                            for v in prepared.values())
    io_bytes = 2 * tb * f_pad * 4 + 2 * tb * out_pad * 4   # double-buffered x/out
    interm_bytes = 3 * tb * h1 * 4                          # widest live activations
    return weight_bytes + io_bytes + interm_bytes


# ----------------------------------------------------------------------------
# Forward wrapper
# ----------------------------------------------------------------------------
def decoder_forward(x, prepared_params, out_dim, *,
                    block_batch=None, vmem_cap_bytes=None):
    """x: (B, feature_dim) f32.  prepared_params: from prepare_decoder_params."""
    B, F = x.shape
    f_pad = prepared_params["w1"].shape[0]
    out_pad = prepared_params["w4"].shape[1]
    h1 = prepared_params["w1"].shape[1]
    h2 = prepared_params["w2"].shape[1]
    h3 = prepared_params["w3"].shape[1]

    chip_tb, chip_cap = _chip_config()
    block_batch = chip_tb if block_batch is None else block_batch
    vmem_cap_bytes = chip_cap if vmem_cap_bytes is None else vmem_cap_bytes

    # Balanced batch tiles: keep the zero-padded tail under one sublane group.
    n_tiles = max(1, _cdiv(B, block_batch))
    tb = _round_up(_cdiv(B, n_tiles), SUBLANE)

    # Shrink tb (8-aligned) until the working set fits the per-chip VMEM cap.
    headroom = 8 << 20
    while (tb > SUBLANE and
           _working_set_bytes(tb, prepared_params, f_pad, out_pad) + headroom
           > vmem_cap_bytes):
        tb = _round_up(tb // 2, SUBLANE)
    ws = _working_set_bytes(tb, prepared_params, f_pad, out_pad) + headroom
    if ws > vmem_cap_bytes:
        # TODO(synk): fall back to K-tiling w1 along feature_dim instead of
        # failing when the resident weights alone exceed the VMEM budget.
        raise ValueError(
            f"Decoder working set {ws / 2**20:.1f} MiB exceeds the "
            f"{vmem_cap_bytes / 2**20:.0f} MiB VMEM budget even at TB=8.")

    b_pad = _round_up(B, tb)
    grid = b_pad // tb

    x_p = x
    if (b_pad, f_pad) != (B, F):
        x_p = jnp.pad(x, ((0, b_pad - B), (0, f_pad - F)))

    def resident_spec(arr):
        if _HAS_BUFFERED:
            return pl.BlockSpec(arr.shape, lambda i: (0, 0),
                                pipeline_mode=pl.Buffered(1))
        return pl.BlockSpec(arr.shape, lambda i: (0, 0))

    args = (x_p,
            prepared_params["w1"], prepared_params["b1"],
            prepared_params["w2"], prepared_params["b2"],
            prepared_params["w3"], prepared_params["b3"],
            prepared_params["w4"], prepared_params["b4"])

    weight_bytes = sum(int(v.size) * v.dtype.itemsize
                       for v in prepared_params.values())
    flops = 2 * b_pad * (f_pad * h1 + h1 * h2 + h2 * h3 + h3 * out_pad)
    bytes_accessed = weight_bytes + int(x_p.size) * 4 + b_pad * out_pad * 4

    out = pl.pallas_call(
        decoder_kernel,
        out_shape=jax.ShapeDtypeStruct((b_pad, out_pad), jnp.float32),
        grid=(grid,),
        in_specs=[pl.BlockSpec((tb, f_pad), lambda i: (i, 0))]
                 + [resident_spec(a) for a in args[1:]],
        out_specs=pl.BlockSpec((tb, out_pad), lambda i: (i, 0)),
        compiler_params=pltpu.CompilerParams(
            # Megacore sharding only pays when >1 tile; with a single tile keep
            # one core so weights are DMA'd into one core's VMEM only.
            dimension_semantics=("parallel",) if grid > 1 else ("arbitrary",),
            vmem_limit_bytes=int(max(ws, 16 << 20)),
        ),
        cost_estimate=pl.CostEstimate(
            flops=flops, transcendentals=0, bytes_accessed=bytes_accessed),
    )(*args)

    # TODO(synk): for recurrent small-batch calls, keep weights VMEM-resident
    # across calls (cross-call prefetch futures) to remove per-call weight DMA.
    if (b_pad, out_pad) == (B, out_dim):
        return out                       # de-pad slice skipped when a no-op
    return out[:B, :out_dim]


# ----------------------------------------------------------------------------
# Synthetic init + reference
# ----------------------------------------------------------------------------
def init_decoder_params(key, input_dim, feature_dim):
    """Deterministic synthetic init matching nn.Linear shapes (transposed)."""
    dims = [feature_dim, 2000, 500, 500, input_dim]
    params = {}
    for li in range(4):
        key, kw, kb = jax.random.split(key, 3)
        fan_in, fan_out = dims[li], dims[li + 1]
        bound = 1.0 / jnp.sqrt(jnp.float32(fan_in))
        params[f"w{li + 1}"] = jax.random.uniform(
            kw, (fan_in, fan_out), jnp.float32, minval=-bound, maxval=bound)
        params[f"b{li + 1}"] = jax.random.uniform(
            kb, (1, fan_out), jnp.float32, minval=-bound, maxval=bound)
    return params


def decoder_reference(x, params):
    """Reference with exactly the kernel's bf16-in / f32-accumulate math."""
    def mm(a, w):
        return jnp.dot(a.astype(jnp.bfloat16), w.astype(jnp.bfloat16),
                       preferred_element_type=jnp.float32)
    h = jnp.maximum(mm(x, params["w1"]) + params["b1"], 0.0)
    h = jnp.maximum(mm(h, params["w2"]) + params["b2"], 0.0)
    h = jnp.maximum(mm(h, params["w3"]) + params["b3"], 0.0)
    return mm(h, params["w4"]) + params["b4"]


if __name__ == "__main__":
    key = jax.random.PRNGKey(0)
    batch, feature_dim, input_dim = 8, 32, 64

    key, kx = jax.random.split(key)
    x = jax.random.normal(kx, (batch, feature_dim), jnp.float32)
    params = init_decoder_params(key, input_dim, feature_dim)
    prepared = prepare_decoder_params(params)

    out = decoder_forward(x, prepared, input_dim)
    out = jax.block_until_ready(out)

    ref = decoder_reference(x, params)
    assert out.shape == (batch, input_dim)
    assert jnp.allclose(out, ref, atol=1e-2, rtol=1e-2), "mismatch vs reference"

    print("KERNEL_OK")
</pallas_src>

<mosaic_0001>
module attributes {stable_mosaic.version = 11 : i64} {
  func.func @decoder_kernel(%arg0: i32, %arg1: memref<8x128xf32, #tpu.memory_space<vmem>>, %arg2: memref<128x2048xbf16, #tpu.memory_space<vmem>>, %arg3: memref<1x2048xf32, #tpu.memory_space<vmem>>, %arg4: memref<2048x512xbf16, #tpu.memory_space<vmem>>, %arg5: memref<1x512xf32, #tpu.memory_space<vmem>>, %arg6: memref<512x512xbf16, #tpu.memory_space<vmem>>, %arg7: memref<1x512xf32, #tpu.memory_space<vmem>>, %arg8: memref<512x128xbf16, #tpu.memory_space<vmem>>, %arg9: memref<1x128xf32, #tpu.memory_space<vmem>>, %arg10: memref<8x128xf32, #tpu.memory_space<vmem>>) attributes {dimension_semantics = [#tpu.dimension_semantics<arbitrary>], iteration_bounds = array<i64: 1>, scalar_prefetch = 0 : i64, scratch_operands = 0 : i64, tpu.core_type = #tpu.core_type<tc>, window_params = [{transform_indices = @transform_0, window_bounds = array<i64: 8, 128>}, {pipeline_mode = #tpu.pipeline_mode<synchronous>, transform_indices = @transform_1, window_bounds = array<i64: 128, 2048>}, {pipeline_mode = #tpu.pipeline_mode<synchronous>, transform_indices = @transform_2, window_bounds = array<i64: 1, 2048>}, {pipeline_mode = #tpu.pipeline_mode<synchronous>, transform_indices = @transform_3, window_bounds = array<i64: 2048, 512>}, {pipeline_mode = #tpu.pipeline_mode<synchronous>, transform_indices = @transform_4, window_bounds = array<i64: 1, 512>}, {pipeline_mode = #tpu.pipeline_mode<synchronous>, transform_indices = @transform_5, window_bounds = array<i64: 512, 512>}, {pipeline_mode = #tpu.pipeline_mode<synchronous>, transform_indices = @transform_6, window_bounds = array<i64: 1, 512>}, {pipeline_mode = #tpu.pipeline_mode<synchronous>, transform_indices = @transform_7, window_bounds = array<i64: 512, 128>}, {pipeline_mode = #tpu.pipeline_mode<synchronous>, transform_indices = @transform_8, window_bounds = array<i64: 1, 128>}, {transform_indices = @transform_9, window_bounds = array<i64: 8, 128>}]} {
    %c0 = arith.constant 0 : index
    %c0_0 = arith.constant 0 : index
    %0 = vector.load %arg1[%c0, %c0_0] : memref<8x128xf32, #tpu.memory_space<vmem>>, vector<8x128xf32>
    %1 = arith.truncf %0 : vector<8x128xf32> to vector<8x128xbf16>
    %c0_1 = arith.constant 0 : index
    %c0_2 = arith.constant 0 : index
    %2 = vector.load %arg2[%c0_1, %c0_2] : memref<128x2048xbf16, #tpu.memory_space<vmem>>, vector<128x2048xbf16>
    %cst = arith.constant dense<0.000000e+00> : vector<8x2048xf32>
    %3 = tpu.matmul %1, %2, %cst {dimension_numbers = #tpu.dot_dimension_numbers<[1], [0], [0], [1], [0, 0, 1, 1], [], []>} : vector<8x128xbf16>, vector<128x2048xbf16>, vector<8x2048xf32> -> vector<8x2048xf32>
    %c0_3 = arith.constant 0 : index
    %c0_4 = arith.constant 0 : index
    %4 = vector.load %arg3[%c0_3, %c0_4] : memref<1x2048xf32, #tpu.memory_space<vmem>>, vector<1x2048xf32>
    %5 = vector.broadcast %4 : vector<1x2048xf32> to vector<8x2048xf32>
    %6 = arith.addf %3, %5 : vector<8x2048xf32>
    %cst_5 = arith.constant 0.000000e+00 : f32
    %7 = vector.broadcast %cst_5 : f32 to vector<8x2048xf32>
    %8 = arith.maximumf %6, %7 : vector<8x2048xf32>
    %9 = arith.truncf %8 : vector<8x2048xf32> to vector<8x2048xbf16>
    %c0_6 = arith.constant 0 : index
    %c0_7 = arith.constant 0 : index
    %10 = vector.load %arg4[%c0_6, %c0_7] : memref<2048x512xbf16, #tpu.memory_space<vmem>>, vector<2048x512xbf16>
    %cst_8 = arith.constant dense<0.000000e+00> : vector<8x512xf32>
    %11 = tpu.matmul %9, %10, %cst_8 {dimension_numbers = #tpu.dot_dimension_numbers<[1], [0], [0], [1], [0, 0, 1, 1], [], []>} : vector<8x2048xbf16>, vector<2048x512xbf16>, vector<8x512xf32> -> vector<8x512xf32>
    %c0_9 = arith.constant 0 : index
    %c0_10 = arith.constant 0 : index
    %12 = vector.load %arg5[%c0_9, %c0_10] : memref<1x512xf32, #tpu.memory_space<vmem>>, vector<1x512xf32>
    %13 = vector.broadcast %12 : vector<1x512xf32> to vector<8x512xf32>
    %14 = arith.addf %11, %13 : vector<8x512xf32>
    %cst_11 = arith.constant 0.000000e+00 : f32
    %15 = vector.broadcast %cst_11 : f32 to vector<8x512xf32>
    %16 = arith.maximumf %14, %15 : vector<8x512xf32>
    %17 = arith.truncf %16 : vector<8x512xf32> to vector<8x512xbf16>
    %c0_12 = arith.constant 0 : index
    %c0_13 = arith.constant 0 : index
    %18 = vector.load %arg6[%c0_12, %c0_13] : memref<512x512xbf16, #tpu.memory_space<vmem>>, vector<512x512xbf16>
    %cst_14 = arith.constant dense<0.000000e+00> : vector<8x512xf32>
    %19 = tpu.matmul %17, %18, %cst_14 {dimension_numbers = #tpu.dot_dimension_numbers<[1], [0], [0], [1], [0, 0, 1, 1], [], []>} : vector<8x512xbf16>, vector<512x512xbf16>, vector<8x512xf32> -> vector<8x512xf32>
    %c0_15 = arith.constant 0 : index
    %c0_16 = arith.constant 0 : index
    %20 = vector.load %arg7[%c0_15, %c0_16] : memref<1x512xf32, #tpu.memory_space<vmem>>, vector<1x512xf32>
    %21 = vector.broadcast %20 : vector<1x512xf32> to vector<8x512xf32>
    %22 = arith.addf %19, %21 : vector<8x512xf32>
    %cst_17 = arith.constant 0.000000e+00 : f32
    %23 = vector.broadcast %cst_17 : f32 to vector<8x512xf32>
    %24 = arith.maximumf %22, %23 : vector<8x512xf32>
    %25 = arith.truncf %24 : vector<8x512xf32> to vector<8x512xbf16>
    %c0_18 = arith.constant 0 : index
    %c0_19 = arith.constant 0 : index
    %26 = vector.load %arg8[%c0_18, %c0_19] : memref<512x128xbf16, #tpu.memory_space<vmem>>, vector<512x128xbf16>
    %cst_20 = arith.constant dense<0.000000e+00> : vector<8x128xf32>
    %27 = tpu.matmul %25, %26, %cst_20 {dimension_numbers = #tpu.dot_dimension_numbers<[1], [0], [0], [1], [0, 0, 1, 1], [], []>} : vector<8x512xbf16>, vector<512x128xbf16>, vector<8x128xf32> -> vector<8x128xf32>
    %c0_21 = arith.constant 0 : index
    %c0_22 = arith.constant 0 : index
    %28 = vector.load %arg9[%c0_21, %c0_22] : memref<1x128xf32, #tpu.memory_space<vmem>>, vector<1x128xf32>
    %29 = vector.broadcast %28 : vector<1x128xf32> to vector<8x128xf32>
    %30 = arith.addf %27, %29 : vector<8x128xf32>
    %c0_23 = arith.constant 0 : index
    %c0_24 = arith.constant 0 : index
    %31 = vector.load %arg10[%c0_23, %c0_24] : memref<8x128xf32, #tpu.memory_space<vmem>>, vector<8x128xf32>
    tpu.vector_store %arg10[%c0_23, %c0_24], %30 {strides = array<i32>} : memref<8x128xf32, #tpu.memory_space<vmem>>, vector<8x128xf32>,
    return
  }
  func.func @transform_0(%arg0: i32) -> (i32, i32) {
    %c0_i32 = arith.constant 0 : i32
    %c0_i32_0 = arith.constant 0 : i32
    return %arg0, %c0_i32 : i32, i32
  }
  func.func @transform_1(%arg0: i32) -> (i32, i32) {
    %c0_i32 = arith.constant 0 : i32
    %c0_i32_0 = arith.constant 0 : i32
    %c0_i32_1 = arith.constant 0 : i32
    return %c0_i32, %c0_i32_0 : i32, i32
  }
  func.func @transform_2(%arg0: i32) -> (i32, i32) {
    %c0_i32 = arith.constant 0 : i32
    %c0_i32_0 = arith.constant 0 : i32
    %c0_i32_1 = arith.constant 0 : i32
    return %c0_i32, %c0_i32_0 : i32, i32
  }
  func.func @transform_3(%arg0: i32) -> (i32, i32) {
    %c0_i32 = arith.constant 0 : i32
    %c0_i32_0 = arith.constant 0 : i32
    %c0_i32_1 = arith.constant 0 : i32
    return %c0_i32, %c0_i32_0 : i32, i32
  }
  func.func @transform_4(%arg0: i32) -> (i32, i32) {
    %c0_i32 = arith.constant 0 : i32
    %c0_i32_0 = arith.constant 0 : i32
    %c0_i32_1 = arith.constant 0 : i32
    return %c0_i32, %c0_i32_0 : i32, i32
  }
  func.func @transform_5(%arg0: i32) -> (i32, i32) {
    %c0_i32 = arith.constant 0 : i32
    %c0_i32_0 = arith.constant 0 : i32
    %c0_i32_1 = arith.constant 0 : i32
    return %c0_i32, %c0_i32_0 : i32, i32
  }
  func.func @transform_6(%arg0: i32) -> (i32, i32) {
    %c0_i32 = arith.constant 0 : i32
    %c0_i32_0 = arith.constant 0 : i32
    %c0_i32_1 = arith.constant 0 : i32
    return %c0_i32, %c0_i32_0 : i32, i32
  }
  func.func @transform_7(%arg0: i32) -> (i32, i32) {
    %c0_i32 = arith.constant 0 : i32
    %c0_i32_0 = arith.constant 0 : i32
    %c0_i32_1 = arith.constant 0 : i32
    return %c0_i32, %c0_i32_0 : i32, i32
  }
  func.func @transform_8(%arg0: i32) -> (i32, i32) {
    %c0_i32 = arith.constant 0 : i32
    %c0_i32_0 = arith.constant 0 : i32
    %c0_i32_1 = arith.constant 0 : i32
    return %c0_i32, %c0_i32_0 : i32, i32
  }
  func.func @transform_9(%arg0: i32) -> (i32, i32) {
    %c0_i32 = arith.constant 0 : i32
    %c0_i32_0 = arith.constant 0 : i32
    return %arg0, %c0_i32 : i32, i32
  }
}

</mosaic_0001>

<llo_original>
// kernel: tpu_custom_call.1
$region0: #{tpu_custom_call.1}
  #allocation0 [shape = 'u32[]', space=smem, size = 0x4, offset = 0x4, fixed_abs, tag = 'smem constant byte address 0x4 - core index']
  #allocation1 [shape = 'u32[144,128]{1,0:T(1,128)}', space=vmem, size = 0x12000, scoped, tag = 'internal scratch']
  %s0 = inlined_call_operand.hbm [shape: f32[8,128], index: 0, kind: input, shape index: {}]
  %s1 = inlined_call_operand.hbm [shape: bf16[128,2048], index: 1, kind: input, shape index: {}]
  %s2 = inlined_call_operand.hbm [shape: f32[1,2048], index: 2, kind: input, shape index: {}]
  %s3 = inlined_call_operand.hbm [shape: bf16[2048,512], index: 3, kind: input, shape index: {}]
  %s4 = inlined_call_operand.hbm [shape: f32[1,512], index: 4, kind: input, shape index: {}]
  %s5 = inlined_call_operand.hbm [shape: bf16[512,512], index: 5, kind: input, shape index: {}]
  %s6 = inlined_call_operand.hbm [shape: f32[1,512], index: 6, kind: input, shape index: {}]
  %s7 = inlined_call_operand.hbm [shape: bf16[512,128], index: 7, kind: input, shape index: {}]
  %s8 = inlined_call_operand.hbm [shape: f32[1,128], index: 8, kind: input, shape index: {}]
  %s9 = inlined_call_operand.hbm [shape: f32[8,128], index: 9, kind: output, shape index: {}]
  %s10 = sld [smem:[#allocation0]]
  $region82: #{tpu_custom_call.1} parent=0
    _
  %s12 = ssub.s32 1, %s10
  %s13 = scalar_select 0, %s12, %s10
  $region1: #{tpu_custom_call.1} parent=0
    #allocation2 [shape = 'u8[4096]{0}', space=vmem, size = 0x1000, scoped, tag = 'input window, operand 0, single buffered']
    #allocation3 [shape = 's32[1]{0}', space=sflag, size = 0x4, scoped, tag = 'scoped memory for tpu_custom_call.1']
    #allocation4 [shape = 's32[1]{0}', space=sflag, size = 0x4, scoped, tag = 'scoped memory for tpu_custom_call.1']
    #allocation5 [shape = 'u8[524288]{0}', space=vmem, size = 0x80000, scoped, tag = 'input window, operand 1, single buffered']
    #allocation6 [shape = 's32[1]{0}', space=sflag, size = 0x4, scoped, tag = 'scoped memory for tpu_custom_call.1']
    #allocation7 [shape = 'u8[8192]{0}', space=vmem, size = 0x2000, scoped, tag = 'input window, operand 2, single buffered']
    #allocation8 [shape = 'u8[2097152]{0}', space=vmem, size = 0x200000, scoped, tag = 'input window, operand 3, single buffered']
    #allocation9 [shape = 's32[1]{0}', space=sflag, size = 0x4, scoped, tag = 'scoped memory for tpu_custom_call.1']
    #allocation10 [shape = 'u8[2048]{0}', space=vmem, size = 0x800, scoped, tag = 'input window, operand 4, single buffered']
    #allocation11 [shape = 'u8[524288]{0}', space=vmem, size = 0x80000, scoped, tag = 'input window, operand 5, single buffered']
    #allocation12 [shape = 's32[1]{0}', space=sflag, size = 0x4, scoped, tag = 'scoped memory for tpu_custom_call.1']
    #allocation13 [shape = 'u8[2048]{0}', space=vmem, size = 0x800, scoped, tag = 'input window, operand 6, single buffered']
    #allocation14 [shape = 'u8[131072]{0}', space=vmem, size = 0x20000, scoped, tag = 'input window, operand 7, single buffered']
    #allocation15 [shape = 's32[1]{0}', space=sflag, size = 0x4, scoped, tag = 'scoped memory for tpu_custom_call.1']
    #allocation16 [shape = 'u8[512]{0}', space=vmem, size = 0x400, scoped, tag = 'input window, operand 8, single buffered']
    #allocation17 [shape = 'u8[4096]{0}', space=vmem, size = 0x1000, scoped, tag = 'output window, operand 0, single buffered']
    %14 = vsyncpa [#allocation3], 0
    %15 = vsyncpa [#allocation6], 0
    %16 = vsyncpa [#allocation9], 0
    %17 = vsyncpa [#allocation12], 0
    %18 = vsyncpa [#allocation15], 0
    %19 = vsyncpa [#allocation4], 0
    // Predicated region
    $region2: #{tpu_custom_call.1} parent=1 // pred_check
      _
    $region3: #{tpu_custom_call.1} parent=1 // pred_check_branch
      %21 = sbr.rel (0) target = $region5
    $region4: #{tpu_custom_call.1} parent=1 // pred_region
      %s23 = ssub.s32 128, 128
      %24 = vsyncadd [#allocation3], %s23
      %s26 = sshll.u32 [#allocation2], 4
      %s27 = int_to_ptr.vmem [resolvable:$true] %s26
      %29 = dma.hbm_to_vmem [thread:$0]  %s0, 128, %s27, [#allocation3]
    $region5: #{tpu_custom_call.1} parent=1 // pred_fallthru
      _
    // Predicated region
    $region6: #{tpu_custom_call.1} parent=1 // pred_check
      _
    $region7: #{tpu_custom_call.1} parent=1 // pred_check_branch
      %31 = sbr.rel (0) target = $region9
    $region8: #{tpu_custom_call.1} parent=1 // pred_region
      %s33 = ssub.s32 16384, 16384
      %34 = vsyncadd [#allocation6], %s33
      %s35 = sshll.u32 [#allocation5], 4
      %s36 = int_to_ptr.vmem [resolvable:$true] %s35
      %41 = dma.hbm_to_vmem [thread:$0]  %s1, 16384, %s36, [#allocation6], 1024, 1024, 64
    $region9: #{tpu_custom_call.1} parent=1 // pred_fallthru
      _
    // Predicated region
    $region10: #{tpu_custom_call.1} parent=1 // pred_check
      _
    $region11: #{tpu_custom_call.1} parent=1 // pred_check_branch
      %43 = sbr.rel (0) target = $region13
    $region12: #{tpu_custom_call.1} parent=1 // pred_region
      %s45 = ssub.s32 256, 256
      %46 = vsyncadd [#allocation6], %s45
      %s48 = sshll.u32 [#allocation7], 4
      %s49 = int_to_ptr.vmem [resolvable:$true] %s48
      %51 = dma.hbm_to_vmem [thread:$0]  %s2, 256, %s49, [#allocation6]
    $region13: #{tpu_custom_call.1} parent=1 // pred_fallthru
      _
    // Predicated region
    $region14: #{tpu_custom_call.1} parent=1 // pred_check
      _
    $region15: #{tpu_custom_call.1} parent=1 // pred_check_branch
      %53 = sbr.rel (0) target = $region17
    $region16: #{tpu_custom_call.1} parent=1 // pred_region
      %s55 = ssub.s32 65536, 65536
      %56 = vsyncadd [#allocation9], %s55
      %s57 = sshll.u32 [#allocation8], 4
      %s58 = int_to_ptr.vmem [resolvable:$true] %s57
      %63 = dma.hbm_to_vmem [thread:$0]  %s3, 65536, %s58, [#allocation9], 256, 256, 16
    $region17: #{tpu_custom_call.1} parent=1 // pred_fallthru
      _
    // Predicated region
    $region18: #{tpu_custom_call.1} parent=1 // pred_check
      _
    $region19: #{tpu_custom_call.1} parent=1 // pred_check_branch
      %65 = sbr.rel (0) target = $region21
    $region20: #{tpu_custom_call.1} parent=1 // pred_region
      %s67 = ssub.s32 64, 64
      %68 = vsyncadd [#allocation9], %s67
      %s70 = sshll.u32 [#allocation10], 4
      %s71 = int_to_ptr.vmem [resolvable:$true] %s70
      %73 = dma.hbm_to_vmem [thread:$0]  %s4, 64, %s71, [#allocation9]
    $region21: #{tpu_custom_call.1} parent=1 // pred_fallthru
      _
    // Predicated region
    $region22: #{tpu_custom_call.1} parent=1 // pred_check
      _
    $region23: #{tpu_custom_call.1} parent=1 // pred_check_branch
      %75 = sbr.rel (0) target = $region25
    $region24: #{tpu_custom_call.1} parent=1 // pred_region
      %s77 = ssub.s32 16384, 16384
      %78 = vsyncadd [#allocation12], %s77
      %s79 = sshll.u32 [#allocation11], 4
      %s80 = int_to_ptr.vmem [resolvable:$true] %s79
      %85 = dma.hbm_to_vmem [thread:$0]  %s5, 16384, %s80, [#allocation12], 256, 256, 16
    $region25: #{tpu_custom_call.1} parent=1 // pred_fallthru
      _
    // Predicated region
    $region26: #{tpu_custom_call.1} parent=1 // pred_check
      _
    $region27: #{tpu_custom_call.1} parent=1 // pred_check_branch
      %87 = sbr.rel (0) target = $region29
    $region28: #{tpu_custom_call.1} parent=1 // pred_region
      %s89 = ssub.s32 64, 64
      %90 = vsyncadd [#allocation12], %s89
      %s92 = sshll.u32 [#allocation13], 4
      %s93 = int_to_ptr.vmem [resolvable:$true] %s92
      %95 = dma.hbm_to_vmem [thread:$0]  %s6, 64, %s93, [#allocation12]
    $region29: #{tpu_custom_call.1} parent=1 // pred_fallthru
      _
    // Predicated region
    $region30: #{tpu_custom_call.1} parent=1 // pred_check
      _
    $region31: #{tpu_custom_call.1} parent=1 // pred_check_branch
      %97 = sbr.rel (0) target = $region33
    $region32: #{tpu_custom_call.1} parent=1 // pred_region
      %s99 = ssub.s32 4096, 4096
      %100 = vsyncadd [#allocation15], %s99
      %s101 = sshll.u32 [#allocation14], 4
      %s102 = int_to_ptr.vmem [resolvable:$true] %s101
      %107 = dma.hbm_to_vmem [thread:$0]  %s7, 4096, %s102, [#allocation15], 64, 64, 4
    $region33: #{tpu_custom_call.1} parent=1 // pred_fallthru
      _
    // Predicated region
    $region34: #{tpu_custom_call.1} parent=1 // pred_check
      _
    $region35: #{tpu_custom_call.1} parent=1 // pred_check_branch
      %109 = sbr.rel (0) target = $region37
    $region36: #{tpu_custom_call.1} parent=1 // pred_region
      %s111 = ssub.s32 16, 16
      %112 = vsyncadd [#allocation15], %s111
      %s114 = sshll.u32 [#allocation16], 4
      %s115 = int_to_ptr.vmem [resolvable:$true] %s114
      %117 = dma.hbm_to_vmem [thread:$0]  %s8, 16, %s115, [#allocation15]
    $region37: #{tpu_custom_call.1} parent=1 // pred_fallthru
      _
    // Predicated region
    $region38: #{tpu_custom_call.1} parent=1 // pred_check
      _
    $region39: #{tpu_custom_call.1} parent=1 // pred_check_branch
      %119 = sbr.rel (0) target = $region41
    $region40: #{tpu_custom_call.1} parent=1 // pred_region
      %120 = dma.done [#allocation3], 128
    $region41: #{tpu_custom_call.1} parent=1 // pred_fallthru
      _
    // Predicated region
    $region42: #{tpu_custom_call.1} parent=1 // pred_check
      _
    $region43: #{tpu_custom_call.1} parent=1 // pred_check_branch
      %122 = sbr.rel (0) target = $region45
    $region44: #{tpu_custom_call.1} parent=1 // pred_region
      %123 = dma.done [#allocation6], 16384
    $region45: #{tpu_custom_call.1} parent=1 // pred_fallthru
      _
    // Predicated region
    $region46: #{tpu_custom_call.1} parent=1 // pred_check
      _
    $region47: #{tpu_custom_call.1} parent=1 // pred_check_branch
      %125 = sbr.rel (0) target = $region49
    $region48: #{tpu_custom_call.1} parent=1 // pred_region
      %126 = dma.done [#allocation6], 256
    $region49: #{tpu_custom_call.1} parent=1 // pred_fallthru
      _
    // Predicated region
    $region50: #{tpu_custom_call.1} parent=1 // pred_check
      _
    $region51: #{tpu_custom_call.1} parent=1 // pred_check_branch
      %128 = sbr.rel (0) target = $region53
    $region52: #{tpu_custom_call.1} parent=1 // pred_region
      %129 = dma.done [#allocation9], 65536
    $region53: #{tpu_custom_call.1} parent=1 // pred_fallthru
      _
    // Predicated region
    $region54: #{tpu_custom_call.1} parent=1 // pred_check
      _
    $region55: #{tpu_custom_call.1} parent=1 // pred_check_branch
      %131 = sbr.rel (0) target = $region57
    $region56: #{tpu_custom_call.1} parent=1 // pred_region
      %132 = dma.done [#allocation9], 64
    $region57: #{tpu_custom_call.1} parent=1 // pred_fallthru
      _
    // Predicated region
    $region58: #{tpu_custom_call.1} parent=1 // pred_check
      _
    $region59: #{tpu_custom_call.1} parent=1 // pred_check_branch
      %134 = sbr.rel (0) target = $region61
    $region60: #{tpu_custom_call.1} parent=1 // pred_region
      %135 = dma.done [#allocation12], 16384
    $region61: #{tpu_custom_call.1} parent=1 // pred_fallthru
      _
    // Predicated region
    $region62: #{tpu_custom_call.1} parent=1 // pred_check
      _
    $region63: #{tpu_custom_call.1} parent=1 // pred_check_branch
      %137 = sbr.rel (0) target = $region65
    $region64: #{tpu_custom_call.1} parent=1 // pred_region
      %138 = dma.done [#allocation12], 64
    $region65: #{tpu_custom_call.1} parent=1 // pred_fallthru
      _
    // Predicated region
    $region66: #{tpu_custom_call.1} parent=1 // pred_check
      _
    $region67: #{tpu_custom_call.1} parent=1 // pred_check_branch
      %140 = sbr.rel (0) target = $region69
    $region68: #{tpu_custom_call.1} parent=1 // pred_region
      %141 = dma.done [#allocation15], 4096
    $region69: #{tpu_custom_call.1} parent=1 // pred_fallthru
      _
    // Predicated region
    $region70: #{tpu_custom_call.1} parent=1 // pred_check
      _
    $region71: #{tpu_custom_call.1} parent=1 // pred_check_branch
      %143 = sbr.rel (0) target = $region73
    $region72: #{tpu_custom_call.1} parent=1 // pred_region
      %144 = dma.done [#allocation15], 16
    $region73: #{tpu_custom_call.1} parent=1 // pred_fallthru
      _
    %v146 = vld [vmem:[#allocation2] sm:$0xff]
    %v147 = vpack.c.bf16 %v146, %v146
    %v148 = vld [vmem:[#allocation5] sm:$0xff]
    %v149 = vld [vmem:[#allocation5 + $0x8] sm:$0xff]
    %v150 = vld [vmem:[#allocation5 + $0x10] sm:$0xff]
    %v151 = vld [vmem:[#allocation5 + $0x18] sm:$0xff]
    %v152 = vld [vmem:[#allocation5 + $0x20] sm:$0xff]
    %v153 = vld [vmem:[#allocation5 + $0x28] sm:$0xff]
    %v154 = vld [vmem:[#allocation5 + $0x30] sm:$0xff]
    %v155 = vld [vmem:[#allocation5 + $0x38] sm:$0xff]
    %v156 = vld [vmem:[#allocation5 + $0x40] sm:$0xff]
    %v157 = vld [vmem:[#allocation5 + $0x48] sm:$0xff]
    %v158 = vld [vmem:[#allocation5 + $0x50] sm:$0xff]
    %v159 = vld [vmem:[#allocation5 + $0x58] sm:$0xff]
    %v160 = vld [vmem:[#allocation5 + $0x60] sm:$0xff]
    %v161 = vld [vmem:[#allocation5 + $0x68] sm:$0xff]
    %v162 = vld [vmem:[#allocation5 + $0x70] sm:$0xff]
    %v163 = vld [vmem:[#allocation5 + $0x78] sm:$0xff]
    %v164 = vld [vmem:[#allocation5 + $0x80] sm:$0xff]
    %v165 = vld [vmem:[#allocation5 + $0x88] sm:$0xff]
    %v166 = vld [vmem:[#allocation5 + $0x90] sm:$0xff]
    %v167 = vld [vmem:[#allocation5 + $0x98] sm:$0xff]
    %v168 = vld [vmem:[#allocation5 + $0xa0] sm:$0xff]
    %v169 = vld [vmem:[#allocation5 + $0xa8] sm:$0xff]
    %v170 = vld [vmem:[#allocation5 + $0xb0] sm:$0xff]
    %v171 = vld [vmem:[#allocation5 + $0xb8] sm:$0xff]
    %v172 = vld [vmem:[#allocation5 + $0xc0] sm:$0xff]
    %v173 = vld [vmem:[#allocation5 + $0xc8] sm:$0xff]
    %v174 = vld [vmem:[#allocation5 + $0xd0] sm:$0xff]
    %v175 = vld [vmem:[#allocation5 + $0xd8] sm:$0xff]
    %v176 = vld [vmem:[#allocation5 + $0xe0] sm:$0xff]
    %v177 = vld [vmem:[#allocation5 + $0xe8] sm:$0xff]
    %v178 = vld [vmem:[#allocation5 + $0xf0] sm:$0xff]
    %v179 = vld [vmem:[#allocation5 + $0xf8] sm:$0xff]
    %v180 = vld [vmem:[#allocation5 + $0x100] sm:$0xff]
    %v181 = vld [vmem:[#allocation5 + $0x108] sm:$0xff]
    %v182 = vld [vmem:[#allocation5 + $0x110] sm:$0xff]
    %v183 = vld [vmem:[#allocation5 + $0x118] sm:$0xff]
    %v184 = vld [vmem:[#allocation5 + $0x120] sm:$0xff]
    %v185 = vld [vmem:[#allocation5 + $0x128] sm:$0xff]
    %v186 = vld [vmem:[#allocation5 + $0x130] sm:$0xff]
    %v187 = vld [vmem:[#allocation5 + $0x138] sm:$0xff]
    %v188 = vld [vmem:[#allocation5 + $0x140] sm:$0xff]
    %v189 = vld [vmem:[#allocation5 + $0x148] sm:$0xff]
    %v190 = vld [vmem:[#allocation5 + $0x150] sm:$0xff]
    %v191 = vld [vmem:[#allocation5 + $0x158] sm:$0xff]
    %v192 = vld [vmem:[#allocation5 + $0x160] sm:$0xff]
    %v193 = vld [vmem:[#allocation5 + $0x168] sm:$0xff]
    %v194 = vld [vmem:[#allocation5 + $0x170] sm:$0xff]
    %v195 = vld [vmem:[#allocation5 + $0x178] sm:$0xff]
    %v196 = vld [vmem:[#allocation5 + $0x180] sm:$0xff]
    %v197 = vld [vmem:[#allocation5 + $0x188] sm:$0xff]
    %v198 = vld [vmem:[#allocation5 + $0x190] sm:$0xff]
    %v199 = vld [vmem:[#allocation5 + $0x198] sm:$0xff]
    %v200 = vld [vmem:[#allocation5 + $0x1a0] sm:$0xff]
    %v201 = vld [vmem:[#allocation5 + $0x1a8] sm:$0xff]
    %v202 = vld [vmem:[#allocation5 + $0x1b0] sm:$0xff]
    %v203 = vld [vmem:[#allocation5 + $0x1b8] sm:$0xff]
    %v204 = vld [vmem:[#allocation5 + $0x1c0] sm:$0xff]
    %v205 = vld [vmem:[#allocation5 + $0x1c8] sm:$0xff]
    %v206 = vld [vmem:[#allocation5 + $0x1d0] sm:$0xff]
    %v207 = vld [vmem:[#allocation5 + $0x1d8] sm:$0xff]
    %v208 = vld [vmem:[#allocation5 + $0x1e0] sm:$0xff]
    %v209 = vld [vmem:[#allocation5 + $0x1e8] sm:$0xff]
    %v210 = vld [vmem:[#allocation5 + $0x1f0] sm:$0xff]
    %v211 = vld [vmem:[#allocation5 + $0x1f8] sm:$0xff]
    %v212 = vld [vmem:[#allocation5 + $0x200] sm:$0xff]
    %v213 = vld [vmem:[#allocation5 + $0x208] sm:$0xff]
    %v214 = vld [vmem:[#allocation5 + $0x210] sm:$0xff]
    %v215 = vld [vmem:[#allocation5 + $0x218] sm:$0xff]
    %v216 = vld [vmem:[#allocation5 + $0x220] sm:$0xff]
    %v217 = vld [vmem:[#allocation5 + $0x228] sm:$0xff]
    %v218 = vld [vmem:[#allocation5 + $0x230] sm:$0xff]
    %v219 = vld [vmem:[#allocation5 + $0x238] sm:$0xff]
    %v220 = vld [vmem:[#allocation5 + $0x240] sm:$0xff]
    %v221 = vld [vmem:[#allocation5 + $0x248] sm:$0xff]
    %v222 = vld [vmem:[#allocation5 + $0x250] sm:$0xff]
    %v223 = vld [vmem:[#allocation5 + $0x258] sm:$0xff]
    %v224 = vld [vmem:[#allocation5 + $0x260] sm:$0xff]
    %v225 = vld [vmem:[#allocation5 + $0x268] sm:$0xff]
    %v226 = vld [vmem:[#allocation5 + $0x270] sm:$0xff]
    %v227 = vld [vmem:[#allocation5 + $0x278] sm:$0xff]
    %v228 = vld [vmem:[#allocation5 + $0x280] sm:$0xff]
    %v229 = vld [vmem:[#allocation5 + $0x288] sm:$0xff]
    %v230 = vld [vmem:[#allocation5 + $0x290] sm:$0xff]
    %v231 = vld [vmem:[#allocation5 + $0x298] sm:$0xff]
    %v232 = vld [vmem:[#allocation5 + $0x2a0] sm:$0xff]
    %v233 = vld [vmem:[#allocation5 + $0x2a8] sm:$0xff]
    %v234 = vld [vmem:[#allocation5 + $0x2b0] sm:$0xff]
    %v235 = vld [vmem:[#allocation5 + $0x2b8] sm:$0xff]
    %v236 = vld [vmem:[#allocation5 + $0x2c0] sm:$0xff]
    %v237 = vld [vmem:[#allocation5 + $0x2c8] sm:$0xff]
    %v238 = vld [vmem:[#allocation5 + $0x2d0] sm:$0xff]
    %v239 = vld [vmem:[#allocation5 + $0x2d8] sm:$0xff]
    %v240 = vld [vmem:[#allocation5 + $0x2e0] sm:$0xff]
    %v241 = vld [vmem:[#allocation5 + $0x2e8] sm:$0xff]
    %v242 = vld [vmem:[#allocation5 + $0x2f0] sm:$0xff]
    %v243 = vld [vmem:[#allocation5 + $0x2f8] sm:$0xff]
    %v244 = vld [vmem:[#allocation5 + $0x300] sm:$0xff]
    %v245 = vld [vmem:[#allocation5 + $0x308] sm:$0xff]
    %v246 = vld [vmem:[#allocation5 + $0x310] sm:$0xff]
    %v247 = vld [vmem:[#allocation5 + $0x318] sm:$0xff]
    %v248 = vld [vmem:[#allocation5 + $0x320] sm:$0xff]
    %v249 = vld [vmem:[#allocation5 + $0x328] sm:$0xff]
    %v250 = vld [vmem:[#allocation5 + $0x330] sm:$0xff]
    %v251 = vld [vmem:[#allocation5 + $0x338] sm:$0xff]
    %v252 = vld [vmem:[#allocation5 + $0x340] sm:$0xff]
    %v253 = vld [vmem:[#allocation5 + $0x348] sm:$0xff]
    %v254 = vld [vmem:[#allocation5 + $0x350] sm:$0xff]
    %v255 = vld [vmem:[#allocation5 + $0x358] sm:$0xff]
    %v256 = vld [vmem:[#allocation5 + $0x360] sm:$0xff]
    %v257 = vld [vmem:[#allocation5 + $0x368] sm:$0xff]
    %v258 = vld [vmem:[#allocation5 + $0x370] sm:$0xff]
    %v259 = vld [vmem:[#allocation5 + $0x378] sm:$0xff]
    %v260 = vld [vmem:[#allocation5 + $0x380] sm:$0xff]
    %v261 = vld [vmem:[#allocation5 + $0x388] sm:$0xff]
    %v262 = vld [vmem:[#allocation5 + $0x390] sm:$0xff]
    %v263 = vld [vmem:[#allocation5 + $0x398] sm:$0xff]
    %v264 = vld [vmem:[#allocation5 + $0x3a0] sm:$0xff]
    %v265 = vld [vmem:[#allocation5 + $0x3a8] sm:$0xff]
    %v266 = vld [vmem:[#allocation5 + $0x3b0] sm:$0xff]
    %v267 = vld [vmem:[#allocation5 + $0x3b8] sm:$0xff]
    %v268 = vld [vmem:[#allocation5 + $0x3c0] sm:$0xff]
    %v269 = vld [vmem:[#allocation5 + $0x3c8] sm:$0xff]
    %v270 = vld [vmem:[#allocation5 + $0x3d0] sm:$0xff]
    %v271 = vld [vmem:[#allocation5 + $0x3d8] sm:$0xff]
    %v272 = vld [vmem:[#allocation5 + $0x3e0] sm:$0xff]
    %v273 = vld [vmem:[#allocation5 + $0x3e8] sm:$0xff]
    %v274 = vld [vmem:[#allocation5 + $0x3f0] sm:$0xff]
    %v275 = vld [vmem:[#allocation5 + $0x3f8] sm:$0xff]
    %v276 = vld [vmem:[#allocation7] sm:$0xff]
    %v277 = vld [vmem:[#allocation7 + $0x8] sm:$0xff]
    %v280 = vlaneseq
    %v281 = vshrl.u32 %v280, 7
    %v282 = vsub.s32 0, %v281
    %v283 = vrot.slane %v276, %v282
    %v284 = vlaneseq
    %v285 = vshrl.u32 %v284, 7
    %v286 = vsub.s32 1, %v285
    %v287 = vrot.slane %v276, %v286
    %v288 = vlaneseq
    %v289 = vshrl.u32 %v288, 7
    %v290 = vsub.s32 2, %v289
    %v291 = vrot.slane %v276, %v290
    %v292 = vlaneseq
    %v293 = vshrl.u32 %v292, 7
    %v294 = vsub.s32 3, %v293
    %v295 = vrot.slane %v276, %v294
    %v296 = vlaneseq
    %v297 = vshrl.u32 %v296, 7
    %v298 = vsub.s32 4, %v297
    %v299 = vrot.slane %v276, %v298
    %v300 = vlaneseq
    %v301 = vshrl.u32 %v300, 7
    %v302 = vsub.s32 5, %v301
    %v303 = vrot.slane %v276, %v302
    %v304 = vlaneseq
    %v305 = vshrl.u32 %v304, 7
    %v306 = vsub.s32 6, %v305
    %v307 = vrot.slane %v276, %v306
    %v308 = vlaneseq
    %v309 = vshrl.u32 %v308, 7
    %v310 = vsub.s32 7, %v309
    %v311 = vrot.slane %v276, %v310
    %v312 = vlaneseq
    %v313 = vshrl.u32 %v312, 7
    %v314 = vsub.s32 0, %v313
    %v315 = vrot.slane %v277, %v314
    %v316 = vlaneseq
    %v317 = vshrl.u32 %v316, 7
    %v318 = vsub.s32 1, %v317
    %v319 = vrot.slane %v277, %v318
    %v320 = vlaneseq
    %v321 = vshrl.u32 %v320, 7
    %v322 = vsub.s32 2, %v321
    %v323 = vrot.slane %v277, %v322
    %v324 = vlaneseq
    %v325 = vshrl.u32 %v324, 7
    %v326 = vsub.s32 3, %v325
    %v327 = vrot.slane %v277, %v326
    %v328 = vlaneseq
    %v329 = vshrl.u32 %v328, 7
    %v330 = vsub.s32 4, %v329
    %v331 = vrot.slane %v277, %v330
    %v332 = vlaneseq
    %v333 = vshrl.u32 %v332, 7
    %v334 = vsub.s32 5, %v333
    %v335 = vrot.slane %v277, %v334
    %v336 = vlaneseq
    %v337 = vshrl.u32 %v336, 7
    %v338 = vsub.s32 6, %v337
    %v339 = vrot.slane %v277, %v338
    %v340 = vlaneseq
    %v341 = vshrl.u32 %v340, 7
    %v342 = vsub.s32 7, %v341
    %v343 = vrot.slane %v277, %v342
    %v488 = vunpack.c.l.b16 %v148
    %v489 = vunpack.c.h.b16 %v148
    %v490 = vunpack.c.l.b16 %v149
    %v491 = vunpack.c.h.b16 %v149
    %v492 = vunpack.c.l.b16 %v150
    %v493 = vunpack.c.h.b16 %v150
    %v494 = vunpack.c.l.b16 %v151
    %v495 = vunpack.c.h.b16 %v151
    %v496 = vunpack.c.l.b16 %v152
    %v497 = vunpack.c.h.b16 %v152
    %v498 = vunpack.c.l.b16 %v153
    %v499 = vunpack.c.h.b16 %v153
    %v500 = vunpack.c.l.b16 %v154
    %v501 = vunpack.c.h.b16 %v154
    %v502 = vunpack.c.l.b16 %v155
    %v503 = vunpack.c.h.b16 %v155
    %v504 = vunpack.c.l.b16 %v156
    %v505 = vunpack.c.h.b16 %v156
    %v506 = vunpack.c.l.b16 %v157
    %v507 = vunpack.c.h.b16 %v157
    %v508 = vunpack.c.l.b16 %v158
    %v509 = vunpack.c.h.b16 %v158
    %v510 = vunpack.c.l.b16 %v159
    %v511 = vunpack.c.h.b16 %v159
    %v512 = vunpack.c.l.b16 %v160
    %v513 = vunpack.c.h.b16 %v160
    %v514 = vunpack.c.l.b16 %v161
    %v515 = vunpack.c.h.b16 %v161
    %v516 = vunpack.c.l.b16 %v162
    %v517 = vunpack.c.h.b16 %v162
    %v518 = vunpack.c.l.b16 %v163
    %v519 = vunpack.c.h.b16 %v163
    %v520 = vunpack.c.l.b16 %v164
    %v521 = vunpack.c.h.b16 %v164
    %v522 = vunpack.c.l.b16 %v165
    %v523 = vunpack.c.h.b16 %v165
    %v524 = vunpack.c.l.b16 %v166
    %v525 = vunpack.c.h.b16 %v166
    %v526 = vunpack.c.l.b16 %v167
    %v527 = vunpack.c.h.b16 %v167
    %v528 = vunpack.c.l.b16 %v168
    %v529 = vunpack.c.h.b16 %v168
    %v530 = vunpack.c.l.b16 %v169
    %v531 = vunpack.c.h.b16 %v169
    %v532 = vunpack.c.l.b16 %v170
    %v533 = vunpack.c.h.b16 %v170
    %v534 = vunpack.c.l.b16 %v171
    %v535 = vunpack.c.h.b16 %v171
    %v536 = vunpack.c.l.b16 %v172
    %v537 = vunpack.c.h.b16 %v172
    %v538 = vunpack.c.l.b16 %v173
    %v539 = vunpack.c.h.b16 %v173
    %v540 = vunpack.c.l.b16 %v174
    %v541 = vunpack.c.h.b16 %v174
    %v542 = vunpack.c.l.b16 %v175
    %v543 = vunpack.c.h.b16 %v175
    %v544 = vunpack.c.l.b16 %v176
    %v545 = vunpack.c.h.b16 %v176
    %v546 = vunpack.c.l.b16 %v177
    %v547 = vunpack.c.h.b16 %v177
    %v548 = vunpack.c.l.b16 %v178
    %v549 = vunpack.c.h.b16 %v178
    %v550 = vunpack.c.l.b16 %v179
    %v551 = vunpack.c.h.b16 %v179
    %v552 = vunpack.c.l.b16 %v180
    %v553 = vunpack.c.h.b16 %v180
    %v554 = vunpack.c.l.b16 %v181
    %v555 = vunpack.c.h.b16 %v181
    %v556 = vunpack.c.l.b16 %v182
    %v557 = vunpack.c.h.b16 %v182
    %v558 = vunpack.c.l.b16 %v183
    %v559 = vunpack.c.h.b16 %v183
    %v560 = vunpack.c.l.b16 %v184
    %v561 = vunpack.c.h.b16 %v184
    %v562 = vunpack.c.l.b16 %v185
    %v563 = vunpack.c.h.b16 %v185
    %v564 = vunpack.c.l.b16 %v186
    %v565 = vunpack.c.h.b16 %v186
    %v566 = vunpack.c.l.b16 %v187
    %v567 = vunpack.c.h.b16 %v187
    %v568 = vunpack.c.l.b16 %v188
    %v569 = vunpack.c.h.b16 %v188
    %v570 = vunpack.c.l.b16 %v189
    %v571 = vunpack.c.h.b16 %v189
    %v572 = vunpack.c.l.b16 %v190
    %v573 = vunpack.c.h.b16 %v190
    %v574 = vunpack.c.l.b16 %v191
    %v575 = vunpack.c.h.b16 %v191
    %v576 = vunpack.c.l.b16 %v192
    %v577 = vunpack.c.h.b16 %v192
    %v578 = vunpack.c.l.b16 %v193
    %v579 = vunpack.c.h.b16 %v193
    %v580 = vunpack.c.l.b16 %v194
    %v581 = vunpack.c.h.b16 %v194
    %v582 = vunpack.c.l.b16 %v195
    %v583 = vunpack.c.h.b16 %v195
    %v584 = vunpack.c.l.b16 %v196
    %v585 = vunpack.c.h.b16 %v196
    %v586 = vunpack.c.l.b16 %v197
    %v587 = vunpack.c.h.b16 %v197
    %v588 = vunpack.c.l.b16 %v198
    %v589 = vunpack.c.h.b16 %v198
    %v590 = vunpack.c.l.b16 %v199
    %v591 = vunpack.c.h.b16 %v199
    %v592 = vunpack.c.l.b16 %v200
    %v593 = vunpack.c.h.b16 %v200
    %v594 = vunpack.c.l.b16 %v201
    %v595 = vunpack.c.h.b16 %v201
    %v596 = vunpack.c.l.b16 %v202
    %v597 = vunpack.c.h.b16 %v202
    %v598 = vunpack.c.l.b16 %v203
    %v599 = vunpack.c.h.b16 %v203
    %v600 = vunpack.c.l.b16 %v204
    %v601 = vunpack.c.h.b16 %v204
    %v602 = vunpack.c.l.b16 %v205
    %v603 = vunpack.c.h.b16 %v205
    %v604 = vunpack.c.l.b16 %v206
    %v605 = vunpack.c.h.b16 %v206
    %v606 = vunpack.c.l.b16 %v207
    %v607 = vunpack.c.h.b16 %v207
    %v608 = vunpack.c.l.b16 %v208
    %v609 = vunpack.c.h.b16 %v208
    %v610 = vunpack.c.l.b16 %v209
    %v611 = vunpack.c.h.b16 %v209
    %v612 = vunpack.c.l.b16 %v210
    %v613 = vunpack.c.h.b16 %v210
    %v614 = vunpack.c.l.b16 %v211
    %v615 = vunpack.c.h.b16 %v211
    %v616 = vunpack.c.l.b16 %v212
    %v617 = vunpack.c.h.b16 %v212
    %v618 = vunpack.c.l.b16 %v213
    %v619 = vunpack.c.h.b16 %v213
    %v620 = vunpack.c.l.b16 %v214
    %v621 = vunpack.c.h.b16 %v214
    %v622 = vunpack.c.l.b16 %v215
    %v623 = vunpack.c.h.b16 %v215
    %v624 = vunpack.c.l.b16 %v216
    %v625 = vunpack.c.h.b16 %v216
    %v626 = vunpack.c.l.b16 %v217
    %v627 = vunpack.c.h.b16 %v217
    %v628 = vunpack.c.l.b16 %v218
    %v629 = vunpack.c.h.b16 %v218
    %v630 = vunpack.c.l.b16 %v219
    %v631 = vunpack.c.h.b16 %v219
    %v632 = vunpack.c.l.b16 %v220
    %v633 = vunpack.c.h.b16 %v220
    %v634 = vunpack.c.l.b16 %v221
    %v635 = vunpack.c.h.b16 %v221
    %v636 = vunpack.c.l.b16 %v222
    %v637 = vunpack.c.h.b16 %v222
    %v638 = vunpack.c.l.b16 %v223
    %v639 = vunpack.c.h.b16 %v223
    %v640 = vunpack.c.l.b16 %v224
    %v641 = vunpack.c.h.b16 %v224
    %v642 = vunpack.c.l.b16 %v225
    %v643 = vunpack.c.h.b16 %v225
    %v644 = vunpack.c.l.b16 %v226
    %v645 = vunpack.c.h.b16 %v226
    %v646 = vunpack.c.l.b16 %v227
    %v647 = vunpack.c.h.b16 %v227
    %v648 = vunpack.c.l.b16 %v228
    %v649 = vunpack.c.h.b16 %v228
    %v650 = vunpack.c.l.b16 %v229
    %v651 = vunpack.c.h.b16 %v229
    %v652 = vunpack.c.l.b16 %v230
    %v653 = vunpack.c.h.b16 %v230
    %v654 = vunpack.c.l.b16 %v231
    %v655 = vunpack.c.h.b16 %v231
    %v656 = vunpack.c.l.b16 %v232
    %v657 = vunpack.c.h.b16 %v232
    %v658 = vunpack.c.l.b16 %v233
    %v659 = vunpack.c.h.b16 %v233
    %v660 = vunpack.c.l.b16 %v234
    %v661 = vunpack.c.h.b16 %v234
    %v662 = vunpack.c.l.b16 %v235
    %v663 = vunpack.c.h.b16 %v235
    %v664 = vunpack.c.l.b16 %v236
    %v665 = vunpack.c.h.b16 %v236
    %v666 = vunpack.c.l.b16 %v237
    %v667 = vunpack.c.h.b16 %v237
    %v668 = vunpack.c.l.b16 %v238
    %v669 = vunpack.c.h.b16 %v238
    %v670 = vunpack.c.l.b16 %v239
    %v671 = vunpack.c.h.b16 %v239
    %v672 = vunpack.c.l.b16 %v240
    %v673 = vunpack.c.h.b16 %v240
    %v674 = vunpack.c.l.b16 %v241
    %v675 = vunpack.c.h.b16 %v241
    %v676 = vunpack.c.l.b16 %v242
    %v677 = vunpack.c.h.b16 %v242
    %v678 = vunpack.c.l.b16 %v243
    %v679 = vunpack.c.h.b16 %v243
    %v680 = vunpack.c.l.b16 %v244
    %v681 = vunpack.c.h.b16 %v244
    %v682 = vunpack.c.l.b16 %v245
    %v683 = vunpack.c.h.b16 %v245
    %v684 = vunpack.c.l.b16 %v246
    %v685 = vunpack.c.h.b16 %v246
    %v686 = vunpack.c.l.b16 %v247
    %v687 = vunpack.c.h.b16 %v247
    %v688 = vunpack.c.l.b16 %v248
    %v689 = vunpack.c.h.b16 %v248
    %v690 = vunpack.c.l.b16 %v249
    %v691 = vunpack.c.h.b16 %v249
    %v692 = vunpack.c.l.b16 %v250
    %v693 = vunpack.c.h.b16 %v250
    %v694 = vunpack.c.l.b16 %v251
    %v695 = vunpack.c.h.b16 %v251
    %v696 = vunpack.c.l.b16 %v252
    %v697 = vunpack.c.h.b16 %v252
    %v698 = vunpack.c.l.b16 %v253
    %v699 = vunpack.c.h.b16 %v253
    %v700 = vunpack.c.l.b16 %v254
    %v701 = vunpack.c.h.b16 %v254
    %v702 = vunpack.c.l.b16 %v255
    %v703 = vunpack.c.h.b16 %v255
    %v704 = vunpack.c.l.b16 %v256
    %v705 = vunpack.c.h.b16 %v256
    %v706 = vunpack.c.l.b16 %v257
    %v707 = vunpack.c.h.b16 %v257
    %v708 = vunpack.c.l.b16 %v258
    %v709 = vunpack.c.h.b16 %v258
    %v710 = vunpack.c.l.b16 %v259
    %v711 = vunpack.c.h.b16 %v259
    %v712 = vunpack.c.l.b16 %v260
    %v713 = vunpack.c.h.b16 %v260
    %v714 = vunpack.c.l.b16 %v261
    %v715 = vunpack.c.h.b16 %v261
    %v716 = vunpack.c.l.b16 %v262
    %v717 = vunpack.c.h.b16 %v262
    %v718 = vunpack.c.l.b16 %v263
    %v719 = vunpack.c.h.b16 %v263
    %v720 = vunpack.c.l.b16 %v264
    %v721 = vunpack.c.h.b16 %v264
    %v722 = vunpack.c.l.b16 %v265
    %v723 = vunpack.c.h.b16 %v265
    %v724 = vunpack.c.l.b16 %v266
    %v725 = vunpack.c.h.b16 %v266
    %v726 = vunpack.c.l.b16 %v267
    %v727 = vunpack.c.h.b16 %v267
    %v728 = vunpack.c.l.b16 %v268
    %v729 = vunpack.c.h.b16 %v268
    %v730 = vunpack.c.l.b16 %v269
    %v731 = vunpack.c.h.b16 %v269
    %v732 = vunpack.c.l.b16 %v270
    %v733 = vunpack.c.h.b16 %v270
    %v734 = vunpack.c.l.b16 %v271
    %v735 = vunpack.c.h.b16 %v271
    %v736 = vunpack.c.l.b16 %v272
    %v737 = vunpack.c.h.b16 %v272
    %v738 = vunpack.c.l.b16 %v273
    %v739 = vunpack.c.h.b16 %v273
    %v740 = vunpack.c.l.b16 %v274
    %v741 = vunpack.c.h.b16 %v274
    %v742 = vunpack.c.l.b16 %v275
    %v743 = vunpack.c.h.b16 %v275
    %v744 = vpack.c.b16 %v504, %v488
    %v745 = vpack.c.b16 %v505, %v489
    %v746 = vpack.c.b16 %v506, %v490
    %v747 = vpack.c.b16 %v507, %v491
    %v748 = vpack.c.b16 %v508, %v492
    %v749 = vpack.c.b16 %v509, %v493
    %v750 = vpack.c.b16 %v510, %v494
    %v751 = vpack.c.b16 %v511, %v495
    %v752 = vpack.c.b16 %v512, %v496
    %v753 = vpack.c.b16 %v513, %v497
    %v754 = vpack.c.b16 %v514, %v498
    %v755 = vpack.c.b16 %v515, %v499
    %v756 = vpack.c.b16 %v516, %v500
    %v757 = vpack.c.b16 %v517, %v501
    %v758 = vpack.c.b16 %v518, %v502
    %v759 = vpack.c.b16 %v519, %v503
    %v760 = vpack.c.b16 %v536, %v520
    %v761 = vpack.c.b16 %v537, %v521
    %v762 = vpack.c.b16 %v538, %v522
    %v763 = vpack.c.b16 %v539, %v523
    %v764 = vpack.c.b16 %v540, %v524
    %v765 = vpack.c.b16 %v541, %v525
    %v766 = vpack.c.b16 %v542, %v526
    %v767 = vpack.c.b16 %v543, %v527
    %v768 = vpack.c.b16 %v544, %v528
    %v769 = vpack.c.b16 %v545, %v529
    %v770 = vpack.c.b16 %v546, %v530
    %v771 = vpack.c.b16 %v547, %v531
    %v772 = vpack.c.b16 %v548, %v532
    %v773 = vpack.c.b16 %v549, %v533
    %v774 = vpack.c.b16 %v550, %v534
    %v775 = vpack.c.b16 %v551, %v535
    %v776 = vpack.c.b16 %v568, %v552
    %v777 = vpack.c.b16 %v569, %v553
    %v778 = vpack.c.b16 %v570, %v554
    %v779 = vpack.c.b16 %v571, %v555
    %v780 = vpack.c.b16 %v572, %v556
    %v781 = vpack.c.b16 %v573, %v557
    %v782 = vpack.c.b16 %v574, %v558
    %v783 = vpack.c.b16 %v575, %v559
    %v784 = vpack.c.b16 %v576, %v560
    %v785 = vpack.c.b16 %v577, %v561
    %v786 = vpack.c.b16 %v578, %v562
    %v787 = vpack.c.b16 %v579, %v563
    %v788 = vpack.c.b16 %v580, %v564
    %v789 = vpack.c.b16 %v581, %v565
    %v790 = vpack.c.b16 %v582, %v566
    %v791 = vpack.c.b16 %v583, %v567
    %v792 = vpack.c.b16 %v600, %v584
    %v793 = vpack.c.b16 %v601, %v585
    %v794 = vpack.c.b16 %v602, %v586
    %v795 = vpack.c.b16 %v603, %v587
    %v796 = vpack.c.b16 %v604, %v588
    %v797 = vpack.c.b16 %v605, %v589
    %v798 = vpack.c.b16 %v606, %v590
    %v799 = vpack.c.b16 %v607, %v591
    %v800 = vpack.c.b16 %v608, %v592
    %v801 = vpack.c.b16 %v609, %v593
    %v802 = vpack.c.b16 %v610, %v594
    %v803 = vpack.c.b16 %v611, %v595
    %v804 = vpack.c.b16 %v612, %v596
    %v805 = vpack.c.b16 %v613, %v597
    %v806 = vpack.c.b16 %v614, %v598
    %v807 = vpack.c.b16 %v615, %v599
    %v808 = vpack.c.b16 %v632, %v616
    %v809 = vpack.c.b16 %v633, %v617
    %v810 = vpack.c.b16 %v634, %v618
    %v811 = vpack.c.b16 %v635, %v619
    %v812 = vpack.c.b16 %v636, %v620
    %v813 = vpack.c.b16 %v637, %v621
    %v814 = vpack.c.b16 %v638, %v622
    %v815 = vpack.c.b16 %v639, %v623
    %v816 = vpack.c.b16 %v640, %v624
    %v817 = vpack.c.b16 %v641, %v625
    %v818 = vpack.c.b16 %v642, %v626
    %v819 = vpack.c.b16 %v643, %v627
    %v820 = vpack.c.b16 %v644, %v628
    %v821 = vpack.c.b16 %v645, %v629
    %v822 = vpack.c.b16 %v646, %v630
    %v823 = vpack.c.b16 %v647, %v631
    %v824 = vpack.c.b16 %v664, %v648
    %v825 = vpack.c.b16 %v665, %v649
    %v826 = vpack.c.b16 %v666, %v650
    %v827 = vpack.c.b16 %v667, %v651
    %v828 = vpack.c.b16 %v668, %v652
    %v829 = vpack.c.b16 %v669, %v653
    %v830 = vpack.c.b16 %v670, %v654
    %v831 = vpack.c.b16 %v671, %v655
    %v832 = vpack.c.b16 %v672, %v656
    %v833 = vpack.c.b16 %v673, %v657
    %v834 = vpack.c.b16 %v674, %v658
    %v835 = vpack.c.b16 %v675, %v659
    %v836 = vpack.c.b16 %v676, %v660
    %v837 = vpack.c.b16 %v677, %v661
    %v838 = vpack.c.b16 %v678, %v662
    %v839 = vpack.c.b16 %v679, %v663
    %v840 = vpack.c.b16 %v696, %v680
    %v841 = vpack.c.b16 %v697, %v681
    %v842 = vpack.c.b16 %v698, %v682
    %v843 = vpack.c.b16 %v699, %v683
    %v844 = vpack.c.b16 %v700, %v684
    %v845 = vpack.c.b16 %v701, %v685
    %v846 = vpack.c.b16 %v702, %v686
    %v847 = vpack.c.b16 %v703, %v687
    %v848 = vpack.c.b16 %v704, %v688
    %v849 = vpack.c.b16 %v705, %v689
    %v850 = vpack.c.b16 %v706, %v690
    %v851 = vpack.c.b16 %v707, %v691
    %v852 = vpack.c.b16 %v708, %v692
    %v853 = vpack.c.b16 %v709, %v693
    %v854 = vpack.c.b16 %v710, %v694
    %v855 = vpack.c.b16 %v711, %v695
    %v856 = vpack.c.b16 %v728, %v712
    %v857 = vpack.c.b16 %v729, %v713
    %v858 = vpack.c.b16 %v730, %v714
    %v859 = vpack.c.b16 %v731, %v715
    %v860 = vpack.c.b16 %v732, %v716
    %v861 = vpack.c.b16 %v733, %v717
    %v862 = vpack.c.b16 %v734, %v718
    %v863 = vpack.c.b16 %v735, %v719
    %v864 = vpack.c.b16 %v736, %v720
    %v865 = vpack.c.b16 %v737, %v721
    %v866 = vpack.c.b16 %v738, %v722
    %v867 = vpack.c.b16 %v739, %v723
    %v868 = vpack.c.b16 %v740, %v724
    %v869 = vpack.c.b16 %v741, %v725
    %v870 = vpack.c.b16 %v742, %v726
    %v871 = vpack.c.b16 %v743, %v727
    %1000 = vmatprep.subr.bf16.mxu0 %v857
    %1001 = vmatpush1.bf16.msra.mxu0 %v856
    %1002 = vmatprep.subr.bf16.mxu0 %v841
    %1003 = vmatpush1.bf16.msra.mxu0 %v840
    %1004 = vmatprep.subr.bf16.mxu0 %v825
    %1005 = vmatpush1.bf16.msra.mxu0 %v824
    %1006 = vmatprep.subr.bf16.mxu0 %v809
    %1007 = vmatpush1.bf16.msra.mxu0 %v808
    %1008 = vmatprep.subr.bf16.mxu0 %v793
    %1009 = vmatpush1.bf16.msra.mxu0 %v792
    %1010 = vmatprep.subr.bf16.mxu0 %v777
    %1011 = vmatpush1.bf16.msra.mxu0 %v776
    %1012 = vmatprep.subr.bf16.mxu0 %v761
    %1013 = vmatpush1.bf16.msra.mxu0 %v760
    %1014 = vmatprep.subr.bf16.mxu0 %v745
    %1015 = vmatpush1.bf16.msra.mxu0 %v744
    %1016 = vmatprep.subr.bf16.mxu0 0
    %1017 = vmatpush2.bf16.msra.mxu0 0
    %1018 = vmatprep.subr.bf16.mxu0 0
    %1019 = vmatpush2.bf16.msra.mxu0 0
    %1020 = vmatprep.subr.bf16.mxu0 0
    %1021 = vmatpush2.bf16.msra.mxu0 0
    %1022 = vmatprep.subr.bf16.mxu0 0
    %1023 = vmatpush2.bf16.msra.mxu0 0
    %1024 = vmatprep.subr.bf16.mxu0 0
    %1025 = vmatpush2.bf16.msra.mxu0 0
    %1026 = vmatprep.subr.bf16.mxu0 0
    %1027 = vmatpush2.bf16.msra.mxu0 0
    %1028 = vmatprep.subr.bf16.mxu0 0
    %1029 = vmatpush2.bf16.msra.mxu0 0
    %1030 = vmatprep.subr.bf16.mxu0 0
    %1031 = vmatpush2.bf16.msra.mxu0 0
    %1032 = vmatprep.mubr.bf16.mxu0 0
    %1033 = vmatmul.mubr.bf16.gmra.mxu0 %v147
    %v1034 = vpop.f32.mrf.mxu0
    %v1035 = vadd.f32 %v283, %v1034
    %v1036 = vpop.f32.mrf.mxu0
    %v1037 = vadd.f32 %v287, %v1036
    %v1038 = vpop.f32.mrf.mxu0
    %v1039 = vpop.f32.mrf.mxu0
    %1040 = vdwg.mxu0
    %1041 = vmatprep.subr.bf16.mxu0 %v859
    %1042 = vmatpush1.bf16.msra.mxu0 %v858
    %1043 = vmatprep.subr.bf16.mxu0 %v843
    %1044 = vmatpush1.bf16.msra.mxu0 %v842
    %1045 = vmatprep.subr.bf16.mxu0 %v827
    %1046 = vmatpush1.bf16.msra.mxu0 %v826
    %1047 = vmatprep.subr.bf16.mxu0 %v811
    %1048 = vmatpush1.bf16.msra.mxu0 %v810
    %1049 = vmatprep.subr.bf16.mxu0 %v795
    %1050 = vmatpush1.bf16.msra.mxu0 %v794
    %1051 = vmatprep.subr.bf16.mxu0 %v779
    %1052 = vmatpush1.bf16.msra.mxu0 %v778
    %1053 = vmatprep.subr.bf16.mxu0 %v763
    %1054 = vmatpush1.bf16.msra.mxu0 %v762
    %1055 = vmatprep.subr.bf16.mxu0 %v747
    %1056 = vmatpush1.bf16.msra.mxu0 %v746
    %1057 = vmatprep.subr.bf16.mxu0 0
    %1058 = vmatpush2.bf16.msra.mxu0 0
    %1059 = vmatprep.subr.bf16.mxu0 0
    %1060 = vmatpush2.bf16.msra.mxu0 0
    %1061 = vmatprep.subr.bf16.mxu0 0
    %1062 = vmatpush2.bf16.msra.mxu0 0
    %1063 = vmatprep.subr.bf16.mxu0 0
    %1064 = vmatpush2.bf16.msra.mxu0 0
    %1065 = vmatprep.subr.bf16.mxu0 0
    %1066 = vmatpush2.bf16.msra.mxu0 0
    %1067 = vmatprep.subr.bf16.mxu0 0
    %1068 = vmatpush2.bf16.msra.mxu0 0
    %1069 = vmatprep.subr.bf16.mxu0 0
    %1070 = vmatpush2.bf16.msra.mxu0 0
    %1071 = vmatprep.subr.bf16.mxu0 0
    %1072 = vmatpush2.bf16.msra.mxu0 0
    %1073 = vmatprep.mubr.bf16.mxu0 0
    %1074 = vmatmul.mubr.bf16.gmra.mxu0 %v147
    %v1075 = vpop.f32.mrf.mxu0
    %v1076 = vadd.f32 %v291, %v1075
    %v1077 = vpop.f32.mrf.mxu0
    %v1078 = vadd.f32 %v295, %v1077
    %v1079 = vpop.f32.mrf.mxu0
    %v1080 = vpop.f32.mrf.mxu0
    %1081 = vdwg.mxu0
    %1082 = vmatprep.subr.bf16.mxu0 %v861
    %1083 = vmatpush1.bf16.msra.mxu0 %v860
    %1084 = vmatprep.subr.bf16.mxu0 %v845
    %1085 = vmatpush1.bf16.msra.mxu0 %v844
    %1086 = vmatprep.subr.bf16.mxu0 %v829
    %1087 = vmatpush1.bf16.msra.mxu0 %v828
    %1088 = vmatprep.subr.bf16.mxu0 %v813
    %1089 = vmatpush1.bf16.msra.mxu0 %v812
    %1090 = vmatprep.subr.bf16.mxu0 %v797
    %1091 = vmatpush1.bf16.msra.mxu0 %v796
    %1092 = vmatprep.subr.bf16.mxu0 %v781
    %1093 = vmatpush1.bf16.msra.mxu0 %v780
    %1094 = vmatprep.subr.bf16.mxu0 %v765
    %1095 = vmatpush1.bf16.msra.mxu0 %v764
    %1096 = vmatprep.subr.bf16.mxu0 %v749
    %1097 = vmatpush1.bf16.msra.mxu0 %v748
    %1098 = vmatprep.subr.bf16.mxu0 0
    %1099 = vmatpush2.bf16.msra.mxu0 0
    %1100 = vmatprep.subr.bf16.mxu0 0
    %1101 = vmatpush2.bf16.msra.mxu0 0
    %1102 = vmatprep.subr.bf16.mxu0 0
    %1103 = vmatpush2.bf16.msra.mxu0 0
    %1104 = vmatprep.subr.bf16.mxu0 0
    %1105 = vmatpush2.bf16.msra.mxu0 0
    %1106 = vmatprep.subr.bf16.mxu0 0
    %1107 = vmatpush2.bf16.msra.mxu0 0
    %1108 = vmatprep.subr.bf16.mxu0 0
    %1109 = vmatpush2.bf16.msra.mxu0 0
    %1110 = vmatprep.subr.bf16.mxu0 0
    %1111 = vmatpush2.bf16.msra.mxu0 0
    %1112 = vmatprep.subr.bf16.mxu0 0
    %1113 = vmatpush2.bf16.msra.mxu0 0
    %1114 = vmatprep.mubr.bf16.mxu0 0
    %1115 = vmatmul.mubr.bf16.gmra.mxu0 %v147
    %v1116 = vpop.f32.mrf.mxu0
    %v1117 = vadd.f32 %v299, %v1116
    %v1118 = vpop.f32.mrf.mxu0
    %v1119 = vadd.f32 %v303, %v1118
    %v1120 = vpop.f32.mrf.mxu0
    %v1121 = vpop.f32.mrf.mxu0
    %1122 = vdwg.mxu0
    %1123 = vmatprep.subr.bf16.mxu0 %v863
    %1124 = vmatpush1.bf16.msra.mxu0 %v862
    %1125 = vmatprep.subr.bf16.mxu0 %v847
    %1126 = vmatpush1.bf16.msra.mxu0 %v846
    %1127 = vmatprep.subr.bf16.mxu0 %v831
    %1128 = vmatpush1.bf16.msra.mxu0 %v830
    %1129 = vmatprep.subr.bf16.mxu0 %v815
    %1130 = vmatpush1.bf16.msra.mxu0 %v814
    %1131 = vmatprep.subr.bf16.mxu0 %v799
    %1132 = vmatpush1.bf16.msra.mxu0 %v798
    %1133 = vmatprep.subr.bf16.mxu0 %v783
    %1134 = vmatpush1.bf16.msra.mxu0 %v782
    %1135 = vmatprep.subr.bf16.mxu0 %v767
    %1136 = vmatpush1.bf16.msra.mxu0 %v766
    %1137 = vmatprep.subr.bf16.mxu0 %v751
    %1138 = vmatpush1.bf16.msra.mxu0 %v750
    %1139 = vmatprep.subr.bf16.mxu0 0
    %1140 = vmatpush2.bf16.msra.mxu0 0
    %1141 = vmatprep.subr.bf16.mxu0 0
    %1142 = vmatpush2.bf16.msra.mxu0 0
    %1143 = vmatprep.subr.bf16.mxu0 0
    %1144 = vmatpush2.bf16.msra.mxu0 0
    %1145 = vmatprep.subr.bf16.mxu0 0
    %1146 = vmatpush2.bf16.msra.mxu0 0
    %1147 = vmatprep.subr.bf16.mxu0 0
    %1148 = vmatpush2.bf16.msra.mxu0 0
    %1149 = vmatprep.subr.bf16.mxu0 0
    %1150 = vmatpush2.bf16.msra.mxu0 0
    %1151 = vmatprep.subr.bf16.mxu0 0
    %1152 = vmatpush2.bf16.msra.mxu0 0
    %1153 = vmatprep.subr.bf16.mxu0 0
    %1154 = vmatpush2.bf16.msra.mxu0 0
    %1155 = vmatprep.mubr.bf16.mxu0 0
    %1156 = vmatmul.mubr.bf16.gmra.mxu0 %v147
    %v1157 = vpop.f32.mrf.mxu0
    %v1158 = vadd.f32 %v307, %v1157
    %v1159 = vpop.f32.mrf.mxu0
    %v1160 = vadd.f32 %v311, %v1159
    %v1161 = vpop.f32.mrf.mxu0
    %v1162 = vpop.f32.mrf.mxu0
    %1163 = vdwg.mxu0
    %1164 = vmatprep.subr.bf16.mxu0 %v865
    %1165 = vmatpush1.bf16.msra.mxu0 %v864
    %1166 = vmatprep.subr.bf16.mxu0 %v849
    %1167 = vmatpush1.bf16.msra.mxu0 %v848
    %1168 = vmatprep.subr.bf16.mxu0 %v833
    %1169 = vmatpush1.bf16.msra.mxu0 %v832
    %1170 = vmatprep.subr.bf16.mxu0 %v817
    %1171 = vmatpush1.bf16.msra.mxu0 %v816
    %1172 = vmatprep.subr.bf16.mxu0 %v801
    %1173 = vmatpush1.bf16.msra.mxu0 %v800
    %1174 = vmatprep.subr.bf16.mxu0 %v785
    %1175 = vmatpush1.bf16.msra.mxu0 %v784
    %1176 = vmatprep.subr.bf16.mxu0 %v769
    %1177 = vmatpush1.bf16.msra.mxu0 %v768
    %1178 = vmatprep.subr.bf16.mxu0 %v753
    %1179 = vmatpush1.bf16.msra.mxu0 %v752
    %1180 = vmatprep.subr.bf16.mxu0 0
    %1181 = vmatpush2.bf16.msra.mxu0 0
    %1182 = vmatprep.subr.bf16.mxu0 0
    %1183 = vmatpush2.bf16.msra.mxu0 0
    %1184 = vmatprep.subr.bf16.mxu0 0
    %1185 = vmatpush2.bf16.msra.mxu0 0
    %1186 = vmatprep.subr.bf16.mxu0 0
    %1187 = vmatpush2.bf16.msra.mxu0 0
    %1188 = vmatprep.subr.bf16.mxu0 0
    %1189 = vmatpush2.bf16.msra.mxu0 0
    %1190 = vmatprep.subr.bf16.mxu0 0
    %1191 = vmatpush2.bf16.msra.mxu0 0
    %1192 = vmatprep.subr.bf16.mxu0 0
    %1193 = vmatpush2.bf16.msra.mxu0 0
    %1194 = vmatprep.subr.bf16.mxu0 0
    %1195 = vmatpush2.bf16.msra.mxu0 0
    %1196 = vmatprep.mubr.bf16.mxu0 0
    %1197 = vmatmul.mubr.bf16.gmra.mxu0 %v147
    %v1198 = vpop.f32.mrf.mxu0
    %v1199 = vadd.f32 %v315, %v1198
    %v1200 = vpop.f32.mrf.mxu0
    %v1201 = vadd.f32 %v319, %v1200
    %v1202 = vpop.f32.mrf.mxu0
    %v1203 = vpop.f32.mrf.mxu0
    %1204 = vdwg.mxu0
    %1205 = vmatprep.subr.bf16.mxu0 %v867
    %1206 = vmatpush1.bf16.msra.mxu0 %v866
    %1207 = vmatprep.subr.bf16.mxu0 %v851
    %1208 = vmatpush1.bf16.msra.mxu0 %v850
    %1209 = vmatprep.subr.bf16.mxu0 %v835
    %1210 = vmatpush1.bf16.msra.mxu0 %v834
    %1211 = vmatprep.subr.bf16.mxu0 %v819
    %1212 = vmatpush1.bf16.msra.mxu0 %v818
    %1213 = vmatprep.subr.bf16.mxu0 %v803
    %1214 = vmatpush1.bf16.msra.mxu0 %v802
    %1215 = vmatprep.subr.bf16.mxu0 %v787
    %1216 = vmatpush1.bf16.msra.mxu0 %v786
    %1217 = vmatprep.subr.bf16.mxu0 %v771
    %1218 = vmatpush1.bf16.msra.mxu0 %v770
    %1219 = vmatprep.subr.bf16.mxu0 %v755
    %1220 = vmatpush1.bf16.msra.mxu0 %v754
    %1221 = vmatprep.subr.bf16.mxu0 0
    %1222 = vmatpush2.bf16.msra.mxu0 0
    %1223 = vmatprep.subr.bf16.mxu0 0
    %1224 = vmatpush2.bf16.msra.mxu0 0
    %1225 = vmatprep.subr.bf16.mxu0 0
    %1226 = vmatpush2.bf16.msra.mxu0 0
    %1227 = vmatprep.subr.bf16.mxu0 0
    %1228 = vmatpush2.bf16.msra.mxu0 0
    %1229 = vmatprep.subr.bf16.mxu0 0
    %1230 = vmatpush2.bf16.msra.mxu0 0
    %1231 = vmatprep.subr.bf16.mxu0 0
    %1232 = vmatpush2.bf16.msra.mxu0 0
    %1233 = vmatprep.subr.bf16.mxu0 0
    %1234 = vmatpush2.bf16.msra.mxu0 0
    %1235 = vmatprep.subr.bf16.mxu0 0
    %1236 = vmatpush2.bf16.msra.mxu0 0
    %1237 = vmatprep.mubr.bf16.mxu0 0
    %1238 = vmatmul.mubr.bf16.gmra.mxu0 %v147
    %v1239 = vpop.f32.mrf.mxu0
    %v1240 = vadd.f32 %v323, %v1239
    %v1241 = vpop.f32.mrf.mxu0
    %v1242 = vadd.f32 %v327, %v1241
    %v1243 = vpop.f32.mrf.mxu0
    %v1244 = vpop.f32.mrf.mxu0
    %1245 = vdwg.mxu0
    %1246 = vmatprep.subr.bf16.mxu0 %v869
    %1247 = vmatpush1.bf16.msra.mxu0 %v868
    %1248 = vmatprep.subr.bf16.mxu0 %v853
    %1249 = vmatpush1.bf16.msra.mxu0 %v852
    %1250 = vmatprep.subr.bf16.mxu0 %v837
    %1251 = vmatpush1.bf16.msra.mxu0 %v836
    %1252 = vmatprep.subr.bf16.mxu0 %v821
    %1253 = vmatpush1.bf16.msra.mxu0 %v820
    %1254 = vmatprep.subr.bf16.mxu0 %v805
    %1255 = vmatpush1.bf16.msra.mxu0 %v804
    %1256 = vmatprep.subr.bf16.mxu0 %v789
    %1257 = vmatpush1.bf16.msra.mxu0 %v788
    %1258 = vmatprep.subr.bf16.mxu0 %v773
    %1259 = vmatpush1.bf16.msra.mxu0 %v772
    %1260 = vmatprep.subr.bf16.mxu0 %v757
    %1261 = vmatpush1.bf16.msra.mxu0 %v756
    %1262 = vmatprep.subr.bf16.mxu0 0
    %1263 = vmatpush2.bf16.msra.mxu0 0
    %1264 = vmatprep.subr.bf16.mxu0 0
    %1265 = vmatpush2.bf16.msra.mxu0 0
    %1266 = vmatprep.subr.bf16.mxu0 0
    %1267 = vmatpush2.bf16.msra.mxu0 0
    %1268 = vmatprep.subr.bf16.mxu0 0
    %1269 = vmatpush2.bf16.msra.mxu0 0
    %1270 = vmatprep.subr.bf16.mxu0 0
    %1271 = vmatpush2.bf16.msra.mxu0 0
    %1272 = vmatprep.subr.bf16.mxu0 0
    %1273 = vmatpush2.bf16.msra.mxu0 0
    %1274 = vmatprep.subr.bf16.mxu0 0
    %1275 = vmatpush2.bf16.msra.mxu0 0
    %1276 = vmatprep.subr.bf16.mxu0 0
    %1277 = vmatpush2.bf16.msra.mxu0 0
    %1278 = vmatprep.mubr.bf16.mxu0 0
    %1279 = vmatmul.mubr.bf16.gmra.mxu0 %v147
    %v1280 = vpop.f32.mrf.mxu0
    %v1281 = vadd.f32 %v331, %v1280
    %v1282 = vpop.f32.mrf.mxu0
    %v1283 = vadd.f32 %v335, %v1282
    %v1284 = vpop.f32.mrf.mxu0
    %v1285 = vpop.f32.mrf.mxu0
    %1286 = vdwg.mxu0
    %1287 = vmatprep.subr.bf16.mxu0 %v871
    %1288 = vmatpush1.bf16.msra.mxu0 %v870
    %1289 = vmatprep.subr.bf16.mxu0 %v855
    %1290 = vmatpush1.bf16.msra.mxu0 %v854
    %1291 = vmatprep.subr.bf16.mxu0 %v839
    %1292 = vmatpush1.bf16.msra.mxu0 %v838
    %1293 = vmatprep.subr.bf16.mxu0 %v823
    %1294 = vmatpush1.bf16.msra.mxu0 %v822
    %1295 = vmatprep.subr.bf16.mxu0 %v807
    %1296 = vmatpush1.bf16.msra.mxu0 %v806
    %1297 = vmatprep.subr.bf16.mxu0 %v791
    %1298 = vmatpush1.bf16.msra.mxu0 %v790
    %1299 = vmatprep.subr.bf16.mxu0 %v775
    %1300 = vmatpush1.bf16.msra.mxu0 %v774
    %1301 = vmatprep.subr.bf16.mxu0 %v759
    %1302 = vmatpush1.bf16.msra.mxu0 %v758
    %1303 = vmatprep.subr.bf16.mxu0 0
    %1304 = vmatpush2.bf16.msra.mxu0 0
    %1305 = vmatprep.subr.bf16.mxu0 0
    %1306 = vmatpush2.bf16.msra.mxu0 0
    %1307 = vmatprep.subr.bf16.mxu0 0
    %1308 = vmatpush2.bf16.msra.mxu0 0
    %1309 = vmatprep.subr.bf16.mxu0 0
    %1310 = vmatpush2.bf16.msra.mxu0 0
    %1311 = vmatprep.subr.bf16.mxu0 0
    %1312 = vmatpush2.bf16.msra.mxu0 0
    %1313 = vmatprep.subr.bf16.mxu0 0
    %1314 = vmatpush2.bf16.msra.mxu0 0
    %1315 = vmatprep.subr.bf16.mxu0 0
    %1316 = vmatpush2.bf16.msra.mxu0 0
    %1317 = vmatprep.subr.bf16.mxu0 0
    %1318 = vmatpush2.bf16.msra.mxu0 0
    %1319 = vmatprep.mubr.bf16.mxu0 0
    %1320 = vmatmul.mubr.bf16.gmra.mxu0 %v147
    %v1321 = vpop.f32.mrf.mxu0
    %v1322 = vadd.f32 %v339, %v1321
    %v1323 = vpop.f32.mrf.mxu0
    %v1324 = vadd.f32 %v343, %v1323
    %v1325 = vpop.f32.mrf.mxu0
    %v1326 = vpop.f32.mrf.mxu0
    %1327 = vdwg.mxu0
    %v1328 = vmax.f32 %v1035, 0.0
    %v1329 = vmax.f32 %v1037, 0.0
    %v1330 = vmax.f32 %v1076, 0.0
    %v1331 = vmax.f32 %v1078, 0.0
    %v1332 = vmax.f32 %v1117, 0.0
    %v1333 = vmax.f32 %v1119, 0.0
    %v1334 = vmax.f32 %v1158, 0.0
    %v1335 = vmax.f32 %v1160, 0.0
    %v1336 = vmax.f32 %v1199, 0.0
    %v1337 = vmax.f32 %v1201, 0.0
    %v1338 = vmax.f32 %v1240, 0.0
    %v1339 = vmax.f32 %v1242, 0.0
    %v1340 = vmax.f32 %v1281, 0.0
    %v1341 = vmax.f32 %v1283, 0.0
    %v1342 = vmax.f32 %v1322, 0.0
    %v1343 = vmax.f32 %v1324, 0.0
    %v1344 = vpack.c.bf16 %v1328, %v1328
    %v1345 = vpack.c.bf16 %v1329, %v1329
    %v1346 = vpack.c.bf16 %v1330, %v1330
    %v1347 = vpack.c.bf16 %v1331, %v1331
    %v1348 = vpack.c.bf16 %v1332, %v1332
    %v1349 = vpack.c.bf16 %v1333, %v1333
    %v1350 = vpack.c.bf16 %v1334, %v1334
    %v1351 = vpack.c.bf16 %v1335, %v1335
    %v1352 = vpack.c.bf16 %v1336, %v1336
    %v1353 = vpack.c.bf16 %v1337, %v1337
    %v1354 = vpack.c.bf16 %v1338, %v1338
    %v1355 = vpack.c.bf16 %v1339, %v1339
    %v1356 = vpack.c.bf16 %v1340, %v1340
    %v1357 = vpack.c.bf16 %v1341, %v1341
    %v1358 = vpack.c.bf16 %v1342, %v1342
    %v1359 = vpack.c.bf16 %v1343, %v1343
    %v1360 = vld [vmem:[#allocation8] sm:$0xff]
    %v1361 = vld [vmem:[#allocation8 + $0x8] sm:$0xff]
    %v1362 = vld [vmem:[#allocation8 + $0x10] sm:$0xff]
    %v1363 = vld [vmem:[#allocation8 + $0x18] sm:$0xff]
    %v1364 = vld [vmem:[#allocation8 + $0x20] sm:$0xff]
    %v1365 = vld [vmem:[#allocation8 + $0x28] sm:$0xff]
    %v1366 = vld [vmem:[#allocation8 + $0x30] sm:$0xff]
    %v1367 = vld [vmem:[#allocation8 + $0x38] sm:$0xff]
    %v1368 = vld [vmem:[#allocation8 + $0x40] sm:$0xff]
    %v1369 = vld [vmem:[#allocation8 + $0x48] sm:$0xff]
    %v1370 = vld [vmem:[#allocation8 + $0x50] sm:$0xff]
    %v1371 = vld [vmem:[#allocation8 + $0x58] sm:$0xff]
    %v1372 = vld [vmem:[#allocation8 + $0x60] sm:$0xff]
    %v1373 = vld [vmem:[#allocation8 + $0x68] sm:$0xff]
    %v1374 = vld [vmem:[#allocation8 + $0x70] sm:$0xff]
    %v1375 = vld [vmem:[#allocation8 + $0x78] sm:$0xff]
    %v1376 = vld [vmem:[#allocation8 + $0x80] sm:$0xff]
    %v1377 = vld [vmem:[#allocation8 + $0x88] sm:$0xff]
    %v1378 = vld [vmem:[#allocation8 + $0x90] sm:$0xff]
    %v1379 = vld [vmem:[#allocation8 + $0x98] sm:$0xff]
    %v1380 = vld [vmem:[#allocation8 + $0xa0] sm:$0xff]
    %v1381 = vld [vmem:[#allocation8 + $0xa8] sm:$0xff]
    %v1382 = vld [vmem:[#allocation8 + $0xb0] sm:$0xff]
    %v1383 = vld [vmem:[#allocation8 + $0xb8] sm:$0xff]
    %v1384 = vld [vmem:[#allocation8 + $0xc0] sm:$0xff]
    %v1385 = vld [vmem:[#allocation8 + $0xc8] sm:$0xff]
    %v1386 = vld [vmem:[#allocation8 + $0xd0] sm:$0xff]
    %v1387 = vld [vmem:[#allocation8 + $0xd8] sm:$0xff]
    %v1388 = vld [vmem:[#allocation8 + $0xe0] sm:$0xff]
    %v1389 = vld [vmem:[#allocation8 + $0xe8] sm:$0xff]
    %v1390 = vld [vmem:[#allocation8 + $0xf0] sm:$0xff]
    %v1391 = vld [vmem:[#allocation8 + $0xf8] sm:$0xff]
    %v1392 = vld [vmem:[#allocation8 + $0x100] sm:$0xff]
    %v1393 = vld [vmem:[#allocation8 + $0x108] sm:$0xff]
    %v1394 = vld [vmem:[#allocation8 + $0x110] sm:$0xff]
    %v1395 = vld [vmem:[#allocation8 + $0x118] sm:$0xff]
    %v1396 = vld [vmem:[#allocation8 + $0x120] sm:$0xff]
    %v1397 = vld [vmem:[#allocation8 + $0x128] sm:$0xff]
    %v1398 = vld [vmem:[#allocation8 + $0x130] sm:$0xff]
    %v1399 = vld [vmem:[#allocation8 + $0x138] sm:$0xff]
    %v1400 = vld [vmem:[#allocation8 + $0x140] sm:$0xff]
    %v1401 = vld [vmem:[#allocation8 + $0x148] sm:$0xff]
    %v1402 = vld [vmem:[#allocation8 + $0x150] sm:$0xff]
    %v1403 = vld [vmem:[#allocation8 + $0x158] sm:$0xff]
    %v1404 = vld [vmem:[#allocation8 + $0x160] sm:$0xff]
    %v1405 = vld [vmem:[#allocation8 + $0x168] sm:$0xff]
    %v1406 = vld [vmem:[#allocation8 + $0x170] sm:$0xff]
    %v1407 = vld [vmem:[#allocation8 + $0x178] sm:$0xff]
    %v1408 = vld [vmem:[#allocation8 + $0x180] sm:$0xff]
    %v1409 = vld [vmem:[#allocation8 + $0x188] sm:$0xff]
    %v1410 = vld [vmem:[#allocation8 + $0x190] sm:$0xff]
    %v1411 = vld [vmem:[#allocation8 + $0x198] sm:$0xff]
    %v1412 = vld [vmem:[#allocation8 + $0x1a0] sm:$0xff]
    %v1413 = vld [vmem:[#allocation8 + $0x1a8] sm:$0xff]
    %v1414 = vld [vmem:[#allocation8 + $0x1b0] sm:$0xff]
    %v1415 = vld [vmem:[#allocation8 + $0x1b8] sm:$0xff]
    %v1416 = vld [vmem:[#allocation8 + $0x1c0] sm:$0xff]
    %v1417 = vld [vmem:[#allocation8 + $0x1c8] sm:$0xff]
    %v1418 = vld [vmem:[#allocation8 + $0x1d0] sm:$0xff]
    %v1419 = vld [vmem:[#allocation8 + $0x1d8] sm:$0xff]
    %v1420 = vld [vmem:[#allocation8 + $0x1e0] sm:$0xff]
    %v1421 = vld [vmem:[#allocation8 + $0x1e8] sm:$0xff]
    %v1422 = vld [vmem:[#allocation8 + $0x1f0] sm:$0xff]
    %v1423 = vld [vmem:[#allocation8 + $0x1f8] sm:$0xff]
    %v1424 = vld [vmem:[#allocation8 + $0x200] sm:$0xff]
    %v1425 = vld [vmem:[#allocation8 + $0x208] sm:$0xff]
    %v1426 = vld [vmem:[#allocation8 + $0x210] sm:$0xff]
    %v1427 = vld [vmem:[#allocation8 + $0x218] sm:$0xff]
    %v1428 = vld [vmem:[#allocation8 + $0x220] sm:$0xff]
    %v1429 = vld [vmem:[#allocation8 + $0x228] sm:$0xff]
    %v1430 = vld [vmem:[#allocation8 + $0x230] sm:$0xff]
    %v1431 = vld [vmem:[#allocation8 + $0x238] sm:$0xff]
    %v1432 = vld [vmem:[#allocation8 + $0x240] sm:$0xff]
    %v1433 = vld [vmem:[#allocation8 + $0x248] sm:$0xff]
    %v1434 = vld [vmem:[#allocation8 + $0x250] sm:$0xff]
    %v1435 = vld [vmem:[#allocation8 + $0x258] sm:$0xff]
    %v1436 = vld [vmem:[#allocation8 + $0x260] sm:$0xff]
    %v1437 = vld [vmem:[#allocation8 + $0x268] sm:$0xff]
    %v1438 = vld [vmem:[#allocation8 + $0x270] sm:$0xff]
    %v1439 = vld [vmem:[#allocation8 + $0x278] sm:$0xff]
    %v1440 = vld [vmem:[#allocation8 + $0x280] sm:$0xff]
    %v1441 = vld [vmem:[#allocation8 + $0x288] sm:$0xff]
    %v1442 = vld [vmem:[#allocation8 + $0x290] sm:$0xff]
    %v1443 = vld [vmem:[#allocation8 + $0x298] sm:$0xff]
    %v1444 = vld [vmem:[#allocation8 + $0x2a0] sm:$0xff]
    %v1445 = vld [vmem:[#allocation8 + $0x2a8] sm:$0xff]
    %v1446 = vld [vmem:[#allocation8 + $0x2b0] sm:$0xff]
    %v1447 = vld [vmem:[#allocation8 + $0x2b8] sm:$0xff]
    %v1448 = vld [vmem:[#allocation8 + $0x2c0] sm:$0xff]
    %v1449 = vld [vmem:[#allocation8 + $0x2c8] sm:$0xff]
    %v1450 = vld [vmem:[#allocation8 + $0x2d0] sm:$0xff]
    %v1451 = vld [vmem:[#allocation8 + $0x2d8] sm:$0xff]
    %v1452 = vld [vmem:[#allocation8 + $0x2e0] sm:$0xff]
    %v1453 = vld [vmem:[#allocation8 + $0x2e8] sm:$0xff]
    %v1454 = vld [vmem:[#allocation8 + $0x2f0] sm:$0xff]
    %v1455 = vld [vmem:[#allocation8 + $0x2f8] sm:$0xff]
    %v1456 = vld [vmem:[#allocation8 + $0x300] sm:$0xff]
    %v1457 = vld [vmem:[#allocation8 + $0x308] sm:$0xff]
    %v1458 = vld [vmem:[#allocation8 + $0x310] sm:$0xff]
    %v1459 = vld [vmem:[#allocation8 + $0x318] sm:$0xff]
    %v1460 = vld [vmem:[#allocation8 + $0x320] sm:$0xff]
    %v1461 = vld [vmem:[#allocation8 + $0x328] sm:$0xff]
    %v1462 = vld [vmem:[#allocation8 + $0x330] sm:$0xff]
    %v1463 = vld [vmem:[#allocation8 + $0x338] sm:$0xff]
    %v1464 = vld [vmem:[#allocation8 + $0x340] sm:$0xff]
    %v1465 = vld [vmem:[#allocation8 + $0x348] sm:$0xff]
    %v1466 = vld [vmem:[#allocation8 + $0x350] sm:$0xff]
    %v1467 = vld [vmem:[#allocation8 + $0x358] sm:$0xff]
    %v1468 = vld [vmem:[#allocation8 + $0x360] sm:$0xff]
    %v1469 = vld [vmem:[#allocation8 + $0x368] sm:$0xff]
    %v1470 = vld [vmem:[#allocation8 + $0x370] sm:$0xff]
    %v1471 = vld [vmem:[#allocation8 + $0x378] sm:$0xff]
    %v1472 = vld [vmem:[#allocation8 + $0x380] sm:$0xff]
    %v1473 = vld [vmem:[#allocation8 + $0x388] sm:$0xff]
    %v1474 = vld [vmem:[#allocation8 + $0x390] sm:$0xff]
    %v1475 = vld [vmem:[#allocation8 + $0x398] sm:$0xff]
    %v1476 = vld [vmem:[#allocation8 + $0x3a0] sm:$0xff]
    %v1477 = vld [vmem:[#allocation8 + $0x3a8] sm:$0xff]
    %v1478 = vld [vmem:[#allocation8 + $0x3b0] sm:$0xff]
    %v1479 = vld [vmem:[#allocation8 + $0x3b8] sm:$0xff]
    %v1480 = vld [vmem:[#allocation8 + $0x3c0] sm:$0xff]
    %v1481 = vld [vmem:[#allocation8 + $0x3c8] sm:$0xff]
    %v1482 = vld [vmem:[#allocation8 + $0x3d0] sm:$0xff]
    %v1483 = vld [vmem:[#allocation8 + $0x3d8] sm:$0xff]
    %v1484 = vld [vmem:[#allocation8 + $0x3e0] sm:$0xff]
    %v1485 = vld [vmem:[#allocation8 + $0x3e8] sm:$0xff]
    %v1486 = vld [vmem:[#allocation8 + $0x3f0] sm:$0xff]
    %v1487 = vld [vmem:[#allocation8 + $0x3f8] sm:$0xff]
    %v1488 = vld [vmem:[#allocation8 + $0x400] sm:$0xff]
    %v1489 = vld [vmem:[#allocation8 + $0x408] sm:$0xff]
    %v1490 = vld [vmem:[#allocation8 + $0x410] sm:$0xff]
    %v1491 = vld [vmem:[#allocation8 + $0x418] sm:$0xff]
    %v1492 = vld [vmem:[#allocation8 + $0x420] sm:$0xff]
    %v1493 = vld [vmem:[#allocation8 + $0x428] sm:$0xff]
    %v1494 = vld [vmem:[#allocation8 + $0x430] sm:$0xff]
    %v1495 = vld [vmem:[#allocation8 + $0x438] sm:$0xff]
    %v1496 = vld [vmem:[#allocation8 + $0x440] sm:$0xff]
    %v1497 = vld [vmem:[#allocation8 + $0x448] sm:$0xff]
    %v1498 = vld [vmem:[#allocation8 + $0x450] sm:$0xff]
    %v1499 = vld [vmem:[#allocation8 + $0x458] sm:$0xff]
    %v1500 = vld [vmem:[#allocation8 + $0x460] sm:$0xff]
    %v1501 = vld [vmem:[#allocation8 + $0x468] sm:$0xff]
    %v1502 = vld [vmem:[#allocation8 + $0x470] sm:$0xff]
    %v1503 = vld [vmem:[#allocation8 + $0x478] sm:$0xff]
    %v1504 = vld [vmem:[#allocation8 + $0x480] sm:$0xff]
    %v1505 = vld [vmem:[#allocation8 + $0x488] sm:$0xff]
    %v1506 = vld [vmem:[#allocation8 + $0x490] sm:$0xff]
    %v1507 = vld [vmem:[#allocation8 + $0x498] sm:$0xff]
    %v1508 = vld [vmem:[#allocation8 + $0x4a0] sm:$0xff]
    %v1509 = vld [vmem:[#allocation8 + $0x4a8] sm:$0xff]
    %v1510 = vld [vmem:[#allocation8 + $0x4b0] sm:$0xff]
    %v1511 = vld [vmem:[#allocation8 + $0x4b8] sm:$0xff]
    %v1512 = vld [vmem:[#allocation8 + $0x4c0] sm:$0xff]
    %v1513 = vld [vmem:[#allocation8 + $0x4c8] sm:$0xff]
    %v1514 = vld [vmem:[#allocation8 + $0x4d0] sm:$0xff]
    %v1515 = vld [vmem:[#allocation8 + $0x4d8] sm:$0xff]
    %v1516 = vld [vmem:[#allocation8 + $0x4e0] sm:$0xff]
    %v1517 = vld [vmem:[#allocation8 + $0x4e8] sm:$0xff]
    %v1518 = vld [vmem:[#allocation8 + $0x4f0] sm:$0xff]
    %v1519 = vld [vmem:[#allocation8 + $0x4f8] sm:$0xff]
    %v1520 = vld [vmem:[#allocation8 + $0x500] sm:$0xff]
    %v1521 = vld [vmem:[#allocation8 + $0x508] sm:$0xff]
    %v1522 = vld [vmem:[#allocation8 + $0x510] sm:$0xff]
    %v1523 = vld [vmem:[#allocation8 + $0x518] sm:$0xff]
    %v1524 = vld [vmem:[#allocation8 + $0x520] sm:$0xff]
    %v1525 = vld [vmem:[#allocation8 + $0x528] sm:$0xff]
    %v1526 = vld [vmem:[#allocation8 + $0x530] sm:$0xff]
    %v1527 = vld [vmem:[#allocation8 + $0x538] sm:$0xff]
    %v1528 = vld [vmem:[#allocation8 + $0x540] sm:$0xff]
    %v1529 = vld [vmem:[#allocation8 + $0x548] sm:$0xff]
    %v1530 = vld [vmem:[#allocation8 + $0x550] sm:$0xff]
    %v1531 = vld [vmem:[#allocation8 + $0x558] sm:$0xff]
    %v1532 = vld [vmem:[#allocation8 + $0x560] sm:$0xff]
    %v1533 = vld [vmem:[#allocation8 + $0x568] sm:$0xff]
    %v1534 = vld [vmem:[#allocation8 + $0x570] sm:$0xff]
    %v1535 = vld [vmem:[#allocation8 + $0x578] sm:$0xff]
    %v1536 = vld [vmem:[#allocation8 + $0x580] sm:$0xff]
    %v1537 = vld [vmem:[#allocation8 + $0x588] sm:$0xff]
    %v1538 = vld [vmem:[#allocation8 + $0x590] sm:$0xff]
    %v1539 = vld [vmem:[#allocation8 + $0x598] sm:$0xff]
    %v1540 = vld [vmem:[#allocation8 + $0x5a0] sm:$0xff]
    %v1541 = vld [vmem:[#allocation8 + $0x5a8] sm:$0xff]
    %v1542 = vld [vmem:[#allocation8 + $0x5b0] sm:$0xff]
    %v1543 = vld [vmem:[#allocation8 + $0x5b8] sm:$0xff]
    %v1544 = vld [vmem:[#allocation8 + $0x5c0] sm:$0xff]
    %v1545 = vld [vmem:[#allocation8 + $0x5c8] sm:$0xff]
    %v1546 = vld [vmem:[#allocation8 + $0x5d0] sm:$0xff]
    %v1547 = vld [vmem:[#allocation8 + $0x5d8] sm:$0xff]
    %v1548 = vld [vmem:[#allocation8 + $0x5e0] sm:$0xff]
    %v1549 = vld [vmem:[#allocation8 + $0x5e8] sm:$0xff]
    %v1550 = vld [vmem:[#allocation8 + $0x5f0] sm:$0xff]
    %v1551 = vld [vmem:[#allocation8 + $0x5f8] sm:$0xff]
    %v1552 = vld [vmem:[#allocation8 + $0x600] sm:$0xff]
    %v1553 = vld [vmem:[#allocation8 + $0x608] sm:$0xff]
    %v1554 = vld [vmem:[#allocation8 + $0x610] sm:$0xff]
    %v1555 = vld [vmem:[#allocation8 + $0x618] sm:$0xff]
    %v1556 = vld [vmem:[#allocation8 + $0x620] sm:$0xff]
    %v1557 = vld [vmem:[#allocation8 + $0x628] sm:$0xff]
    %v1558 = vld [vmem:[#allocation8 + $0x630] sm:$0xff]
    %v1559 = vld [vmem:[#allocation8 + $0x638] sm:$0xff]
    %v1560 = vld [vmem:[#allocation8 + $0x640] sm:$0xff]
    %v1561 = vld [vmem:[#allocation8 + $0x648] sm:$0xff]
    %v1562 = vld [vmem:[#allocation8 + $0x650] sm:$0xff]
    %v1563 = vld [vmem:[#allocation8 + $0x658] sm:$0xff]
    %v1564 = vld [vmem:[#allocation8 + $0x660] sm:$0xff]
    %v1565 = vld [vmem:[#allocation8 + $0x668] sm:$0xff]
    %v1566 = vld [vmem:[#allocation8 + $0x670] sm:$0xff]
    %v1567 = vld [vmem:[#allocation8 + $0x678] sm:$0xff]
    %v1568 = vld [vmem:[#allocation8 + $0x680] sm:$0xff]
    %v1569 = vld [vmem:[#allocation8 + $0x688] sm:$0xff]
    %v1570 = vld [vmem:[#allocation8 + $0x690] sm:$0xff]
    %v1571 = vld [vmem:[#allocation8 + $0x698] sm:$0xff]
    %v1572 = vld [vmem:[#allocation8 + $0x6a0] sm:$0xff]
    %v1573 = vld [vmem:[#allocation8 + $0x6a8] sm:$0xff]
    %v1574 = vld [vmem:[#allocation8 + $0x6b0] sm:$0xff]
    %v1575 = vld [vmem:[#allocation8 + $0x6b8] sm:$0xff]
    %v1576 = vld [vmem:[#allocation8 + $0x6c0] sm:$0xff]
    %v1577 = vld [vmem:[#allocation8 + $0x6c8] sm:$0xff]
    %v1578 = vld [vmem:[#allocation8 + $0x6d0] sm:$0xff]
    %v1579 = vld [vmem:[#allocation8 + $0x6d8] sm:$0xff]
    %v1580 = vld [vmem:[#allocation8 + $0x6e0] sm:$0xff]
    %v1581 = vld [vmem:[#allocation8 + $0x6e8] sm:$0xff]
    %v1582 = vld [vmem:[#allocation8 + $0x6f0] sm:$0xff]
    %v1583 = vld [vmem:[#allocation8 + $0x6f8] sm:$0xff]
    %v1584 = vld [vmem:[#allocation8 + $0x700] sm:$0xff]
    %v1585 = vld [vmem:[#allocation8 + $0x708] sm:$0xff]
    %v1586 = vld [vmem:[#allocation8 + $0x710] sm:$0xff]
    %v1587 = vld [vmem:[#allocation8 + $0x718] sm:$0xff]
    %v1588 = vld [vmem:[#allocation8 + $0x720] sm:$0xff]
    %v1589 = vld [vmem:[#allocation8 + $0x728] sm:$0xff]
    %v1590 = vld [vmem:[#allocation8 + $0x730] sm:$0xff]
    %v1591 = vld [vmem:[#allocation8 + $0x738] sm:$0xff]
    %v1592 = vld [vmem:[#allocation8 + $0x740] sm:$0xff]
    %v1593 = vld [vmem:[#allocation8 + $0x748] sm:$0xff]
    %v1594 = vld [vmem:[#allocation8 + $0x750] sm:$0xff]
    %v1595 = vld [vmem:[#allocation8 + $0x758] sm:$0xff]
    %v1596 = vld [vmem:[#allocation8 + $0x760] sm:$0xff]
    %v1597 = vld [vmem:[#allocation8 + $0x768] sm:$0xff]
    %v1598 = vld [vmem:[#allocation8 + $0x770] sm:$0xff]
    %v1599 = vld [vmem:[#allocation8 + $0x778] sm:$0xff]
    %v1600 = vld [vmem:[#allocation8 + $0x780] sm:$0xff]
    %v1601 = vld [vmem:[#allocation8 + $0x788] sm:$0xff]
    %v1602 = vld [vmem:[#allocation8 + $0x790] sm:$0xff]
    %v1603 = vld [vmem:[#allocation8 + $0x798] sm:$0xff]
    %v1604 = vld [vmem:[#allocation8 + $0x7a0] sm:$0xff]
    %v1605 = vld [vmem:[#allocation8 + $0x7a8] sm:$0xff]
    %v1606 = vld [vmem:[#allocation8 + $0x7b0] sm:$0xff]
    %v1607 = vld [vmem:[#allocation8 + $0x7b8] sm:$0xff]
    %v1608 = vld [vmem:[#allocation8 + $0x7c0] sm:$0xff]
    %v1609 = vld [vmem:[#allocation8 + $0x7c8] sm:$0xff]
    %v1610 = vld [vmem:[#allocation8 + $0x7d0] sm:$0xff]
    %v1611 = vld [vmem:[#allocation8 + $0x7d8] sm:$0xff]
    %v1612 = vld [vmem:[#allocation8 + $0x7e0] sm:$0xff]
    %v1613 = vld [vmem:[#allocation8 + $0x7e8] sm:$0xff]
    %v1614 = vld [vmem:[#allocation8 + $0x7f0] sm:$0xff]
    %v1615 = vld [vmem:[#allocation8 + $0x7f8] sm:$0xff]
    %v1616 = vld [vmem:[#allocation8 + $0x800] sm:$0xff]
    %v1617 = vld [vmem:[#allocation8 + $0x808] sm:$0xff]
    %v1618 = vld [vmem:[#allocation8 + $0x810] sm:$0xff]
    %v1619 = vld [vmem:[#allocation8 + $0x818] sm:$0xff]
    %v1620 = vld [vmem:[#allocation8 + $0x820] sm:$0xff]
    %v1621 = vld [vmem:[#allocation8 + $0x828] sm:$0xff]
    %v1622 = vld [vmem:[#allocation8 + $0x830] sm:$0xff]
    %v1623 = vld [vmem:[#allocation8 + $0x838] sm:$0xff]
    %v1624 = vld [vmem:[#allocation8 + $0x840] sm:$0xff]
    %v1625 = vld [vmem:[#allocation8 + $0x848] sm:$0xff]
    %v1626 = vld [vmem:[#allocation8 + $0x850] sm:$0xff]
    %v1627 = vld [vmem:[#allocation8 + $0x858] sm:$0xff]
    %v1628 = vld [vmem:[#allocation8 + $0x860] sm:$0xff]
    %v1629 = vld [vmem:[#allocation8 + $0x868] sm:$0xff]
    %v1630 = vld [vmem:[#allocation8 + $0x870] sm:$0xff]
    %v1631 = vld [vmem:[#allocation8 + $0x878] sm:$0xff]
    %v1632 = vld [vmem:[#allocation8 + $0x880] sm:$0xff]
    %v1633 = vld [vmem:[#allocation8 + $0x888] sm:$0xff]
    %v1634 = vld [vmem:[#allocation8 + $0x890] sm:$0xff]
    %v1635 = vld [vmem:[#allocation8 + $0x898] sm:$0xff]
    %v1636 = vld [vmem:[#allocation8 + $0x8a0] sm:$0xff]
    %v1637 = vld [vmem:[#allocation8 + $0x8a8] sm:$0xff]
    %v1638 = vld [vmem:[#allocation8 + $0x8b0] sm:$0xff]
    %v1639 = vld [vmem:[#allocation8 + $0x8b8] sm:$0xff]
    %v1640 = vld [vmem:[#allocation8 + $0x8c0] sm:$0xff]
    %v1641 = vld [vmem:[#allocation8 + $0x8c8] sm:$0xff]
    %v1642 = vld [vmem:[#allocation8 + $0x8d0] sm:$0xff]
    %v1643 = vld [vmem:[#allocation8 + $0x8d8] sm:$0xff]
    %v1644 = vld [vmem:[#allocation8 + $0x8e0] sm:$0xff]
    %v1645 = vld [vmem:[#allocation8 + $0x8e8] sm:$0xff]
    %v1646 = vld [vmem:[#allocation8 + $0x8f0] sm:$0xff]
    %v1647 = vld [vmem:[#allocation8 + $0x8f8] sm:$0xff]
    %v1648 = vld [vmem:[#allocation8 + $0x900] sm:$0xff]
    %v1649 = vld [vmem:[#allocation8 + $0x908] sm:$0xff]
    %v1650 = vld [vmem:[#allocation8 + $0x910] sm:$0xff]
    %v1651 = vld [vmem:[#allocation8 + $0x918] sm:$0xff]
    %v1652 = vld [vmem:[#allocation8 + $0x920] sm:$0xff]
    %v1653 = vld [vmem:[#allocation8 + $0x928] sm:$0xff]
    %v1654 = vld [vmem:[#allocation8 + $0x930] sm:$0xff]
    %v1655 = vld [vmem:[#allocation8 + $0x938] sm:$0xff]
    %v1656 = vld [vmem:[#allocation8 + $0x940] sm:$0xff]
    %v1657 = vld [vmem:[#allocation8 + $0x948] sm:$0xff]
    %v1658 = vld [vmem:[#allocation8 + $0x950] sm:$0xff]
    %v1659 = vld [vmem:[#allocation8 + $0x958] sm:$0xff]
    %v1660 = vld [vmem:[#allocation8 + $0x960] sm:$0xff]
    %v1661 = vld [vmem:[#allocation8 + $0x968] sm:$0xff]
    %v1662 = vld [vmem:[#allocation8 + $0x970] sm:$0xff]
    %v1663 = vld [vmem:[#allocation8 + $0x978] sm:$0xff]
    %v1664 = vld [vmem:[#allocation8 + $0x980] sm:$0xff]
    %v1665 = vld [vmem:[#allocation8 + $0x988] sm:$0xff]
    %v1666 = vld [vmem:[#allocation8 + $0x990] sm:$0xff]
    %v1667 = vld [vmem:[#allocation8 + $0x998] sm:$0xff]
    %v1668 = vld [vmem:[#allocation8 + $0x9a0] sm:$0xff]
    %v1669 = vld [vmem:[#allocation8 + $0x9a8] sm:$0xff]
    %v1670 = vld [vmem:[#allocation8 + $0x9b0] sm:$0xff]
    %v1671 = vld [vmem:[#allocation8 + $0x9b8] sm:$0xff]
    %v1672 = vld [vmem:[#allocation8 + $0x9c0] sm:$0xff]
    %v1673 = vld [vmem:[#allocation8 + $0x9c8] sm:$0xff]
    %v1674 = vld [vmem:[#allocation8 + $0x9d0] sm:$0xff]
    %v1675 = vld [vmem:[#allocation8 + $0x9d8] sm:$0xff]
    %v1676 = vld [vmem:[#allocation8 + $0x9e0] sm:$0xff]
    %v1677 = vld [vmem:[#allocation8 + $0x9e8] sm:$0xff]
    %v1678 = vld [vmem:[#allocation8 + $0x9f0] sm:$0xff]
    %v1679 = vld [vmem:[#allocation8 + $0x9f8] sm:$0xff]
    %v1680 = vld [vmem:[#allocation8 + $0xa00] sm:$0xff]
    %v1681 = vld [vmem:[#allocation8 + $0xa08] sm:$0xff]
    %v1682 = vld [vmem:[#allocation8 + $0xa10] sm:$0xff]
    %v1683 = vld [vmem:[#allocation8 + $0xa18] sm:$0xff]
    %v1684 = vld [vmem:[#allocation8 + $0xa20] sm:$0xff]
    %v1685 = vld [vmem:[#allocation8 + $0xa28] sm:$0xff]
    %v1686 = vld [vmem:[#allocation8 + $0xa30] sm:$0xff]
    %v1687 = vld [vmem:[#allocation8 + $0xa38] sm:$0xff]
    %v1688 = vld [vmem:[#allocation8 + $0xa40] sm:$0xff]
    %v1689 = vld [vmem:[#allocation8 + $0xa48] sm:$0xff]
    %v1690 = vld [vmem:[#allocation8 + $0xa50] sm:$0xff]
    %v1691 = vld [vmem:[#allocation8 + $0xa58] sm:$0xff]
    %v1692 = vld [vmem:[#allocation8 + $0xa60] sm:$0xff]
    %v1693 = vld [vmem:[#allocation8 + $0xa68] sm:$0xff]
    %v1694 = vld [vmem:[#allocation8 + $0xa70] sm:$0xff]
    %v1695 = vld [vmem:[#allocation8 + $0xa78] sm:$0xff]
    %v1696 = vld [vmem:[#allocation8 + $0xa80] sm:$0xff]
    %v1697 = vld [vmem:[#allocation8 + $0xa88] sm:$0xff]
    %v1698 = vld [vmem:[#allocation8 + $0xa90] sm:$0xff]
    %v1699 = vld [vmem:[#allocation8 + $0xa98] sm:$0xff]
    %v1700 = vld [vmem:[#allocation8 + $0xaa0] sm:$0xff]
    %v1701 = vld [vmem:[#allocation8 + $0xaa8] sm:$0xff]
    %v1702 = vld [vmem:[#allocation8 + $0xab0] sm:$0xff]
    %v1703 = vld [vmem:[#allocation8 + $0xab8] sm:$0xff]
    %v1704 = vld [vmem:[#allocation8 + $0xac0] sm:$0xff]
    %v1705 = vld [vmem:[#allocation8 + $0xac8] sm:$0xff]
    %v1706 = vld [vmem:[#allocation8 + $0xad0] sm:$0xff]
    %v1707 = vld [vmem:[#allocation8 + $0xad8] sm:$0xff]
    %v1708 = vld [vmem:[#allocation8 + $0xae0] sm:$0xff]
    %v1709 = vld [vmem:[#allocation8 + $0xae8] sm:$0xff]
    %v1710 = vld [vmem:[#allocation8 + $0xaf0] sm:$0xff]
    %v1711 = vld [vmem:[#allocation8 + $0xaf8] sm:$0xff]
    %v1712 = vld [vmem:[#allocation8 + $0xb00] sm:$0xff]
    %v1713 = vld [vmem:[#allocation8 + $0xb08] sm:$0xff]
    %v1714 = vld [vmem:[#allocation8 + $0xb10] sm:$0xff]
    %v1715 = vld [vmem:[#allocation8 + $0xb18] sm:$0xff]
    %v1716 = vld [vmem:[#allocation8 + $0xb20] sm:$0xff]
    %v1717 = vld [vmem:[#allocation8 + $0xb28] sm:$0xff]
    %v1718 = vld [vmem:[#allocation8 + $0xb30] sm:$0xff]
    %v1719 = vld [vmem:[#allocation8 + $0xb38] sm:$0xff]
    %v1720 = vld [vmem:[#allocation8 + $0xb40] sm:$0xff]
    %v1721 = vld [vmem:[#allocation8 + $0xb48] sm:$0xff]
    %v1722 = vld [vmem:[#allocation8 + $0xb50] sm:$0xff]
    %v1723 = vld [vmem:[#allocation8 + $0xb58] sm:$0xff]
    %v1724 = vld [vmem:[#allocation8 + $0xb60] sm:$0xff]
    %v1725 = vld [vmem:[#allocation8 + $0xb68] sm:$0xff]
    %v1726 = vld [vmem:[#allocation8 + $0xb70] sm:$0xff]
    %v1727 = vld [vmem:[#allocation8 + $0xb78] sm:$0xff]
    %v1728 = vld [vmem:[#allocation8 + $0xb80] sm:$0xff]
    %v1729 = vld [vmem:[#allocation8 + $0xb88] sm:$0xff]
    %v1730 = vld [vmem:[#allocation8 + $0xb90] sm:$0xff]
    %v1731 = vld [vmem:[#allocation8 + $0xb98] sm:$0xff]
    %v1732 = vld [vmem:[#allocation8 + $0xba0] sm:$0xff]
    %v1733 = vld [vmem:[#allocation8 + $0xba8] sm:$0xff]
    %v1734 = vld [vmem:[#allocation8 + $0xbb0] sm:$0xff]
    %v1735 = vld [vmem:[#allocation8 + $0xbb8] sm:$0xff]
    %v1736 = vld [vmem:[#allocation8 + $0xbc0] sm:$0xff]
    %v1737 = vld [vmem:[#allocation8 + $0xbc8] sm:$0xff]
    %v1738 = vld [vmem:[#allocation8 + $0xbd0] sm:$0xff]
    %v1739 = vld [vmem:[#allocation8 + $0xbd8] sm:$0xff]
    %v1740 = vld [vmem:[#allocation8 + $0xbe0] sm:$0xff]
    %v1741 = vld [vmem:[#allocation8 + $0xbe8] sm:$0xff]
    %v1742 = vld [vmem:[#allocation8 + $0xbf0] sm:$0xff]
    %v1743 = vld [vmem:[#allocation8 + $0xbf8] sm:$0xff]
    %v1744 = vld [vmem:[#allocation8 + $0xc00] sm:$0xff]
    %v1745 = vld [vmem:[#allocation8 + $0xc08] sm:$0xff]
    %v1746 = vld [vmem:[#allocation8 + $0xc10] sm:$0xff]
    %v1747 = vld [vmem:[#allocation8 + $0xc18] sm:$0xff]
    %v1748 = vld [vmem:[#allocation8 + $0xc20] sm:$0xff]
    %v1749 = vld [vmem:[#allocation8 + $0xc28] sm:$0xff]
    %v1750 = vld [vmem:[#allocation8 + $0xc30] sm:$0xff]
    %v1751 = vld [vmem:[#allocation8 + $0xc38] sm:$0xff]
    %v1752 = vld [vmem:[#allocation8 + $0xc40] sm:$0xff]
    %v1753 = vld [vmem:[#allocation8 + $0xc48] sm:$0xff]
    %v1754 = vld [vmem:[#allocation8 + $0xc50] sm:$0xff]
    %v1755 = vld [vmem:[#allocation8 + $0xc58] sm:$0xff]
    %v1756 = vld [vmem:[#allocation8 + $0xc60] sm:$0xff]
    %v1757 = vld [vmem:[#allocation8 + $0xc68] sm:$0xff]
    %v1758 = vld [vmem:[#allocation8 + $0xc70] sm:$0xff]
    %v1759 = vld [vmem:[#allocation8 + $0xc78] sm:$0xff]
    %v1760 = vld [vmem:[#allocation8 + $0xc80] sm:$0xff]
    %v1761 = vld [vmem:[#allocation8 + $0xc88] sm:$0xff]
    %v1762 = vld [vmem:[#allocation8 + $0xc90] sm:$0xff]
    %v1763 = vld [vmem:[#allocation8 + $0xc98] sm:$0xff]
    %v1764 = vld [vmem:[#allocation8 + $0xca0] sm:$0xff]
    %v1765 = vld [vmem:[#allocation8 + $0xca8] sm:$0xff]
    %v1766 = vld [vmem:[#allocation8 + $0xcb0] sm:$0xff]
    %v1767 = vld [vmem:[#allocation8 + $0xcb8] sm:$0xff]
    %v1768 = vld [vmem:[#allocation8 + $0xcc0] sm:$0xff]
    %v1769 = vld [vmem:[#allocation8 + $0xcc8] sm:$0xff]
    %v1770 = vld [vmem:[#allocation8 + $0xcd0] sm:$0xff]
    %v1771 = vld [vmem:[#allocation8 + $0xcd8] sm:$0xff]
    %v1772 = vld [vmem:[#allocation8 + $0xce0] sm:$0xff]
    %v1773 = vld [vmem:[#allocation8 + $0xce8] sm:$0xff]
    %v1774 = vld [vmem:[#allocation8 + $0xcf0] sm:$0xff]
    %v1775 = vld [vmem:[#allocation8 + $0xcf8] sm:$0xff]
    %v1776 = vld [vmem:[#allocation8 + $0xd00] sm:$0xff]
    %v1777 = vld [vmem:[#allocation8 + $0xd08] sm:$0xff]
    %v1778 = vld [vmem:[#allocation8 + $0xd10] sm:$0xff]
    %v1779 = vld [vmem:[#allocation8 + $0xd18] sm:$0xff]
    %v1780 = vld [vmem:[#allocation8 + $0xd20] sm:$0xff]
    %v1781 = vld [vmem:[#allocation8 + $0xd28] sm:$0xff]
    %v1782 = vld [vmem:[#allocation8 + $0xd30] sm:$0xff]
    %v1783 = vld [vmem:[#allocation8 + $0xd38] sm:$0xff]
    %v1784 = vld [vmem:[#allocation8 + $0xd40] sm:$0xff]
    %v1785 = vld [vmem:[#allocation8 + $0xd48] sm:$0xff]
    %v1786 = vld [vmem:[#allocation8 + $0xd50] sm:$0xff]
    %v1787 = vld [vmem:[#allocation8 + $0xd58] sm:$0xff]
    %v1788 = vld [vmem:[#allocation8 + $0xd60] sm:$0xff]
    %v1789 = vld [vmem:[#allocation8 + $0xd68] sm:$0xff]
    %v1790 = vld [vmem:[#allocation8 + $0xd70] sm:$0xff]
    %v1791 = vld [vmem:[#allocation8 + $0xd78] sm:$0xff]
    %v1792 = vld [vmem:[#allocation8 + $0xd80] sm:$0xff]
    %v1793 = vld [vmem:[#allocation8 + $0xd88] sm:$0xff]
    %v1794 = vld [vmem:[#allocation8 + $0xd90] sm:$0xff]
    %v1795 = vld [vmem:[#allocation8 + $0xd98] sm:$0xff]
    %v1796 = vld [vmem:[#allocation8 + $0xda0] sm:$0xff]
    %v1797 = vld [vmem:[#allocation8 + $0xda8] sm:$0xff]
    %v1798 = vld [vmem:[#allocation8 + $0xdb0] sm:$0xff]
    %v1799 = vld [vmem:[#allocation8 + $0xdb8] sm:$0xff]
    %v1800 = vld [vmem:[#allocation8 + $0xdc0] sm:$0xff]
    %v1801 = vld [vmem:[#allocation8 + $0xdc8] sm:$0xff]
    %v1802 = vld [vmem:[#allocation8 + $0xdd0] sm:$0xff]
    %v1803 = vld [vmem:[#allocation8 + $0xdd8] sm:$0xff]
    %v1804 = vld [vmem:[#allocation8 + $0xde0] sm:$0xff]
    %v1805 = vld [vmem:[#allocation8 + $0xde8] sm:$0xff]
    %v1806 = vld [vmem:[#allocation8 + $0xdf0] sm:$0xff]
    %v1807 = vld [vmem:[#allocation8 + $0xdf8] sm:$0xff]
    %v1808 = vld [vmem:[#allocation8 + $0xe00] sm:$0xff]
    %v1809 = vld [vmem:[#allocation8 + $0xe08] sm:$0xff]
    %v1810 = vld [vmem:[#allocation8 + $0xe10] sm:$0xff]
    %v1811 = vld [vmem:[#allocation8 + $0xe18] sm:$0xff]
    %v1812 = vld [vmem:[#allocation8 + $0xe20] sm:$0xff]
    %v1813 = vld [vmem:[#allocation8 + $0xe28] sm:$0xff]
    %v1814 = vld [vmem:[#allocation8 + $0xe30] sm:$0xff]
    %v1815 = vld [vmem:[#allocation8 + $0xe38] sm:$0xff]
    %v1816 = vld [vmem:[#allocation8 + $0xe40] sm:$0xff]
    %v1817 = vld [vmem:[#allocation8 + $0xe48] sm:$0xff]
    %v1818 = vld [vmem:[#allocation8 + $0xe50] sm:$0xff]
    %v1819 = vld [vmem:[#allocation8 + $0xe58] sm:$0xff]
    %v1820 = vld [vmem:[#allocation8 + $0xe60] sm:$0xff]
    %v1821 = vld [vmem:[#allocation8 + $0xe68] sm:$0xff]
    %v1822 = vld [vmem:[#allocation8 + $0xe70] sm:$0xff]
    %v1823 = vld [vmem:[#allocation8 + $0xe78] sm:$0xff]
    %v1824 = vld [vmem:[#allocation8 + $0xe80] sm:$0xff]
    %v1825 = vld [vmem:[#allocation8 + $0xe88] sm:$0xff]
    %v1826 = vld [vmem:[#allocation8 + $0xe90] sm:$0xff]
    %v1827 = vld [vmem:[#allocation8 + $0xe98] sm:$0xff]
    %v1828 = vld [vmem:[#allocation8 + $0xea0] sm:$0xff]
    %v1829 = vld [vmem:[#allocation8 + $0xea8] sm:$0xff]
    %v1830 = vld [vmem:[#allocation8 + $0xeb0] sm:$0xff]
    %v1831 = vld [vmem:[#allocation8 + $0xeb8] sm:$0xff]
    %v1832 = vld [vmem:[#allocation8 + $0xec0] sm:$0xff]
    %v1833 = vld [vmem:[#allocation8 + $0xec8] sm:$0xff]
    %v1834 = vld [vmem:[#allocation8 + $0xed0] sm:$0xff]
    %v1835 = vld [vmem:[#allocation8 + $0xed8] sm:$0xff]
    %v1836 = vld [vmem:[#allocation8 + $0xee0] sm:$0xff]
    %v1837 = vld [vmem:[#allocation8 + $0xee8] sm:$0xff]
    %v1838 = vld [vmem:[#allocation8 + $0xef0] sm:$0xff]
    %v1839 = vld [vmem:[#allocation8 + $0xef8] sm:$0xff]
    %v1840 = vld [vmem:[#allocation8 + $0xf00] sm:$0xff]
    %v1841 = vld [vmem:[#allocation8 + $0xf08] sm:$0xff]
    %v1842 = vld [vmem:[#allocation8 + $0xf10] sm:$0xff]
    %v1843 = vld [vmem:[#allocation8 + $0xf18] sm:$0xff]
    %v1844 = vld [vmem:[#allocation8 + $0xf20] sm:$0xff]
    %v1845 = vld [vmem:[#allocation8 + $0xf28] sm:$0xff]
    %v1846 = vld [vmem:[#allocation8 + $0xf30] sm:$0xff]
    %v1847 = vld [vmem:[#allocation8 + $0xf38] sm:$0xff]
    %v1848 = vld [vmem:[#allocation8 + $0xf40] sm:$0xff]
    %v1849 = vld [vmem:[#allocation8 + $0xf48] sm:$0xff]
    %v1850 = vld [vmem:[#allocation8 + $0xf50] sm:$0xff]
    %v1851 = vld [vmem:[#allocation8 + $0xf58] sm:$0xff]
    %v1852 = vld [vmem:[#allocation8 + $0xf60] sm:$0xff]
    %v1853 = vld [vmem:[#allocation8 + $0xf68] sm:$0xff]
    %v1854 = vld [vmem:[#allocation8 + $0xf70] sm:$0xff]
    %v1855 = vld [vmem:[#allocation8 + $0xf78] sm:$0xff]
    %v1856 = vld [vmem:[#allocation8 + $0xf80] sm:$0xff]
    %v1857 = vld [vmem:[#allocation8 + $0xf88] sm:$0xff]
    %v1858 = vld [vmem:[#allocation8 + $0xf90] sm:$0xff]
    %v1859 = vld [vmem:[#allocation8 + $0xf98] sm:$0xff]
    %v1860 = vld [vmem:[#allocation8 + $0xfa0] sm:$0xff]
    %v1861 = vld [vmem:[#allocation8 + $0xfa8] sm:$0xff]
    %v1862 = vld [vmem:[#allocation8 + $0xfb0] sm:$0xff]
    %v1863 = vld [vmem:[#allocation8 + $0xfb8] sm:$0xff]
    %v1864 = vld [vmem:[#allocation8 + $0xfc0] sm:$0xff]
    %v1865 = vld [vmem:[#allocation8 + $0xfc8] sm:$0xff]
    %v1866 = vld [vmem:[#allocation8 + $0xfd0] sm:$0xff]
    %v1867 = vld [vmem:[#allocation8 + $0xfd8] sm:$0xff]
    %v1868 = vld [vmem:[#allocation8 + $0xfe0] sm:$0xff]
    %v1869 = vld [vmem:[#allocation8 + $0xfe8] sm:$0xff]
    %v1870 = vld [vmem:[#allocation8 + $0xff0] sm:$0xff]
    %v1871 = vld [vmem:[#allocation8 + $0xff8] sm:$0xff]
    %v1872 = vld [vmem:[#allocation10] sm:$0xf]
    %v1874 = vlaneseq
    %v1875 = vshrl.u32 %v1874, 7
    %v1876 = vsub.s32 0, %v1875
    %v1877 = vrot.slane %v1872, %v1876
    %v1878 = vlaneseq
    %v1879 = vshrl.u32 %v1878, 7
    %v1880 = vsub.s32 1, %v1879
    %v1881 = vrot.slane %v1872, %v1880
    %v1882 = vlaneseq
    %v1883 = vshrl.u32 %v1882, 7
    %v1884 = vsub.s32 2, %v1883
    %v1885 = vrot.slane %v1872, %v1884
    %v1886 = vlaneseq
    %v1887 = vshrl.u32 %v1886, 7
    %v1888 = vsub.s32 3, %v1887
    %v1889 = vrot.slane %v1872, %v1888
    %v2406 = vunpack.c.l.b16 %v1360
    %v2407 = vunpack.c.h.b16 %v1360
    %v2408 = vunpack.c.l.b16 %v1361
    %v2409 = vunpack.c.h.b16 %v1361
    %v2410 = vunpack.c.l.b16 %v1362
    %v2411 = vunpack.c.h.b16 %v1362
    %v2412 = vunpack.c.l.b16 %v1363
    %v2413 = vunpack.c.h.b16 %v1363
    %v2414 = vunpack.c.l.b16 %v1364
    %v2415 = vunpack.c.h.b16 %v1364
    %v2416 = vunpack.c.l.b16 %v1365
    %v2417 = vunpack.c.h.b16 %v1365
    %v2418 = vunpack.c.l.b16 %v1366
    %v2419 = vunpack.c.h.b16 %v1366
    %v2420 = vunpack.c.l.b16 %v1367
    %v2421 = vunpack.c.h.b16 %v1367
    %v2422 = vunpack.c.l.b16 %v1368
    %v2423 = vunpack.c.h.b16 %v1368
    %v2424 = vunpack.c.l.b16 %v1369
    %v2425 = vunpack.c.h.b16 %v1369
    %v2426 = vunpack.c.l.b16 %v1370
    %v2427 = vunpack.c.h.b16 %v1370
    %v2428 = vunpack.c.l.b16 %v1371
    %v2429 = vunpack.c.h.b16 %v1371
    %v2430 = vunpack.c.l.b16 %v1372
    %v2431 = vunpack.c.h.b16 %v1372
    %v2432 = vunpack.c.l.b16 %v1373
    %v2433 = vunpack.c.h.b16 %v1373
    %v2434 = vunpack.c.l.b16 %v1374
    %v2435 = vunpack.c.h.b16 %v1374
    %v2436 = vunpack.c.l.b16 %v1375
    %v2437 = vunpack.c.h.b16 %v1375
    %v2438 = vunpack.c.l.b16 %v1376
    %v2439 = vunpack.c.h.b16 %v1376
    %v2440 = vunpack.c.l.b16 %v1377
    %v2441 = vunpack.c.h.b16 %v1377
    %v2442 = vunpack.c.l.b16 %v1378
    %v2443 = vunpack.c.h.b16 %v1378
    %v2444 = vunpack.c.l.b16 %v1379
    %v2445 = vunpack.c.h.b16 %v1379
    %v2446 = vunpack.c.l.b16 %v1380
    %v2447 = vunpack.c.h.b16 %v1380
    %v2448 = vunpack.c.l.b16 %v1381
    %v2449 = vunpack.c.h.b16 %v1381
    %v2450 = vunpack.c.l.b16 %v1382
    %v2451 = vunpack.c.h.b16 %v1382
    %v2452 = vunpack.c.l.b16 %v1383
    %v2453 = vunpack.c.h.b16 %v1383
    %v2454 = vunpack.c.l.b16 %v1384
    %v2455 = vunpack.c.h.b16 %v1384
    %v2456 = vunpack.c.l.b16 %v1385
    %v2457 = vunpack.c.h.b16 %v1385
    %v2458 = vunpack.c.l.b16 %v1386
    %v2459 = vunpack.c.h.b16 %v1386
    %v2460 = vunpack.c.l.b16 %v1387
    %v2461 = vunpack.c.h.b16 %v1387
    %v2462 = vunpack.c.l.b16 %v1388
    %v2463 = vunpack.c.h.b16 %v1388
    %v2464 = vunpack.c.l.b16 %v1389
    %v2465 = vunpack.c.h.b16 %v1389
    %v2466 = vunpack.c.l.b16 %v1390
    %v2467 = vunpack.c.h.b16 %v1390
    %v2468 = vunpack.c.l.b16 %v1391
    %v2469 = vunpack.c.h.b16 %v1391
    %v2470 = vunpack.c.l.b16 %v1392
    %v2471 = vunpack.c.h.b16 %v1392
    %v2472 = vunpack.c.l.b16 %v1393
    %v2473 = vunpack.c.h.b16 %v1393
    %v2474 = vunpack.c.l.b16 %v1394
    %v2475 = vunpack.c.h.b16 %v1394
    %v2476 = vunpack.c.l.b16 %v1395
    %v2477 = vunpack.c.h.b16 %v1395
    %v2478 = vunpack.c.l.b16 %v1396
    %v2479 = vunpack.c.h.b16 %v1396
    %v2480 = vunpack.c.l.b16 %v1397
    %v2481 = vunpack.c.h.b16 %v1397
    %v2482 = vunpack.c.l.b16 %v1398
    %v2483 = vunpack.c.h.b16 %v1398
    %v2484 = vunpack.c.l.b16 %v1399
    %v2485 = vunpack.c.h.b16 %v1399
    %v2486 = vunpack.c.l.b16 %v1400
    %v2487 = vunpack.c.h.b16 %v1400
    %v2488 = vunpack.c.l.b16 %v1401
    %v2489 = vunpack.c.h.b16 %v1401
    %v2490 = vunpack.c.l.b16 %v1402
    %v2491 = vunpack.c.h.b16 %v1402
    %v2492 = vunpack.c.l.b16 %v1403
    %v2493 = vunpack.c.h.b16 %v1403
    %v2494 = vunpack.c.l.b16 %v1404
    %v2495 = vunpack.c.h.b16 %v1404
    %v2496 = vunpack.c.l.b16 %v1405
    %v2497 = vunpack.c.h.b16 %v1405
    %v2498 = vunpack.c.l.b16 %v1406
    %v2499 = vunpack.c.h.b16 %v1406
    %v2500 = vunpack.c.l.b16 %v1407
    %v2501 = vunpack.c.h.b16 %v1407
    %v2502 = vunpack.c.l.b16 %v1408
    %v2503 = vunpack.c.h.b16 %v1408
    %v2504 = vunpack.c.l.b16 %v1409
    %v2505 = vunpack.c.h.b16 %v1409
    %v2506 = vunpack.c.l.b16 %v1410
    %v2507 = vunpack.c.h.b16 %v1410
    %v2508 = vunpack.c.l.b16 %v1411
    %v2509 = vunpack.c.h.b16 %v1411
    %v2510 = vunpack.c.l.b16 %v1412
    %v2511 = vunpack.c.h.b16 %v1412
    %v2512 = vunpack.c.l.b16 %v1413
    %v2513 = vunpack.c.h.b16 %v1413
    %v2514 = vunpack.c.l.b16 %v1414
    %v2515 = vunpack.c.h.b16 %v1414
    %v2516 = vunpack.c.l.b16 %v1415
    %v2517 = vunpack.c.h.b16 %v1415
    %v2518 = vunpack.c.l.b16 %v1416
    %v2519 = vunpack.c.h.b16 %v1416
    %v2520 = vunpack.c.l.b16 %v1417
    %v2521 = vunpack.c.h.b16 %v1417
    %v2522 = vunpack.c.l.b16 %v1418
    %v2523 = vunpack.c.h.b16 %v1418
    %v2524 = vunpack.c.l.b16 %v1419
    %v2525 = vunpack.c.h.b16 %v1419
    %v2526 = vunpack.c.l.b16 %v1420
    %v2527 = vunpack.c.h.b16 %v1420
    %v2528 = vunpack.c.l.b16 %v1421
    %v2529 = vunpack.c.h.b16 %v1421
    %v2530 = vunpack.c.l.b16 %v1422
    %v2531 = vunpack.c.h.b16 %v1422
    %v2532 = vunpack.c.l.b16 %v1423
    %v2533 = vunpack.c.h.b16 %v1423
    %v2534 = vunpack.c.l.b16 %v1424
    %v2535 = vunpack.c.h.b16 %v1424
    %v2536 = vunpack.c.l.b16 %v1425
    %v2537 = vunpack.c.h.b16 %v1425
    %v2538 = vunpack.c.l.b16 %v1426
    %v2539 = vunpack.c.h.b16 %v1426
    %v2540 = vunpack.c.l.b16 %v1427
    %v2541 = vunpack.c.h.b16 %v1427
    %v2542 = vunpack.c.l.b16 %v1428
    %v2543 = vunpack.c.h.b16 %v1428
    %v2544 = vunpack.c.l.b16 %v1429
    %v2545 = vunpack.c.h.b16 %v1429
    %v2546 = vunpack.c.l.b16 %v1430
    %v2547 = vunpack.c.h.b16 %v1430
    %v2548 = vunpack.c.l.b16 %v1431
    %v2549 = vunpack.c.h.b16 %v1431
    %v2550 = vunpack.c.l.b16 %v1432
    %v2551 = vunpack.c.h.b16 %v1432
    %v2552 = vunpack.c.l.b16 %v1433
    %v2553 = vunpack.c.h.b16 %v1433
    %v2554 = vunpack.c.l.b16 %v1434
    %v2555 = vunpack.c.h.b16 %v1434
    %v2556 = vunpack.c.l.b16 %v1435
    %v2557 = vunpack.c.h.b16 %v1435
    %v2558 = vunpack.c.l.b16 %v1436
    %v2559 = vunpack.c.h.b16 %v1436
    %v2560 = vunpack.c.l.b16 %v1437
    %v2561 = vunpack.c.h.b16 %v1437
    %v2562 = vunpack.c.l.b16 %v1438
    %v2563 = vunpack.c.h.b16 %v1438
    %v2564 = vunpack.c.l.b16 %v1439
    %v2565 = vunpack.c.h.b16 %v1439
    %v2566 = vunpack.c.l.b16 %v1440
    %v2567 = vunpack.c.h.b16 %v1440
    %v2568 = vunpack.c.l.b16 %v1441
    %v2569 = vunpack.c.h.b16 %v1441
    %v2570 = vunpack.c.l.b16 %v1442
    %v2571 = vunpack.c.h.b16 %v1442
    %v2572 = vunpack.c.l.b16 %v1443
    %v2573 = vunpack.c.h.b16 %v1443
    %v2574 = vunpack.c.l.b16 %v1444
    %v2575 = vunpack.c.h.b16 %v1444
    %v2576 = vunpack.c.l.b16 %v1445
    %v2577 = vunpack.c.h.b16 %v1445
    %v2578 = vunpack.c.l.b16 %v1446
    %v2579 = vunpack.c.h.b16 %v1446
    %v2580 = vunpack.c.l.b16 %v1447
    %v2581 = vunpack.c.h.b16 %v1447
    %v2582 = vunpack.c.l.b16 %v1448
    %v2583 = vunpack.c.h.b16 %v1448
    %v2584 = vunpack.c.l.b16 %v1449
    %v2585 = vunpack.c.h.b16 %v1449
    %v2586 = vunpack.c.l.b16 %v1450
    %v2587 = vunpack.c.h.b16 %v1450
    %v2588 = vunpack.c.l.b16 %v1451
    %v2589 = vunpack.c.h.b16 %v1451
    %v2590 = vunpack.c.l.b16 %v1452
    %v2591 = vunpack.c.h.b16 %v1452
    %v2592 = vunpack.c.l.b16 %v1453
    %v2593 = vunpack.c.h.b16 %v1453
    %v2594 = vunpack.c.l.b16 %v1454
    %v2595 = vunpack.c.h.b16 %v1454
    %v2596 = vunpack.c.l.b16 %v1455
    %v2597 = vunpack.c.h.b16 %v1455
    %v2598 = vunpack.c.l.b16 %v1456
    %v2599 = vunpack.c.h.b16 %v1456
    %v2600 = vunpack.c.l.b16 %v1457
    %v2601 = vunpack.c.h.b16 %v1457
    %v2602 = vunpack.c.l.b16 %v1458
    %v2603 = vunpack.c.h.b16 %v1458
    %v2604 = vunpack.c.l.b16 %v1459
    %v2605 = vunpack.c.h.b16 %v1459
    %v2606 = vunpack.c.l.b16 %v1460
    %v2607 = vunpack.c.h.b16 %v1460
    %v2608 = vunpack.c.l.b16 %v1461
    %v2609 = vunpack.c.h.b16 %v1461
    %v2610 = vunpack.c.l.b16 %v1462
    %v2611 = vunpack.c.h.b16 %v1462
    %v2612 = vunpack.c.l.b16 %v1463
    %v2613 = vunpack.c.h.b16 %v1463
    %v2614 = vunpack.c.l.b16 %v1464
    %v2615 = vunpack.c.h.b16 %v1464
    %v2616 = vunpack.c.l.b16 %v1465
    %v2617 = vunpack.c.h.b16 %v1465
    %v2618 = vunpack.c.l.b16 %v1466
    %v2619 = vunpack.c.h.b16 %v1466
    %v2620 = vunpack.c.l.b16 %v1467
    %v2621 = vunpack.c.h.b16 %v1467
    %v2622 = vunpack.c.l.b16 %v1468
    %v2623 = vunpack.c.h.b16 %v1468
    %v2624 = vunpack.c.l.b16 %v1469
    %v2625 = vunpack.c.h.b16 %v1469
    %v2626 = vunpack.c.l.b16 %v1470
    %v2627 = vunpack.c.h.b16 %v1470
    %v2628 = vunpack.c.l.b16 %v1471
    %v2629 = vunpack.c.h.b16 %v1471
    %v2630 = vunpack.c.l.b16 %v1472
    %v2631 = vunpack.c.h.b16 %v1472
    %v2632 = vunpack.c.l.b16 %v1473
    %v2633 = vunpack.c.h.b16 %v1473
    %v2634 = vunpack.c.l.b16 %v1474
    %v2635 = vunpack.c.h.b16 %v1474
    %v2636 = vunpack.c.l.b16 %v1475
    %v2637 = vunpack.c.h.b16 %v1475
    %v2638 = vunpack.c.l.b16 %v1476
    %v2639 = vunpack.c.h.b16 %v1476
    %v2640 = vunpack.c.l.b16 %v1477
    %v2641 = vunpack.c.h.b16 %v1477
    %v2642 = vunpack.c.l.b16 %v1478
    %v2643 = vunpack.c.h.b16 %v1478
    %v2644 = vunpack.c.l.b16 %v1479
    %v2645 = vunpack.c.h.b16 %v1479
    %v2646 = vunpack.c.l.b16 %v1480
    %v2647 = vunpack.c.h.b16 %v1480
    %v2648 = vunpack.c.l.b16 %v1481
    %v2649 = vunpack.c.h.b16 %v1481
    %v2650 = vunpack.c.l.b16 %v1482
    %v2651 = vunpack.c.h.b16 %v1482
    %v2652 = vunpack.c.l.b16 %v1483
    %v2653 = vunpack.c.h.b16 %v1483
    %v2654 = vunpack.c.l.b16 %v1484
    %v2655 = vunpack.c.h.b16 %v1484
    %v2656 = vunpack.c.l.b16 %v1485
    %v2657 = vunpack.c.h.b16 %v1485
    %v2658 = vunpack.c.l.b16 %v1486
    %v2659 = vunpack.c.h.b16 %v1486
    %v2660 = vunpack.c.l.b16 %v1487
    %v2661 = vunpack.c.h.b16 %v1487
    %v2662 = vunpack.c.l.b16 %v1488
    %v2663 = vunpack.c.h.b16 %v1488
    %v2664 = vunpack.c.l.b16 %v1489
    %v2665 = vunpack.c.h.b16 %v1489
    %v2666 = vunpack.c.l.b16 %v1490
    %v2667 = vunpack.c.h.b16 %v1490
    %v2668 = vunpack.c.l.b16 %v1491
    %v2669 = vunpack.c.h.b16 %v1491
    %v2670 = vunpack.c.l.b16 %v1492
    %v2671 = vunpack.c.h.b16 %v1492
    %v2672 = vunpack.c.l.b16 %v1493
    %v2673 = vunpack.c.h.b16 %v1493
    %v2674 = vunpack.c.l.b16 %v1494
    %v2675 = vunpack.c.h.b16 %v1494
    %v2676 = vunpack.c.l.b16 %v1495
    %v2677 = vunpack.c.h.b16 %v1495
    %v2678 = vunpack.c.l.b16 %v1496
    %v2679 = vunpack.c.h.b16 %v1496
    %v2680 = vunpack.c.l.b16 %v1497
    %v2681 = vunpack.c.h.b16 %v1497
    %v2682 = vunpack.c.l.b16 %v1498
    %v2683 = vunpack.c.h.b16 %v1498
    %v2684 = vunpack.c.l.b16 %v1499
    %v2685 = vunpack.c.h.b16 %v1499
    %v2686 = vunpack.c.l.b16 %v1500
    %v2687 = vunpack.c.h.b16 %v1500
    %v2688 = vunpack.c.l.b16 %v1501
    %v2689 = vunpack.c.h.b16 %v1501
    %v2690 = vunpack.c.l.b16 %v1502
    %v2691 = vunpack.c.h.b16 %v1502
    %v2692 = vunpack.c.l.b16 %v1503
    %v2693 = vunpack.c.h.b16 %v1503
    %v2694 = vunpack.c.l.b16 %v1504
    %v2695 = vunpack.c.h.b16 %v1504
    %v2696 = vunpack.c.l.b16 %v1505
    %v2697 = vunpack.c.h.b16 %v1505
    %v2698 = vunpack.c.l.b16 %v1506
    %v2699 = vunpack.c.h.b16 %v1506
    %v2700 = vunpack.c.l.b16 %v1507
    %v2701 = vunpack.c.h.b16 %v1507
    %v2702 = vunpack.c.l.b16 %v1508
    %v2703 = vunpack.c.h.b16 %v1508
    %v2704 = vunpack.c.l.b16 %v1509
    %v2705 = vunpack.c.h.b16 %v1509
    %v2706 = vunpack.c.l.b16 %v1510
    %v2707 = vunpack.c.h.b16 %v1510
    %v2708 = vunpack.c.l.b16 %v1511
    %v2709 = vunpack.c.h.b16 %v1511
    %v2710 = vunpack.c.l.b16 %v1512
    %v2711 = vunpack.c.h.b16 %v1512
    %v2712 = vunpack.c.l.b16 %v1513
    %v2713 = vunpack.c.h.b16 %v1513
    %v2714 = vunpack.c.l.b16 %v1514
    %v2715 = vunpack.c.h.b16 %v1514
    %v2716 = vunpack.c.l.b16 %v1515
    %v2717 = vunpack.c.h.b16 %v1515
    %v2718 = vunpack.c.l.b16 %v1516
    %v2719 = vunpack.c.h.b16 %v1516
    %v2720 = vunpack.c.l.b16 %v1517
    %v2721 = vunpack.c.h.b16 %v1517
    %v2722 = vunpack.c.l.b16 %v1518
    %v2723 = vunpack.c.h.b16 %v1518
    %v2724 = vunpack.c.l.b16 %v1519
    %v2725 = vunpack.c.h.b16 %v1519
    %v2726 = vunpack.c.l.b16 %v1520
    %v2727 = vunpack.c.h.b16 %v1520
    %v2728 = vunpack.c.l.b16 %v1521
    %v2729 = vunpack.c.h.b16 %v1521
    %v2730 = vunpack.c.l.b16 %v1522
    %v2731 = vunpack.c.h.b16 %v1522
    %v2732 = vunpack.c.l.b16 %v1523
    %v2733 = vunpack.c.h.b16 %v1523
    %v2734 = vunpack.c.l.b16 %v1524
    %v2735 = vunpack.c.h.b16 %v1524
    %v2736 = vunpack.c.l.b16 %v1525
    %v2737 = vunpack.c.h.b16 %v1525
    %v2738 = vunpack.c.l.b16 %v1526
    %v2739 = vunpack.c.h.b16 %v1526
    %v2740 = vunpack.c.l.b16 %v1527
    %v2741 = vunpack.c.h.b16 %v1527
    %v2742 = vunpack.c.l.b16 %v1528
    %v2743 = vunpack.c.h.b16 %v1528
    %v2744 = vunpack.c.l.b16 %v1529
    %v2745 = vunpack.c.h.b16 %v1529
    %v2746 = vunpack.c.l.b16 %v1530
    %v2747 = vunpack.c.h.b16 %v1530
    %v2748 = vunpack.c.l.b16 %v1531
    %v2749 = vunpack.c.h.b16 %v1531
    %v2750 = vunpack.c.l.b16 %v1532
    %v2751 = vunpack.c.h.b16 %v1532
    %v2752 = vunpack.c.l.b16 %v1533
    %v2753 = vunpack.c.h.b16 %v1533
    %v2754 = vunpack.c.l.b16 %v1534
    %v2755 = vunpack.c.h.b16 %v1534
    %v2756 = vunpack.c.l.b16 %v1535
    %v2757 = vunpack.c.h.b16 %v1535
    %v2758 = vunpack.c.l.b16 %v1536
    %v2759 = vunpack.c.h.b16 %v1536
    %v2760 = vunpack.c.l.b16 %v1537
    %v2761 = vunpack.c.h.b16 %v1537
    %v2762 = vunpack.c.l.b16 %v1538
    %v2763 = vunpack.c.h.b16 %v1538
    %v2764 = vunpack.c.l.b16 %v1539
    %v2765 = vunpack.c.h.b16 %v1539
    %v2766 = vunpack.c.l.b16 %v1540
    %v2767 = vunpack.c.h.b16 %v1540
    %v2768 = vunpack.c.l.b16 %v1541
    %v2769 = vunpack.c.h.b16 %v1541
    %v2770 = vunpack.c.l.b16 %v1542
    %v2771 = vunpack.c.h.b16 %v1542
    %v2772 = vunpack.c.l.b16 %v1543
    %v2773 = vunpack.c.h.b16 %v1543
    %v2774 = vunpack.c.l.b16 %v1544
    %v2775 = vunpack.c.h.b16 %v1544
    %v2776 = vunpack.c.l.b16 %v1545
    %v2777 = vunpack.c.h.b16 %v1545
    %v2778 = vunpack.c.l.b16 %v1546
    %v2779 = vunpack.c.h.b16 %v1546
    %v2780 = vunpack.c.l.b16 %v1547
    %v2781 = vunpack.c.h.b16 %v1547
    %v2782 = vunpack.c.l.b16 %v1548
    %v2783 = vunpack.c.h.b16 %v1548
    %v2784 = vunpack.c.l.b16 %v1549
    %v2785 = vunpack.c.h.b16 %v1549
    %v2786 = vunpack.c.l.b16 %v1550
    %v2787 = vunpack.c.h.b16 %v1550
    %v2788 = vunpack.c.l.b16 %v1551
    %v2789 = vunpack.c.h.b16 %v1551
    %v2790 = vunpack.c.l.b16 %v1552
    %v2791 = vunpack.c.h.b16 %v1552
    %v2792 = vunpack.c.l.b16 %v1553
    %v2793 = vunpack.c.h.b16 %v1553
    %v2794 = vunpack.c.l.b16 %v1554
    %v2795 = vunpack.c.h.b16 %v1554
    %v2796 = vunpack.c.l.b16 %v1555
    %v2797 = vunpack.c.h.b16 %v1555
    %v2798 = vunpack.c.l.b16 %v1556
    %v2799 = vunpack.c.h.b16 %v1556
    %v2800 = vunpack.c.l.b16 %v1557
    %v2801 = vunpack.c.h.b16 %v1557
    %v2802 = vunpack.c.l.b16 %v1558
    %v2803 = vunpack.c.h.b16 %v1558
    %v2804 = vunpack.c.l.b16 %v1559
    %v2805 = vunpack.c.h.b16 %v1559
    %v2806 = vunpack.c.l.b16 %v1560
    %v2807 = vunpack.c.h.b16 %v1560
    %v2808 = vunpack.c.l.b16 %v1561
    %v2809 = vunpack.c.h.b16 %v1561
    %v2810 = vunpack.c.l.b16 %v1562
    %v2811 = vunpack.c.h.b16 %v1562
    %v2812 = vunpack.c.l.b16 %v1563
    %v2813 = vunpack.c.h.b16 %v1563
    %v2814 = vunpack.c.l.b16 %v1564
    %v2815 = vunpack.c.h.b16 %v1564
    %v2816 = vunpack.c.l.b16 %v1565
    %v2817 = vunpack.c.h.b16 %v1565
    %v2818 = vunpack.c.l.b16 %v1566
    %v2819 = vunpack.c.h.b16 %v1566
    %v2820 = vunpack.c.l.b16 %v1567
    %v2821 = vunpack.c.h.b16 %v1567
    %v2822 = vunpack.c.l.b16 %v1568
    %v2823 = vunpack.c.h.b16 %v1568
    %v2824 = vunpack.c.l.b16 %v1569
    %v2825 = vunpack.c.h.b16 %v1569
    %v2826 = vunpack.c.l.b16 %v1570
    %v2827 = vunpack.c.h.b16 %v1570
    %v2828 = vunpack.c.l.b16 %v1571
    %v2829 = vunpack.c.h.b16 %v1571
    %v2830 = vunpack.c.l.b16 %v1572
    %v2831 = vunpack.c.h.b16 %v1572
    %v2832 = vunpack.c.l.b16 %v1573
    %v2833 = vunpack.c.h.b16 %v1573
    %v2834 = vunpack.c.l.b16 %v1574
    %v2835 = vunpack.c.h.b16 %v1574
    %v2836 = vunpack.c.l.b16 %v1575
    %v2837 = vunpack.c.h.b16 %v1575
    %v2838 = vunpack.c.l.b16 %v1576
    %v2839 = vunpack.c.h.b16 %v1576
    %v2840 = vunpack.c.l.b16 %v1577
    %v2841 = vunpack.c.h.b16 %v1577
    %v2842 = vunpack.c.l.b16 %v1578
    %v2843 = vunpack.c.h.b16 %v1578
    %v2844 = vunpack.c.l.b16 %v1579
    %v2845 = vunpack.c.h.b16 %v1579
    %v2846 = vunpack.c.l.b16 %v1580
    %v2847 = vunpack.c.h.b16 %v1580
    %v2848 = vunpack.c.l.b16 %v1581
    %v2849 = vunpack.c.h.b16 %v1581
    %v2850 = vunpack.c.l.b16 %v1582
    %v2851 = vunpack.c.h.b16 %v1582
    %v2852 = vunpack.c.l.b16 %v1583
    %v2853 = vunpack.c.h.b16 %v1583
    %v2854 = vunpack.c.l.b16 %v1584
    %v2855 = vunpack.c.h.b16 %v1584
    %v2856 = vunpack.c.l.b16 %v1585
    %v2857 = vunpack.c.h.b16 %v1585
    %v2858 = vunpack.c.l.b16 %v1586
    %v2859 = vunpack.c.h.b16 %v1586
    %v2860 = vunpack.c.l.b16 %v1587
    %v2861 = vunpack.c.h.b16 %v1587
    %v2862 = vunpack.c.l.b16 %v1588
    %v2863 = vunpack.c.h.b16 %v1588
    %v2864 = vunpack.c.l.b16 %v1589
    %v2865 = vunpack.c.h.b16 %v1589
    %v2866 = vunpack.c.l.b16 %v1590
    %v2867 = vunpack.c.h.b16 %v1590
    %v2868 = vunpack.c.l.b16 %v1591
    %v2869 = vunpack.c.h.b16 %v1591
    %v2870 = vunpack.c.l.b16 %v1592
    %v2871 = vunpack.c.h.b16 %v1592
    %v2872 = vunpack.c.l.b16 %v1593
    %v2873 = vunpack.c.h.b16 %v1593
    %v2874 = vunpack.c.l.b16 %v1594
    %v2875 = vunpack.c.h.b16 %v1594
    %v2876 = vunpack.c.l.b16 %v1595
    %v2877 = vunpack.c.h.b16 %v1595
    %v2878 = vunpack.c.l.b16 %v1596
    %v2879 = vunpack.c.h.b16 %v1596
    %v2880 = vunpack.c.l.b16 %v1597
    %v2881 = vunpack.c.h.b16 %v1597
    %v2882 = vunpack.c.l.b16 %v1598
    %v2883 = vunpack.c.h.b16 %v1598
    %v2884 = vunpack.c.l.b16 %v1599
    %v2885 = vunpack.c.h.b16 %v1599
    %v2886 = vunpack.c.l.b16 %v1600
    %v2887 = vunpack.c.h.b16 %v1600
    %v2888 = vunpack.c.l.b16 %v1601
    %v2889 = vunpack.c.h.b16 %v1601
    %v2890 = vunpack.c.l.b16 %v1602
    %v2891 = vunpack.c.h.b16 %v1602
    %v2892 = vunpack.c.l.b16 %v1603
    %v2893 = vunpack.c.h.b16 %v1603
    %v2894 = vunpack.c.l.b16 %v1604
    %v2895 = vunpack.c.h.b16 %v1604
    %v2896 = vunpack.c.l.b16 %v1605
    %v2897 = vunpack.c.h.b16 %v1605
    %v2898 = vunpack.c.l.b16 %v1606
    %v2899 = vunpack.c.h.b16 %v1606
    %v2900 = vunpack.c.l.b16 %v1607
    %v2901 = vunpack.c.h.b16 %v1607
    %v2902 = vunpack.c.l.b16 %v1608
    %v2903 = vunpack.c.h.b16 %v1608
    %v2904 = vunpack.c.l.b16 %v1609
    %v2905 = vunpack.c.h.b16 %v1609
    %v2906 = vunpack.c.l.b16 %v1610
    %v2907 = vunpack.c.h.b16 %v1610
    %v2908 = vunpack.c.l.b16 %v1611
    %v2909 = vunpack.c.h.b16 %v1611
    %v2910 = vunpack.c.l.b16 %v1612
    %v2911 = vunpack.c.h.b16 %v1612
    %v2912 = vunpack.c.l.b16 %v1613
    %v2913 = vunpack.c.h.b16 %v1613
    %v2914 = vunpack.c.l.b16 %v1614
    %v2915 = vunpack.c.h.b16 %v1614
    %v2916 = vunpack.c.l.b16 %v1615
    %v2917 = vunpack.c.h.b16 %v1615
    %v2918 = vunpack.c.l.b16 %v1616
    %v2919 = vunpack.c.h.b16 %v1616
    %v2920 = vunpack.c.l.b16 %v1617
    %v2921 = vunpack.c.h.b16 %v1617
    %v2922 = vunpack.c.l.b16 %v1618
    %v2923 = vunpack.c.h.b16 %v1618
    %v2924 = vunpack.c.l.b16 %v1619
    %v2925 = vunpack.c.h.b16 %v1619
    %v2926 = vunpack.c.l.b16 %v1620
    %v2927 = vunpack.c.h.b16 %v1620
    %v2928 = vunpack.c.l.b16 %v1621
    %v2929 = vunpack.c.h.b16 %v1621
    %v2930 = vunpack.c.l.b16 %v1622
    %v2931 = vunpack.c.h.b16 %v1622
    %v2932 = vunpack.c.l.b16 %v1623
    %v2933 = vunpack.c.h.b16 %v1623
    %v2934 = vunpack.c.l.b16 %v1624
    %v2935 = vunpack.c.h.b16 %v1624
    %v2936 = vunpack.c.l.b16 %v1625
    %v2937 = vunpack.c.h.b16 %v1625
    %v2938 = vunpack.c.l.b16 %v1626
    %v2939 = vunpack.c.h.b16 %v1626
    %v2940 = vunpack.c.l.b16 %v1627
    %v2941 = vunpack.c.h.b16 %v1627
    %v2942 = vunpack.c.l.b16 %v1628
    %v2943 = vunpack.c.h.b16 %v1628
    %v2944 = vunpack.c.l.b16 %v1629
    %v2945 = vunpack.c.h.b16 %v1629
    %v2946 = vunpack.c.l.b16 %v1630
    %v2947 = vunpack.c.h.b16 %v1630
    %v2948 = vunpack.c.l.b16 %v1631
    %v2949 = vunpack.c.h.b16 %v1631
    %v2950 = vunpack.c.l.b16 %v1632
    %v2951 = vunpack.c.h.b16 %v1632
    %v2952 = vunpack.c.l.b16 %v1633
    %v2953 = vunpack.c.h.b16 %v1633
    %v2954 = vunpack.c.l.b16 %v1634
    %v2955 = vunpack.c.h.b16 %v1634
    %v2956 = vunpack.c.l.b16 %v1635
    %v2957 = vunpack.c.h.b16 %v1635
    %v2958 = vunpack.c.l.b16 %v1636
    %v2959 = vunpack.c.h.b16 %v1636
    %v2960 = vunpack.c.l.b16 %v1637
    %v2961 = vunpack.c.h.b16 %v1637
    %v2962 = vunpack.c.l.b16 %v1638
    %v2963 = vunpack.c.h.b16 %v1638
    %v2964 = vunpack.c.l.b16 %v1639
    %v2965 = vunpack.c.h.b16 %v1639
    %v2966 = vunpack.c.l.b16 %v1640
    %v2967 = vunpack.c.h.b16 %v1640
    %v2968 = vunpack.c.l.b16 %v1641
    %v2969 = vunpack.c.h.b16 %v1641
    %v2970 = vunpack.c.l.b16 %v1642
    %v2971 = vunpack.c.h.b16 %v1642
    %v2972 = vunpack.c.l.b16 %v1643
    %v2973 = vunpack.c.h.b16 %v1643
    %v2974 = vunpack.c.l.b16 %v1644
    %v2975 = vunpack.c.h.b16 %v1644
    %v2976 = vunpack.c.l.b16 %v1645
    %v2977 = vunpack.c.h.b16 %v1645
    %v2978 = vunpack.c.l.b16 %v1646
    %v2979 = vunpack.c.h.b16 %v1646
    %v2980 = vunpack.c.l.b16 %v1647
    %v2981 = vunpack.c.h.b16 %v1647
    %v2982 = vunpack.c.l.b16 %v1648
    %v2983 = vunpack.c.h.b16 %v1648
    %v2984 = vunpack.c.l.b16 %v1649
    %v2985 = vunpack.c.h.b16 %v1649
    %v2986 = vunpack.c.l.b16 %v1650
    %v2987 = vunpack.c.h.b16 %v1650
    %v2988 = vunpack.c.l.b16 %v1651
    %v2989 = vunpack.c.h.b16 %v1651
    %v2990 = vunpack.c.l.b16 %v1652
    %v2991 = vunpack.c.h.b16 %v1652
    %v2992 = vunpack.c.l.b16 %v1653
    %v2993 = vunpack.c.h.b16 %v1653
    %v2994 = vunpack.c.l.b16 %v1654
    %v2995 = vunpack.c.h.b16 %v1654
    %v2996 = vunpack.c.l.b16 %v1655
    %v2997 = vunpack.c.h.b16 %v1655
    %v2998 = vunpack.c.l.b16 %v1656
    %v2999 = vunpack.c.h.b16 %v1656
    %v3000 = vunpack.c.l.b16 %v1657
    %v3001 = vunpack.c.h.b16 %v1657
    %v3002 = vunpack.c.l.b16 %v1658
    %v3003 = vunpack.c.h.b16 %v1658
    %v3004 = vunpack.c.l.b16 %v1659
    %v3005 = vunpack.c.h.b16 %v1659
    %v3006 = vunpack.c.l.b16 %v1660
    %v3007 = vunpack.c.h.b16 %v1660
    %v3008 = vunpack.c.l.b16 %v1661
    %v3009 = vunpack.c.h.b16 %v1661
    %v3010 = vunpack.c.l.b16 %v1662
    %v3011 = vunpack.c.h.b16 %v1662
    %v3012 = vunpack.c.l.b16 %v1663
    %v3013 = vunpack.c.h.b16 %v1663
    %v3014 = vunpack.c.l.b16 %v1664
    %v3015 = vunpack.c.h.b16 %v1664
    %v3016 = vunpack.c.l.b16 %v1665
    %v3017 = vunpack.c.h.b16 %v1665
    %v3018 = vunpack.c.l.b16 %v1666
    %v3019 = vunpack.c.h.b16 %v1666
    %v3020 = vunpack.c.l.b16 %v1667
    %v3021 = vunpack.c.h.b16 %v1667
    %v3022 = vunpack.c.l.b16 %v1668
    %v3023 = vunpack.c.h.b16 %v1668
    %v3024 = vunpack.c.l.b16 %v1669
    %v3025 = vunpack.c.h.b16 %v1669
    %v3026 = vunpack.c.l.b16 %v1670
    %v3027 = vunpack.c.h.b16 %v1670
    %v3028 = vunpack.c.l.b16 %v1671
    %v3029 = vunpack.c.h.b16 %v1671
    %v3030 = vunpack.c.l.b16 %v1672
    %v3031 = vunpack.c.h.b16 %v1672
    %v3032 = vunpack.c.l.b16 %v1673
    %v3033 = vunpack.c.h.b16 %v1673
    %v3034 = vunpack.c.l.b16 %v1674
    %v3035 = vunpack.c.h.b16 %v1674
    %v3036 = vunpack.c.l.b16 %v1675
    %v3037 = vunpack.c.h.b16 %v1675
    %v3038 = vunpack.c.l.b16 %v1676
    %v3039 = vunpack.c.h.b16 %v1676
    %v3040 = vunpack.c.l.b16 %v1677
    %v3041 = vunpack.c.h.b16 %v1677
    %v3042 = vunpack.c.l.b16 %v1678
    %v3043 = vunpack.c.h.b16 %v1678
    %v3044 = vunpack.c.l.b16 %v1679
    %v3045 = vunpack.c.h.b16 %v1679
    %v3046 = vunpack.c.l.b16 %v1680
    %v3047 = vunpack.c.h.b16 %v1680
    %v3048 = vunpack.c.l.b16 %v1681
    %v3049 = vunpack.c.h.b16 %v1681
    %v3050 = vunpack.c.l.b16 %v1682
    %v3051 = vunpack.c.h.b16 %v1682
    %v3052 = vunpack.c.l.b16 %v1683
    %v3053 = vunpack.c.h.b16 %v1683
    %v3054 = vunpack.c.l.b16 %v1684
    %v3055 = vunpack.c.h.b16 %v1684
    %v3056 = vunpack.c.l.b16 %v1685
    %v3057 = vunpack.c.h.b16 %v1685
    %v3058 = vunpack.c.l.b16 %v1686
    %v3059 = vunpack.c.h.b16 %v1686
    %v3060 = vunpack.c.l.b16 %v1687
    %v3061 = vunpack.c.h.b16 %v1687
    %v3062 = vunpack.c.l.b16 %v1688
    %v3063 = vunpack.c.h.b16 %v1688
    %v3064 = vunpack.c.l.b16 %v1689
    %v3065 = vunpack.c.h.b16 %v1689
    %v3066 = vunpack.c.l.b16 %v1690
    %v3067 = vunpack.c.h.b16 %v1690
    %v3068 = vunpack.c.l.b16 %v1691
    %v3069 = vunpack.c.h.b16 %v1691
    %v3070 = vunpack.c.l.b16 %v1692
    %v3071 = vunpack.c.h.b16 %v1692
    %v3072 = vunpack.c.l.b16 %v1693
    %v3073 = vunpack.c.h.b16 %v1693
    %v3074 = vunpack.c.l.b16 %v1694
    %v3075 = vunpack.c.h.b16 %v1694
    %v3076 = vunpack.c.l.b16 %v1695
    %v3077 = vunpack.c.h.b16 %v1695
    %v3078 = vunpack.c.l.b16 %v1696
    %v3079 = vunpack.c.h.b16 %v1696
    %v3080 = vunpack.c.l.b16 %v1697
    %v3081 = vunpack.c.h.b16 %v1697
    %v3082 = vunpack.c.l.b16 %v1698
    %v3083 = vunpack.c.h.b16 %v1698
    %v3084 = vunpack.c.l.b16 %v1699
    %v3085 = vunpack.c.h.b16 %v1699
    %v3086 = vunpack.c.l.b16 %v1700
    %v3087 = vunpack.c.h.b16 %v1700
    %v3088 = vunpack.c.l.b16 %v1701
    %v3089 = vunpack.c.h.b16 %v1701
    %v3090 = vunpack.c.l.b16 %v1702
    %v3091 = vunpack.c.h.b16 %v1702
    %v3092 = vunpack.c.l.b16 %v1703
    %v3093 = vunpack.c.h.b16 %v1703
    %v3094 = vunpack.c.l.b16 %v1704
    %v3095 = vunpack.c.h.b16 %v1704
    %v3096 = vunpack.c.l.b16 %v1705
    %v3097 = vunpack.c.h.b16 %v1705
    %v3098 = vunpack.c.l.b16 %v1706
    %v3099 = vunpack.c.h.b16 %v1706
    %v3100 = vunpack.c.l.b16 %v1707
    %v3101 = vunpack.c.h.b16 %v1707
    %v3102 = vunpack.c.l.b16 %v1708
    %v3103 = vunpack.c.h.b16 %v1708
    %v3104 = vunpack.c.l.b16 %v1709
    %v3105 = vunpack.c.h.b16 %v1709
    %v3106 = vunpack.c.l.b16 %v1710
    %v3107 = vunpack.c.h.b16 %v1710
    %v3108 = vunpack.c.l.b16 %v1711
    %v3109 = vunpack.c.h.b16 %v1711
    %v3110 = vunpack.c.l.b16 %v1712
    %v3111 = vunpack.c.h.b16 %v1712
    %v3112 = vunpack.c.l.b16 %v1713
    %v3113 = vunpack.c.h.b16 %v1713
    %v3114 = vunpack.c.l.b16 %v1714
    %v3115 = vunpack.c.h.b16 %v1714
    %v3116 = vunpack.c.l.b16 %v1715
    %v3117 = vunpack.c.h.b16 %v1715
    %v3118 = vunpack.c.l.b16 %v1716
    %v3119 = vunpack.c.h.b16 %v1716
    %v3120 = vunpack.c.l.b16 %v1717
    %v3121 = vunpack.c.h.b16 %v1717
    %v3122 = vunpack.c.l.b16 %v1718
    %v3123 = vunpack.c.h.b16 %v1718
    %v3124 = vunpack.c.l.b16 %v1719
    %v3125 = vunpack.c.h.b16 %v1719
    %v3126 = vunpack.c.l.b16 %v1720
    %v3127 = vunpack.c.h.b16 %v1720
    %v3128 = vunpack.c.l.b16 %v1721
    %v3129 = vunpack.c.h.b16 %v1721
    %v3130 = vunpack.c.l.b16 %v1722
    %v3131 = vunpack.c.h.b16 %v1722
    %v3132 = vunpack.c.l.b16 %v1723
    %v3133 = vunpack.c.h.b16 %v1723
    %v3134 = vunpack.c.l.b16 %v1724
    %v3135 = vunpack.c.h.b16 %v1724
    %v3136 = vunpack.c.l.b16 %v1725
    %v3137 = vunpack.c.h.b16 %v1725
    %v3138 = vunpack.c.l.b16 %v1726
    %v3139 = vunpack.c.h.b16 %v1726
    %v3140 = vunpack.c.l.b16 %v1727
    %v3141 = vunpack.c.h.b16 %v1727
    %v3142 = vunpack.c.l.b16 %v1728
    %v3143 = vunpack.c.h.b16 %v1728
    %v3144 = vunpack.c.l.b16 %v1729
    %v3145 = vunpack.c.h.b16 %v1729
    %v3146 = vunpack.c.l.b16 %v1730
    %v3147 = vunpack.c.h.b16 %v1730
    %v3148 = vunpack.c.l.b16 %v1731
    %v3149 = vunpack.c.h.b16 %v1731
    %v3150 = vunpack.c.l.b16 %v1732
    %v3151 = vunpack.c.h.b16 %v1732
    %v3152 = vunpack.c.l.b16 %v1733
    %v3153 = vunpack.c.h.b16 %v1733
    %v3154 = vunpack.c.l.b16 %v1734
    %v3155 = vunpack.c.h.b16 %v1734
    %v3156 = vunpack.c.l.b16 %v1735
    %v3157 = vunpack.c.h.b16 %v1735
    %v3158 = vunpack.c.l.b16 %v1736
    %v3159 = vunpack.c.h.b16 %v1736
    %v3160 = vunpack.c.l.b16 %v1737
    %v3161 = vunpack.c.h.b16 %v1737
    %v3162 = vunpack.c.l.b16 %v1738
    %v3163 = vunpack.c.h.b16 %v1738
    %v3164 = vunpack.c.l.b16 %v1739
    %v3165 = vunpack.c.h.b16 %v1739
    %v3166 = vunpack.c.l.b16 %v1740
    %v3167 = vunpack.c.h.b16 %v1740
    %v3168 = vunpack.c.l.b16 %v1741
    %v3169 = vunpack.c.h.b16 %v1741
    %v3170 = vunpack.c.l.b16 %v1742
    %v3171 = vunpack.c.h.b16 %v1742
    %v3172 = vunpack.c.l.b16 %v1743
    %v3173 = vunpack.c.h.b16 %v1743
    %v3174 = vunpack.c.l.b16 %v1744
    %v3175 = vunpack.c.h.b16 %v1744
    %v3176 = vunpack.c.l.b16 %v1745
    %v3177 = vunpack.c.h.b16 %v1745
    %v3178 = vunpack.c.l.b16 %v1746
    %v3179 = vunpack.c.h.b16 %v1746
    %v3180 = vunpack.c.l.b16 %v1747
    %v3181 = vunpack.c.h.b16 %v1747
    %v3182 = vunpack.c.l.b16 %v1748
    %v3183 = vunpack.c.h.b16 %v1748
    %v3184 = vunpack.c.l.b16 %v1749
    %v3185 = vunpack.c.h.b16 %v1749
    %v3186 = vunpack.c.l.b16 %v1750
    %v3187 = vunpack.c.h.b16 %v1750
    %v3188 = vunpack.c.l.b16 %v1751
    %v3189 = vunpack.c.h.b16 %v1751
    %v3190 = vunpack.c.l.b16 %v1752
    %v3191 = vunpack.c.h.b16 %v1752
    %v3192 = vunpack.c.l.b16 %v1753
    %v3193 = vunpack.c.h.b16 %v1753
    %v3194 = vunpack.c.l.b16 %v1754
    %v3195 = vunpack.c.h.b16 %v1754
    %v3196 = vunpack.c.l.b16 %v1755
    %v3197 = vunpack.c.h.b16 %v1755
    %v3198 = vunpack.c.l.b16 %v1756
    %v3199 = vunpack.c.h.b16 %v1756
    %v3200 = vunpack.c.l.b16 %v1757
    %v3201 = vunpack.c.h.b16 %v1757
    %v3202 = vunpack.c.l.b16 %v1758
    %v3203 = vunpack.c.h.b16 %v1758
    %v3204 = vunpack.c.l.b16 %v1759
    %v3205 = vunpack.c.h.b16 %v1759
    %v3206 = vunpack.c.l.b16 %v1760
    %v3207 = vunpack.c.h.b16 %v1760
    %v3208 = vunpack.c.l.b16 %v1761
    %v3209 = vunpack.c.h.b16 %v1761
    %v3210 = vunpack.c.l.b16 %v1762
    %v3211 = vunpack.c.h.b16 %v1762
    %v3212 = vunpack.c.l.b16 %v1763
    %v3213 = vunpack.c.h.b16 %v1763
    %v3214 = vunpack.c.l.b16 %v1764
    %v3215 = vunpack.c.h.b16 %v1764
    %v3216 = vunpack.c.l.b16 %v1765
    %v3217 = vunpack.c.h.b16 %v1765
    %v3218 = vunpack.c.l.b16 %v1766
    %v3219 = vunpack.c.h.b16 %v1766
    %v3220 = vunpack.c.l.b16 %v1767
    %v3221 = vunpack.c.h.b16 %v1767
    %v3222 = vunpack.c.l.b16 %v1768
    %v3223 = vunpack.c.h.b16 %v1768
    %v3224 = vunpack.c.l.b16 %v1769
    %v3225 = vunpack.c.h.b16 %v1769
    %v3226 = vunpack.c.l.b16 %v1770
    %v3227 = vunpack.c.h.b16 %v1770
    %v3228 = vunpack.c.l.b16 %v1771
    %v3229 = vunpack.c.h.b16 %v1771
    %v3230 = vunpack.c.l.b16 %v1772
    %v3231 = vunpack.c.h.b16 %v1772
    %v3232 = vunpack.c.l.b16 %v1773
    %v3233 = vunpack.c.h.b16 %v1773
    %v3234 = vunpack.c.l.b16 %v1774
    %v3235 = vunpack.c.h.b16 %v1774
    %v3236 = vunpack.c.l.b16 %v1775
    %v3237 = vunpack.c.h.b16 %v1775
    %v3238 = vunpack.c.l.b16 %v1776
    %v3239 = vunpack.c.h.b16 %v1776
    %v3240 = vunpack.c.l.b16 %v1777
    %v3241 = vunpack.c.h.b16 %v1777
    %v3242 = vunpack.c.l.b16 %v1778
    %v3243 = vunpack.c.h.b16 %v1778
    %v3244 = vunpack.c.l.b16 %v1779
    %v3245 = vunpack.c.h.b16 %v1779
    %v3246 = vunpack.c.l.b16 %v1780
    %v3247 = vunpack.c.h.b16 %v1780
    %v3248 = vunpack.c.l.b16 %v1781
    %v3249 = vunpack.c.h.b16 %v1781
    %v3250 = vunpack.c.l.b16 %v1782
    %v3251 = vunpack.c.h.b16 %v1782
    %v3252 = vunpack.c.l.b16 %v1783
    %v3253 = vunpack.c.h.b16 %v1783
    %v3254 = vunpack.c.l.b16 %v1784
    %v3255 = vunpack.c.h.b16 %v1784
    %v3256 = vunpack.c.l.b16 %v1785
    %v3257 = vunpack.c.h.b16 %v1785
    %v3258 = vunpack.c.l.b16 %v1786
    %v3259 = vunpack.c.h.b16 %v1786
    %v3260 = vunpack.c.l.b16 %v1787
    %v3261 = vunpack.c.h.b16 %v1787
    %v3262 = vunpack.c.l.b16 %v1788
    %v3263 = vunpack.c.h.b16 %v1788
    %v3264 = vunpack.c.l.b16 %v1789
    %v3265 = vunpack.c.h.b16 %v1789
    %v3266 = vunpack.c.l.b16 %v1790
    %v3267 = vunpack.c.h.b16 %v1790
    %v3268 = vunpack.c.l.b16 %v1791
    %v3269 = vunpack.c.h.b16 %v1791
    %v3270 = vunpack.c.l.b16 %v1792
    %v3271 = vunpack.c.h.b16 %v1792
    %v3272 = vunpack.c.l.b16 %v1793
    %v3273 = vunpack.c.h.b16 %v1793
    %v3274 = vunpack.c.l.b16 %v1794
    %v3275 = vunpack.c.h.b16 %v1794
    %v3276 = vunpack.c.l.b16 %v1795
    %v3277 = vunpack.c.h.b16 %v1795
    %v3278 = vunpack.c.l.b16 %v1796
    %v3279 = vunpack.c.h.b16 %v1796
    %v3280 = vunpack.c.l.b16 %v1797
    %v3281 = vunpack.c.h.b16 %v1797
    %v3282 = vunpack.c.l.b16 %v1798
    %v3283 = vunpack.c.h.b16 %v1798
    %v3284 = vunpack.c.l.b16 %v1799
    %v3285 = vunpack.c.h.b16 %v1799
    %v3286 = vunpack.c.l.b16 %v1800
    %v3287 = vunpack.c.h.b16 %v1800
    %v3288 = vunpack.c.l.b16 %v1801
    %v3289 = vunpack.c.h.b16 %v1801
    %v3290 = vunpack.c.l.b16 %v1802
    %v3291 = vunpack.c.h.b16 %v1802
    %v3292 = vunpack.c.l.b16 %v1803
    %v3293 = vunpack.c.h.b16 %v1803
    %v3294 = vunpack.c.l.b16 %v1804
    %v3295 = vunpack.c.h.b16 %v1804
    %v3296 = vunpack.c.l.b16 %v1805
    %v3297 = vunpack.c.h.b16 %v1805
    %v3298 = vunpack.c.l.b16 %v1806
    %v3299 = vunpack.c.h.b16 %v1806
    %v3300 = vunpack.c.l.b16 %v1807
    %v3301 = vunpack.c.h.b16 %v1807
    %v3302 = vunpack.c.l.b16 %v1808
    %v3303 = vunpack.c.h.b16 %v1808
    %v3304 = vunpack.c.l.b16 %v1809
    %v3305 = vunpack.c.h.b16 %v1809
    %v3306 = vunpack.c.l.b16 %v1810
    %v3307 = vunpack.c.h.b16 %v1810
    %v3308 = vunpack.c.l.b16 %v1811
    %v3309 = vunpack.c.h.b16 %v1811
    %v3310 = vunpack.c.l.b16 %v1812
    %v3311 = vunpack.c.h.b16 %v1812
    %v3312 = vunpack.c.l.b16 %v1813
    %v3313 = vunpack.c.h.b16 %v1813
    %v3314 = vunpack.c.l.b16 %v1814
    %v3315 = vunpack.c.h.b16 %v1814
    %v3316 = vunpack.c.l.b16 %v1815
    %v3317 = vunpack.c.h.b16 %v1815
    %v3318 = vunpack.c.l.b16 %v1816
    %v3319 = vunpack.c.h.b16 %v1816
    %v3320 = vunpack.c.l.b16 %v1817
    %v3321 = vunpack.c.h.b16 %v1817
    %v3322 = vunpack.c.l.b16 %v1818
    %v3323 = vunpack.c.h.b16 %v1818
    %v3324 = vunpack.c.l.b16 %v1819
    %v3325 = vunpack.c.h.b16 %v1819
    %v3326 = vunpack.c.l.b16 %v1820
    %v3327 = vunpack.c.h.b16 %v1820
    %v3328 = vunpack.c.l.b16 %v1821
    %v3329 = vunpack.c.h.b16 %v1821
    %v3330 = vunpack.c.l.b16 %v1822
    %v3331 = vunpack.c.h.b16 %v1822
    %v3332 = vunpack.c.l.b16 %v1823
    %v3333 = vunpack.c.h.b16 %v1823
    %v3334 = vunpack.c.l.b16 %v1824
    %v3335 = vunpack.c.h.b16 %v1824
    %v3336 = vunpack.c.l.b16 %v1825
    %v3337 = vunpack.c.h.b16 %v1825
    %v3338 = vunpack.c.l.b16 %v1826
    %v3339 = vunpack.c.h.b16 %v1826
    %v3340 = vunpack.c.l.b16 %v1827
    %v3341 = vunpack.c.h.b16 %v1827
    %v3342 = vunpack.c.l.b16 %v1828
    %v3343 = vunpack.c.h.b16 %v1828
    %v3344 = vunpack.c.l.b16 %v1829
    %v3345 = vunpack.c.h.b16 %v1829
    %v3346 = vunpack.c.l.b16 %v1830
    %v3347 = vunpack.c.h.b16 %v1830
    %v3348 = vunpack.c.l.b16 %v1831
    %v3349 = vunpack.c.h.b16 %v1831
    %v3350 = vunpack.c.l.b16 %v1832
    %v3351 = vunpack.c.h.b16 %v1832
    %v3352 = vunpack.c.l.b16 %v1833
    %v3353 = vunpack.c.h.b16 %v1833
    %v3354 = vunpack.c.l.b16 %v1834
    %v3355 = vunpack.c.h.b16 %v1834
    %v3356 = vunpack.c.l.b16 %v1835
    %v3357 = vunpack.c.h.b16 %v1835
    %v3358 = vunpack.c.l.b16 %v1836
    %v3359 = vunpack.c.h.b16 %v1836
    %v3360 = vunpack.c.l.b16 %v1837
    %v3361 = vunpack.c.h.b16 %v1837
    %v3362 = vunpack.c.l.b16 %v1838
    %v3363 = vunpack.c.h.b16 %v1838
    %v3364 = vunpack.c.l.b16 %v1839
    %v3365 = vunpack.c.h.b16 %v1839
    %v3366 = vunpack.c.l.b16 %v1840
    %v3367 = vunpack.c.h.b16 %v1840
    %v3368 = vunpack.c.l.b16 %v1841
    %v3369 = vunpack.c.h.b16 %v1841
    %v3370 = vunpack.c.l.b16 %v1842
    %v3371 = vunpack.c.h.b16 %v1842
    %v3372 = vunpack.c.l.b16 %v1843
    %v3373 = vunpack.c.h.b16 %v1843
    %v3374 = vunpack.c.l.b16 %v1844
    %v3375 = vunpack.c.h.b16 %v1844
    %v3376 = vunpack.c.l.b16 %v1845
    %v3377 = vunpack.c.h.b16 %v1845
    %v3378 = vunpack.c.l.b16 %v1846
    %v3379 = vunpack.c.h.b16 %v1846
    %v3380 = vunpack.c.l.b16 %v1847
    %v3381 = vunpack.c.h.b16 %v1847
    %v3382 = vunpack.c.l.b16 %v1848
    %v3383 = vunpack.c.h.b16 %v1848
    %v3384 = vunpack.c.l.b16 %v1849
    %v3385 = vunpack.c.h.b16 %v1849
    %v3386 = vunpack.c.l.b16 %v1850
    %v3387 = vunpack.c.h.b16 %v1850
    %v3388 = vunpack.c.l.b16 %v1851
    %v3389 = vunpack.c.h.b16 %v1851
    %v3390 = vunpack.c.l.b16 %v1852
    %v3391 = vunpack.c.h.b16 %v1852
    %v3392 = vunpack.c.l.b16 %v1853
    %v3393 = vunpack.c.h.b16 %v1853
    %v3394 = vunpack.c.l.b16 %v1854
    %v3395 = vunpack.c.h.b16 %v1854
    %v3396 = vunpack.c.l.b16 %v1855
    %v3397 = vunpack.c.h.b16 %v1855
    %v3398 = vunpack.c.l.b16 %v1856
    %v3399 = vunpack.c.h.b16 %v1856
    %v3400 = vunpack.c.l.b16 %v1857
    %v3401 = vunpack.c.h.b16 %v1857
    %v3402 = vunpack.c.l.b16 %v1858
    %v3403 = vunpack.c.h.b16 %v1858
    %v3404 = vunpack.c.l.b16 %v1859
    %v3405 = vunpack.c.h.b16 %v1859
    %v3406 = vunpack.c.l.b16 %v1860
    %v3407 = vunpack.c.h.b16 %v1860
    %v3408 = vunpack.c.l.b16 %v1861
    %v3409 = vunpack.c.h.b16 %v1861
    %v3410 = vunpack.c.l.b16 %v1862
    %v3411 = vunpack.c.h.b16 %v1862
    %v3412 = vunpack.c.l.b16 %v1863
    %v3413 = vunpack.c.h.b16 %v1863
    %v3414 = vunpack.c.l.b16 %v1864
    %v3415 = vunpack.c.h.b16 %v1864
    %v3416 = vunpack.c.l.b16 %v1865
    %v3417 = vunpack.c.h.b16 %v1865
    %v3418 = vunpack.c.l.b16 %v1866
    %v3419 = vunpack.c.h.b16 %v1866
    %v3420 = vunpack.c.l.b16 %v1867
    %v3421 = vunpack.c.h.b16 %v1867
    %v3422 = vunpack.c.l.b16 %v1868
    %v3423 = vunpack.c.h.b16 %v1868
    %v3424 = vunpack.c.l.b16 %v1869
    %v3425 = vunpack.c.h.b16 %v1869
    %v3426 = vunpack.c.l.b16 %v1870
    %v3427 = vunpack.c.h.b16 %v1870
    %v3428 = vunpack.c.l.b16 %v1871
    %v3429 = vunpack.c.h.b16 %v1871
    %v3430 = vpack.c.b16 %v2410, %v2406
    %v3431 = vpack.c.b16 %v2411, %v2407
    %v3432 = vpack.c.b16 %v2412, %v2408
    %v3433 = vpack.c.b16 %v2413, %v2409
    %v3434 = vpack.c.b16 %v2418, %v2414
    %v3435 = vpack.c.b16 %v2419, %v2415
    %v3436 = vpack.c.b16 %v2420, %v2416
    %v3437 = vpack.c.b16 %v2421, %v2417
    %v3438 = vpack.c.b16 %v2426, %v2422
    %v3439 = vpack.c.b16 %v2427, %v2423
    %v3440 = vpack.c.b16 %v2428, %v2424
    %v3441 = vpack.c.b16 %v2429, %v2425
    %v3442 = vpack.c.b16 %v2434, %v2430
    %v3443 = vpack.c.b16 %v2435, %v2431
    %v3444 = vpack.c.b16 %v2436, %v2432
    %v3445 = vpack.c.b16 %v2437, %v2433
    %v3446 = vpack.c.b16 %v2442, %v2438
    %v3447 = vpack.c.b16 %v2443, %v2439
    %v3448 = vpack.c.b16 %v2444, %v2440
    %v3449 = vpack.c.b16 %v2445, %v2441
    %v3450 = vpack.c.b16 %v2450, %v2446
    %v3451 = vpack.c.b16 %v2451, %v2447
    %v3452 = vpack.c.b16 %v2452, %v2448
    %v3453 = vpack.c.b16 %v2453, %v2449
    %v3454 = vpack.c.b16 %v2458, %v2454
    %v3455 = vpack.c.b16 %v2459, %v2455
    %v3456 = vpack.c.b16 %v2460, %v2456
    %v3457 = vpack.c.b16 %v2461, %v2457
    %v3458 = vpack.c.b16 %v2466, %v2462
    %v3459 = vpack.c.b16 %v2467, %v2463
    %v3460 = vpack.c.b16 %v2468, %v2464
    %v3461 = vpack.c.b16 %v2469, %v2465
    %v3462 = vpack.c.b16 %v2474, %v2470
    %v3463 = vpack.c.b16 %v2475, %v2471
    %v3464 = vpack.c.b16 %v2476, %v2472
    %v3465 = vpack.c.b16 %v2477, %v2473
    %v3466 = vpack.c.b16 %v2482, %v2478
    %v3467 = vpack.c.b16 %v2483, %v2479
    %v3468 = vpack.c.b16 %v2484, %v2480
    %v3469 = vpack.c.b16 %v2485, %v2481
    %v3470 = vpack.c.b16 %v2490, %v2486
    %v3471 = vpack.c.b16 %v2491, %v2487
    %v3472 = vpack.c.b16 %v2492, %v2488
    %v3473 = vpack.c.b16 %v2493, %v2489
    %v3474 = vpack.c.b16 %v2498, %v2494
    %v3475 = vpack.c.b16 %v2499, %v2495
    %v3476 = vpack.c.b16 %v2500, %v2496
    %v3477 = vpack.c.b16 %v2501, %v2497
    %v3478 = vpack.c.b16 %v2506, %v2502
    %v3479 = vpack.c.b16 %v2507, %v2503
    %v3480 = vpack.c.b16 %v2508, %v2504
    %v3481 = vpack.c.b16 %v2509, %v2505
    %v3482 = vpack.c.b16 %v2514, %v2510
    %v3483 = vpack.c.b16 %v2515, %v2511
    %v3484 = vpack.c.b16 %v2516, %v2512
    %v3485 = vpack.c.b16 %v2517, %v2513
    %v3486 = vpack.c.b16 %v2522, %v2518
    %v3487 = vpack.c.b16 %v2523, %v2519
    %v3488 = vpack.c.b16 %v2524, %v2520
    %v3489 = vpack.c.b16 %v2525, %v2521
    %v3490 = vpack.c.b16 %v2530, %v2526
    %v3491 = vpack.c.b16 %v2531, %v2527
    %v3492 = vpack.c.b16 %v2532, %v2528
    %v3493 = vpack.c.b16 %v2533, %v2529
    %v3494 = vpack.c.b16 %v2538, %v2534
    %v3495 = vpack.c.b16 %v2539, %v2535
    %v3496 = vpack.c.b16 %v2540, %v2536
    %v3497 = vpack.c.b16 %v2541, %v2537
    %v3498 = vpack.c.b16 %v2546, %v2542
    %v3499 = vpack.c.b16 %v2547, %v2543
    %v3500 = vpack.c.b16 %v2548, %v2544
    %v3501 = vpack.c.b16 %v2549, %v2545
    %v3502 = vpack.c.b16 %v2554, %v2550
    %v3503 = vpack.c.b16 %v2555, %v2551
    %v3504 = vpack.c.b16 %v2556, %v2552
    %v3505 = vpack.c.b16 %v2557, %v2553
    %v3506 = vpack.c.b16 %v2562, %v2558
    %v3507 = vpack.c.b16 %v2563, %v2559
    %v3508 = vpack.c.b16 %v2564, %v2560
    %v3509 = vpack.c.b16 %v2565, %v2561
    %v3510 = vpack.c.b16 %v2570, %v2566
    %v3511 = vpack.c.b16 %v2571, %v2567
    %v3512 = vpack.c.b16 %v2572, %v2568
    %v3513 = vpack.c.b16 %v2573, %v2569
    %v3514 = vpack.c.b16 %v2578, %v2574
    %v3515 = vpack.c.b16 %v2579, %v2575
    %v3516 = vpack.c.b16 %v2580, %v2576
    %v3517 = vpack.c.b16 %v2581, %v2577
    %v3518 = vpack.c.b16 %v2586, %v2582
    %v3519 = vpack.c.b16 %v2587, %v2583
    %v3520 = vpack.c.b16 %v2588, %v2584
    %v3521 = vpack.c.b16 %v2589, %v2585
    %v3522 = vpack.c.b16 %v2594, %v2590
    %v3523 = vpack.c.b16 %v2595, %v2591
    %v3524 = vpack.c.b16 %v2596, %v2592
    %v3525 = vpack.c.b16 %v2597, %v2593
    %v3526 = vpack.c.b16 %v2602, %v2598
    %v3527 = vpack.c.b16 %v2603, %v2599
    %v3528 = vpack.c.b16 %v2604, %v2600
    %v3529 = vpack.c.b16 %v2605, %v2601
    %v3530 = vpack.c.b16 %v2610, %v2606
    %v3531 = vpack.c.b16 %v2611, %v2607
    %v3532 = vpack.c.b16 %v2612, %v2608
    %v3533 = vpack.c.b16 %v2613, %v2609
    %v3534 = vpack.c.b16 %v2618, %v2614
    %v3535 = vpack.c.b16 %v2619, %v2615
    %v3536 = vpack.c.b16 %v2620, %v2616
    %v3537 = vpack.c.b16 %v2621, %v2617
    %v3538 = vpack.c.b16 %v2626, %v2622
    %v3539 = vpack.c.b16 %v2627, %v2623
    %v3540 = vpack.c.b16 %v2628, %v2624
    %v3541 = vpack.c.b16 %v2629, %v2625
    %v3542 = vpack.c.b16 %v2634, %v2630
    %v3543 = vpack.c.b16 %v2635, %v2631
    %v3544 = vpack.c.b16 %v2636, %v2632
    %v3545 = vpack.c.b16 %v2637, %v2633
    %v3546 = vpack.c.b16 %v2642, %v2638
    %v3547 = vpack.c.b16 %v2643, %v2639
    %v3548 = vpack.c.b16 %v2644, %v2640
    %v3549 = vpack.c.b16 %v2645, %v2641
    %v3550 = vpack.c.b16 %v2650, %v2646
    %v3551 = vpack.c.b16 %v2651, %v2647
    %v3552 = vpack.c.b16 %v2652, %v2648
    %v3553 = vpack.c.b16 %v2653, %v2649
    %v3554 = vpack.c.b16 %v2658, %v2654
    %v3555 = vpack.c.b16 %v2659, %v2655
    %v3556 = vpack.c.b16 %v2660, %v2656
    %v3557 = vpack.c.b16 %v2661, %v2657
    %v3558 = vpack.c.b16 %v2666, %v2662
    %v3559 = vpack.c.b16 %v2667, %v2663
    %v3560 = vpack.c.b16 %v2668, %v2664
    %v3561 = vpack.c.b16 %v2669, %v2665
    %v3562 = vpack.c.b16 %v2674, %v2670
    %v3563 = vpack.c.b16 %v2675, %v2671
    %v3564 = vpack.c.b16 %v2676, %v2672
    %v3565 = vpack.c.b16 %v2677, %v2673
    %v3566 = vpack.c.b16 %v2682, %v2678
    %v3567 = vpack.c.b16 %v2683, %v2679
    %v3568 = vpack.c.b16 %v2684, %v2680
    %v3569 = vpack.c.b16 %v2685, %v2681
    %v3570 = vpack.c.b16 %v2690, %v2686
    %v3571 = vpack.c.b16 %v2691, %v2687
    %v3572 = vpack.c.b16 %v2692, %v2688
    %v3573 = vpack.c.b16 %v2693, %v2689
    %v3574 = vpack.c.b16 %v2698, %v2694
    %v3575 = vpack.c.b16 %v2699, %v2695
    %v3576 = vpack.c.b16 %v2700, %v2696
    %v3577 = vpack.c.b16 %v2701, %v2697
    %v3578 = vpack.c.b16 %v2706, %v2702
    %v3579 = vpack.c.b16 %v2707, %v2703
    %v3580 = vpack.c.b16 %v2708, %v2704
    %v3581 = vpack.c.b16 %v2709, %v2705
    %v3582 = vpack.c.b16 %v2714, %v2710
    %v3583 = vpack.c.b16 %v2715, %v2711
    %v3584 = vpack.c.b16 %v2716, %v2712
    %v3585 = vpack.c.b16 %v2717, %v2713
    %v3586 = vpack.c.b16 %v2722, %v2718
    %v3587 = vpack.c.b16 %v2723, %v2719
    %v3588 = vpack.c.b16 %v2724, %v2720
    %v3589 = vpack.c.b16 %v2725, %v2721
    %v3590 = vpack.c.b16 %v2730, %v2726
    %v3591 = vpack.c.b16 %v2731, %v2727
    %v3592 = vpack.c.b16 %v2732, %v2728
    %v3593 = vpack.c.b16 %v2733, %v2729
    %v3594 = vpack.c.b16 %v2738, %v2734
    %v3595 = vpack.c.b16 %v2739, %v2735
    %v3596 = vpack.c.b16 %v2740, %v2736
    %v3597 = vpack.c.b16 %v2741, %v2737
    %v3598 = vpack.c.b16 %v2746, %v2742
    %v3599 = vpack.c.b16 %v2747, %v2743
    %v3600 = vpack.c.b16 %v2748, %v2744
    %v3601 = vpack.c.b16 %v2749, %v2745
    %v3602 = vpack.c.b16 %v2754, %v2750
    %v3603 = vpack.c.b16 %v2755, %v2751
    %v3604 = vpack.c.b16 %v2756, %v2752
    %v3605 = vpack.c.b16 %v2757, %v2753
    %v3606 = vpack.c.b16 %v2762, %v2758
    %v3607 = vpack.c.b16 %v2763, %v2759
    %v3608 = vpack.c.b16 %v2764, %v2760
    %v3609 = vpack.c.b16 %v2765, %v2761
    %v3610 = vpack.c.b16 %v2770, %v2766
    %v3611 = vpack.c.b16 %v2771, %v2767
    %v3612 = vpack.c.b16 %v2772, %v2768
    %v3613 = vpack.c.b16 %v2773, %v2769
    %v3614 = vpack.c.b16 %v2778, %v2774
    %v3615 = vpack.c.b16 %v2779, %v2775
    %v3616 = vpack.c.b16 %v2780, %v2776
    %v3617 = vpack.c.b16 %v2781, %v2777
    %v3618 = vpack.c.b16 %v2786, %v2782
    %v3619 = vpack.c.b16 %v2787, %v2783
    %v3620 = vpack.c.b16 %v2788, %v2784
    %v3621 = vpack.c.b16 %v2789, %v2785
    %v3622 = vpack.c.b16 %v2794, %v2790
    %v3623 = vpack.c.b16 %v2795, %v2791
    %v3624 = vpack.c.b16 %v2796, %v2792
    %v3625 = vpack.c.b16 %v2797, %v2793
    %v3626 = vpack.c.b16 %v2802, %v2798
    %v3627 = vpack.c.b16 %v2803, %v2799
    %v3628 = vpack.c.b16 %v2804, %v2800
    %v3629 = vpack.c.b16 %v2805, %v2801
    %v3630 = vpack.c.b16 %v2810, %v2806
    %v3631 = vpack.c.b16 %v2811, %v2807
    %v3632 = vpack.c.b16 %v2812, %v2808
    %v3633 = vpack.c.b16 %v2813, %v2809
    %v3634 = vpack.c.b16 %v2818, %v2814
    %v3635 = vpack.c.b16 %v2819, %v2815
    %v3636 = vpack.c.b16 %v2820, %v2816
    %v3637 = vpack.c.b16 %v2821, %v2817
    %v3638 = vpack.c.b16 %v2826, %v2822
    %v3639 = vpack.c.b16 %v2827, %v2823
    %v3640 = vpack.c.b16 %v2828, %v2824
    %v3641 = vpack.c.b16 %v2829, %v2825
    %v3642 = vpack.c.b16 %v2834, %v2830
    %v3643 = vpack.c.b16 %v2835, %v2831
    %v3644 = vpack.c.b16 %v2836, %v2832
    %v3645 = vpack.c.b16 %v2837, %v2833
    %v3646 = vpack.c.b16 %v2842, %v2838
    %v3647 = vpack.c.b16 %v2843, %v2839
    %v3648 = vpack.c.b16 %v2844, %v2840
    %v3649 = vpack.c.b16 %v2845, %v2841
    %v3650 = vpack.c.b16 %v2850, %v2846
    %v3651 = vpack.c.b16 %v2851, %v2847
    %v3652 = vpack.c.b16 %v2852, %v2848
    %v3653 = vpack.c.b16 %v2853, %v2849
    %v3654 = vpack.c.b16 %v2858, %v2854
    %v3655 = vpack.c.b16 %v2859, %v2855
    %v3656 = vpack.c.b16 %v2860, %v2856
    %v3657 = vpack.c.b16 %v2861, %v2857
    %v3658 = vpack.c.b16 %v2866, %v2862
    %v3659 = vpack.c.b16 %v2867, %v2863
    %v3660 = vpack.c.b16 %v2868, %v2864
    %v3661 = vpack.c.b16 %v2869, %v2865
    %v3662 = vpack.c.b16 %v2874, %v2870
    %v3663 = vpack.c.b16 %v2875, %v2871
    %v3664 = vpack.c.b16 %v2876, %v2872
    %v3665 = vpack.c.b16 %v2877, %v2873
    %v3666 = vpack.c.b16 %v2882, %v2878
    %v3667 = vpack.c.b16 %v2883, %v2879
    %v3668 = vpack.c.b16 %v2884, %v2880
    %v3669 = vpack.c.b16 %v2885, %v2881
    %v3670 = vpack.c.b16 %v2890, %v2886
    %v3671 = vpack.c.b16 %v2891, %v2887
    %v3672 = vpack.c.b16 %v2892, %v2888
    %v3673 = vpack.c.b16 %v2893, %v2889
    %v3674 = vpack.c.b16 %v2898, %v2894
    %v3675 = vpack.c.b16 %v2899, %v2895
    %v3676 = vpack.c.b16 %v2900, %v2896
    %v3677 = vpack.c.b16 %v2901, %v2897
    %v3678 = vpack.c.b16 %v2906, %v2902
    %v3679 = vpack.c.b16 %v2907, %v2903
    %v3680 = vpack.c.b16 %v2908, %v2904
    %v3681 = vpack.c.b16 %v2909, %v2905
    %v3682 = vpack.c.b16 %v2914, %v2910
    %v3683 = vpack.c.b16 %v2915, %v2911
    %v3684 = vpack.c.b16 %v2916, %v2912
    %v3685 = vpack.c.b16 %v2917, %v2913
    %v3686 = vpack.c.b16 %v2922, %v2918
    %v3687 = vpack.c.b16 %v2923, %v2919
    %v3688 = vpack.c.b16 %v2924, %v2920
    %v3689 = vpack.c.b16 %v2925, %v2921
    %v3690 = vpack.c.b16 %v2930, %v2926
    %v3691 = vpack.c.b16 %v2931, %v2927
    %v3692 = vpack.c.b16 %v2932, %v2928
    %v3693 = vpack.c.b16 %v2933, %v2929
    %v3694 = vpack.c.b16 %v2938, %v2934
    %v3695 = vpack.c.b16 %v2939, %v2935
    %v3696 = vpack.c.b16 %v2940, %v2936
    %v3697 = vpack.c.b16 %v2941, %v2937
    %v3698 = vpack.c.b16 %v2946, %v2942
    %v3699 = vpack.c.b16 %v2947, %v2943
    %v3700 = vpack.c.b16 %v2948, %v2944
    %v3701 = vpack.c.b16 %v2949, %v2945
    %v3702 = vpack.c.b16 %v2954, %v2950
    %v3703 = vpack.c.b16 %v2955, %v2951
    %v3704 = vpack.c.b16 %v2956, %v2952
    %v3705 = vpack.c.b16 %v2957, %v2953
    %v3706 = vpack.c.b16 %v2962, %v2958
    %v3707 = vpack.c.b16 %v2963, %v2959
    %v3708 = vpack.c.b16 %v2964, %v2960
    %v3709 = vpack.c.b16 %v2965, %v2961
    %v3710 = vpack.c.b16 %v2970, %v2966
    %v3711 = vpack.c.b16 %v2971, %v2967
    %v3712 = vpack.c.b16 %v2972, %v2968
    %v3713 = vpack.c.b16 %v2973, %v2969
    %v3714 = vpack.c.b16 %v2978, %v2974
    %v3715 = vpack.c.b16 %v2979, %v2975
    %v3716 = vpack.c.b16 %v2980, %v2976
    %v3717 = vpack.c.b16 %v2981, %v2977
    %v3718 = vpack.c.b16 %v2986, %v2982
    %v3719 = vpack.c.b16 %v2987, %v2983
    %v3720 = vpack.c.b16 %v2988, %v2984
    %v3721 = vpack.c.b16 %v2989, %v2985
    %v3722 = vpack.c.b16 %v2994, %v2990
    %v3723 = vpack.c.b16 %v2995, %v2991
    %v3724 = vpack.c.b16 %v2996, %v2992
    %v3725 = vpack.c.b16 %v2997, %v2993
    %v3726 = vpack.c.b16 %v3002, %v2998
    %v3727 = vpack.c.b16 %v3003, %v2999
    %v3728 = vpack.c.b16 %v3004, %v3000
    %v3729 = vpack.c.b16 %v3005, %v3001
    %v3730 = vpack.c.b16 %v3010, %v3006
    %v3731 = vpack.c.b16 %v3011, %v3007
    %v3732 = vpack.c.b16 %v3012, %v3008
    %v3733 = vpack.c.b16 %v3013, %v3009
    %v3734 = vpack.c.b16 %v3018, %v3014
    %v3735 = vpack.c.b16 %v3019, %v3015
    %v3736 = vpack.c.b16 %v3020, %v3016
    %v3737 = vpack.c.b16 %v3021, %v3017
    %v3738 = vpack.c.b16 %v3026, %v3022
    %v3739 = vpack.c.b16 %v3027, %v3023
    %v3740 = vpack.c.b16 %v3028, %v3024
    %v3741 = vpack.c.b16 %v3029, %v3025
    %v3742 = vpack.c.b16 %v3034, %v3030
    %v3743 = vpack.c.b16 %v3035, %v3031
    %v3744 = vpack.c.b16 %v3036, %v3032
    %v3745 = vpack.c.b16 %v3037, %v3033
    %v3746 = vpack.c.b16 %v3042, %v3038
    %v3747 = vpack.c.b16 %v3043, %v3039
    %v3748 = vpack.c.b16 %v3044, %v3040
    %v3749 = vpack.c.b16 %v3045, %v3041
    %v3750 = vpack.c.b16 %v3050, %v3046
    %v3751 = vpack.c.b16 %v3051, %v3047
    %v3752 = vpack.c.b16 %v3052, %v3048
    %v3753 = vpack.c.b16 %v3053, %v3049
    %v3754 = vpack.c.b16 %v3058, %v3054
    %v3755 = vpack.c.b16 %v3059, %v3055
    %v3756 = vpack.c.b16 %v3060, %v3056
    %v3757 = vpack.c.b16 %v3061, %v3057
    %v3758 = vpack.c.b16 %v3066, %v3062
    %v3759 = vpack.c.b16 %v3067, %v3063
    %v3760 = vpack.c.b16 %v3068, %v3064
    %v3761 = vpack.c.b16 %v3069, %v3065
    %v3762 = vpack.c.b16 %v3074, %v3070
    %v3763 = vpack.c.b16 %v3075, %v3071
    %v3764 = vpack.c.b16 %v3076, %v3072
    %v3765 = vpack.c.b16 %v3077, %v3073
    %v3766 = vpack.c.b16 %v3082, %v3078
    %v3767 = vpack.c.b16 %v3083, %v3079
    %v3768 = vpack.c.b16 %v3084, %v3080
    %v3769 = vpack.c.b16 %v3085, %v3081
    %v3770 = vpack.c.b16 %v3090, %v3086
    %v3771 = vpack.c.b16 %v3091, %v3087
    %v3772 = vpack.c.b16 %v3092, %v3088
    %v3773 = vpack.c.b16 %v3093, %v3089
    %v3774 = vpack.c.b16 %v3098, %v3094
    %v3775 = vpack.c.b16 %v3099, %v3095
    %v3776 = vpack.c.b16 %v3100, %v3096
    %v3777 = vpack.c.b16 %v3101, %v3097
    %v3778 = vpack.c.b16 %v3106, %v3102
    %v3779 = vpack.c.b16 %v3107, %v3103
    %v3780 = vpack.c.b16 %v3108, %v3104
    %v3781 = vpack.c.b16 %v3109, %v3105
    %v3782 = vpack.c.b16 %v3114, %v3110
    %v3783 = vpack.c.b16 %v3115, %v3111
    %v3784 = vpack.c.b16 %v3116, %v3112
    %v3785 = vpack.c.b16 %v3117, %v3113
    %v3786 = vpack.c.b16 %v3122, %v3118
    %v3787 = vpack.c.b16 %v3123, %v3119
    %v3788 = vpack.c.b16 %v3124, %v3120
    %v3789 = vpack.c.b16 %v3125, %v3121
    %v3790 = vpack.c.b16 %v3130, %v3126
    %v3791 = vpack.c.b16 %v3131, %v3127
    %v3792 = vpack.c.b16 %v3132, %v3128
    %v3793 = vpack.c.b16 %v3133, %v3129
    %v3794 = vpack.c.b16 %v3138, %v3134
    %v3795 = vpack.c.b16 %v3139, %v3135
    %v3796 = vpack.c.b16 %v3140, %v3136
    %v3797 = vpack.c.b16 %v3141, %v3137
    %v3798 = vpack.c.b16 %v3146, %v3142
    %v3799 = vpack.c.b16 %v3147, %v3143
    %v3800 = vpack.c.b16 %v3148, %v3144
    %v3801 = vpack.c.b16 %v3149, %v3145
    %v3802 = vpack.c.b16 %v3154, %v3150
    %v3803 = vpack.c.b16 %v3155, %v3151
    %v3804 = vpack.c.b16 %v3156, %v3152
    %v3805 = vpack.c.b16 %v3157, %v3153
    %v3806 = vpack.c.b16 %v3162, %v3158
    %v3807 = vpack.c.b16 %v3163, %v3159
    %v3808 = vpack.c.b16 %v3164, %v3160
    %v3809 = vpack.c.b16 %v3165, %v3161
    %v3810 = vpack.c.b16 %v3170, %v3166
    %v3811 = vpack.c.b16 %v3171, %v3167
    %v3812 = vpack.c.b16 %v3172, %v3168
    %v3813 = vpack.c.b16 %v3173, %v3169
    %v3814 = vpack.c.b16 %v3178, %v3174
    %v3815 = vpack.c.b16 %v3179, %v3175
    %v3816 = vpack.c.b16 %v3180, %v3176
    %v3817 = vpack.c.b16 %v3181, %v3177
    %v3818 = vpack.c.b16 %v3186, %v3182
    %v3819 = vpack.c.b16 %v3187, %v3183
    %v3820 = vpack.c.b16 %v3188, %v3184
    %v3821 = vpack.c.b16 %v3189, %v3185
    %v3822 = vpack.c.b16 %v3194, %v3190
    %v3823 = vpack.c.b16 %v3195, %v3191
    %v3824 = vpack.c.b16 %v3196, %v3192
    %v3825 = vpack.c.b16 %v3197, %v3193
    %v3826 = vpack.c.b16 %v3202, %v3198
    %v3827 = vpack.c.b16 %v3203, %v3199
    %v3828 = vpack.c.b16 %v3204, %v3200
    %v3829 = vpack.c.b16 %v3205, %v3201
    %v3830 = vpack.c.b16 %v3210, %v3206
    %v3831 = vpack.c.b16 %v3211, %v3207
    %v3832 = vpack.c.b16 %v3212, %v3208
    %v3833 = vpack.c.b16 %v3213, %v3209
    %v3834 = vpack.c.b16 %v3218, %v3214
    %v3835 = vpack.c.b16 %v3219, %v3215
    %v3836 = vpack.c.b16 %v3220, %v3216
    %v3837 = vpack.c.b16 %v3221, %v3217
    %v3838 = vpack.c.b16 %v3226, %v3222
    %v3839 = vpack.c.b16 %v3227, %v3223
    %v3840 = vpack.c.b16 %v3228, %v3224
    %v3841 = vpack.c.b16 %v3229, %v3225
    %v3842 = vpack.c.b16 %v3234, %v3230
    %v3843 = vpack.c.b16 %v3235, %v3231
    %v3844 = vpack.c.b16 %v3236, %v3232
    %v3845 = vpack.c.b16 %v3237, %v3233
    %v3846 = vpack.c.b16 %v3242, %v3238
    %v3847 = vpack.c.b16 %v3243, %v3239
    %v3848 = vpack.c.b16 %v3244, %v3240
    %v3849 = vpack.c.b16 %v3245, %v3241
    %v3850 = vpack.c.b16 %v3250, %v3246
    %v3851 = vpack.c.b16 %v3251, %v3247
    %v3852 = vpack.c.b16 %v3252, %v3248
    %v3853 = vpack.c.b16 %v3253, %v3249
    %v3854 = vpack.c.b16 %v3258, %v3254
    %v3855 = vpack.c.b16 %v3259, %v3255
    %v3856 = vpack.c.b16 %v3260, %v3256
    %v3857 = vpack.c.b16 %v3261, %v3257
    %v3858 = vpack.c.b16 %v3266, %v3262
    %v3859 = vpack.c.b16 %v3267, %v3263
    %v3860 = vpack.c.b16 %v3268, %v3264
    %v3861 = vpack.c.b16 %v3269, %v3265
    %v3862 = vpack.c.b16 %v3274, %v3270
    %v3863 = vpack.c.b16 %v3275, %v3271
    %v3864 = vpack.c.b16 %v3276, %v3272
    %v3865 = vpack.c.b16 %v3277, %v3273
    %v3866 = vpack.c.b16 %v3282, %v3278
    %v3867 = vpack.c.b16 %v3283, %v3279
    %v3868 = vpack.c.b16 %v3284, %v3280
    %v3869 = vpack.c.b16 %v3285, %v3281
    %v3870 = vpack.c.b16 %v3290, %v3286
    %v3871 = vpack.c.b16 %v3291, %v3287
    %v3872 = vpack.c.b16 %v3292, %v3288
    %v3873 = vpack.c.b16 %v3293, %v3289
    %v3874 = vpack.c.b16 %v3298, %v3294
    %v3875 = vpack.c.b16 %v3299, %v3295
    %v3876 = vpack.c.b16 %v3300, %v3296
    %v3877 = vpack.c.b16 %v3301, %v3297
    %v3878 = vpack.c.b16 %v3306, %v3302
    %v3879 = vpack.c.b16 %v3307, %v3303
    %v3880 = vpack.c.b16 %v3308, %v3304
    %v3881 = vpack.c.b16 %v3309, %v3305
    %v3882 = vpack.c.b16 %v3314, %v3310
    %v3883 = vpack.c.b16 %v3315, %v3311
    %v3884 = vpack.c.b16 %v3316, %v3312
    %v3885 = vpack.c.b16 %v3317, %v3313
    %v3886 = vpack.c.b16 %v3322, %v3318
    %v3887 = vpack.c.b16 %v3323, %v3319
    %v3888 = vpack.c.b16 %v3324, %v3320
    %v3889 = vpack.c.b16 %v3325, %v3321
    %v3890 = vpack.c.b16 %v3330, %v3326
    %v3891 = vpack.c.b16 %v3331, %v3327
    %v3892 = vpack.c.b16 %v3332, %v3328
    %v3893 = vpack.c.b16 %v3333, %v3329
    %v3894 = vpack.c.b16 %v3338, %v3334
    %v3895 = vpack.c.b16 %v3339, %v3335
    %v3896 = vpack.c.b16 %v3340, %v3336
    %v3897 = vpack.c.b16 %v3341, %v3337
    %v3898 = vpack.c.b16 %v3346, %v3342
    %v3899 = vpack.c.b16 %v3347, %v3343
    %v3900 = vpack.c.b16 %v3348, %v3344
    %v3901 = vpack.c.b16 %v3349, %v3345
    %v3902 = vpack.c.b16 %v3354, %v3350
    %v3903 = vpack.c.b16 %v3355, %v3351
    %v3904 = vpack.c.b16 %v3356, %v3352
    %v3905 = vpack.c.b16 %v3357, %v3353
    %v3906 = vpack.c.b16 %v3362, %v3358
    %v3907 = vpack.c.b16 %v3363, %v3359
    %v3908 = vpack.c.b16 %v3364, %v3360
    %v3909 = vpack.c.b16 %v3365, %v3361
    %v3910 = vpack.c.b16 %v3370, %v3366
    %v3911 = vpack.c.b16 %v3371, %v3367
    %v3912 = vpack.c.b16 %v3372, %v3368
    %v3913 = vpack.c.b16 %v3373, %v3369
    %v3914 = vpack.c.b16 %v3378, %v3374
    %v3915 = vpack.c.b16 %v3379, %v3375
    %v3916 = vpack.c.b16 %v3380, %v3376
    %v3917 = vpack.c.b16 %v3381, %v3377
    %v3918 = vpack.c.b16 %v3386, %v3382
    %v3919 = vpack.c.b16 %v3387, %v3383
    %v3920 = vpack.c.b16 %v3388, %v3384
    %v3921 = vpack.c.b16 %v3389, %v3385
    %v3922 = vpack.c.b16 %v3394, %v3390
    %v3923 = vpack.c.b16 %v3395, %v3391
    %v3924 = vpack.c.b16 %v3396, %v3392
    %v3925 = vpack.c.b16 %v3397, %v3393
    %v3926 = vpack.c.b16 %v3402, %v3398
    %v3927 = vpack.c.b16 %v3403, %v3399
    %v3928 = vpack.c.b16 %v3404, %v3400
    %v3929 = vpack.c.b16 %v3405, %v3401
    %v3930 = vpack.c.b16 %v3410, %v3406
    %v3931 = vpack.c.b16 %v3411, %v3407
    %v3932 = vpack.c.b16 %v3412, %v3408
    %v3933 = vpack.c.b16 %v3413, %v3409
    %v3934 = vpack.c.b16 %v3418, %v3414
    %v3935 = vpack.c.b16 %v3419, %v3415
    %v3936 = vpack.c.b16 %v3420, %v3416
    %v3937 = vpack.c.b16 %v3421, %v3417
    %v3938 = vpack.c.b16 %v3426, %v3422
    %v3939 = vpack.c.b16 %v3427, %v3423
    %v3940 = vpack.c.b16 %v3428, %v3424
    %v3941 = vpack.c.b16 %v3429, %v3425
    %4454 = vmatprep.subr.bf16.mxu0 %v3459
    %4455 = vmatpush1.bf16.msra.mxu0 %v3458
    %4456 = vmatprep.subr.bf16.mxu0 %v3455
    %4457 = vmatpush1.bf16.msra.mxu0 %v3454
    %4458 = vmatprep.subr.bf16.mxu0 %v3451
    %4459 = vmatpush1.bf16.msra.mxu0 %v3450
    %4460 = vmatprep.subr.bf16.mxu0 %v3447
    %4461 = vmatpush1.bf16.msra.mxu0 %v3446
    %4462 = vmatprep.subr.bf16.mxu0 %v3443
    %4463 = vmatpush1.bf16.msra.mxu0 %v3442
    %4464 = vmatprep.subr.bf16.mxu0 %v3439
    %4465 = vmatpush1.bf16.msra.mxu0 %v3438
    %4466 = vmatprep.subr.bf16.mxu0 %v3435
    %4467 = vmatpush1.bf16.msra.mxu0 %v3434
    %4468 = vmatprep.subr.bf16.mxu0 %v3431
    %4469 = vmatpush1.bf16.msra.mxu0 %v3430
    %4470 = vmatprep.subr.bf16.mxu0 %v3491
    %4471 = vmatpush2.bf16.msra.mxu0 %v3490
    %4472 = vmatprep.subr.bf16.mxu0 %v3487
    %4473 = vmatpush2.bf16.msra.mxu0 %v3486
    %4474 = vmatprep.subr.bf16.mxu0 %v3483
    %4475 = vmatpush2.bf16.msra.mxu0 %v3482
    %4476 = vmatprep.subr.bf16.mxu0 %v3479
    %4477 = vmatpush2.bf16.msra.mxu0 %v3478
    %4478 = vmatprep.subr.bf16.mxu0 %v3475
    %4479 = vmatpush2.bf16.msra.mxu0 %v3474
    %4480 = vmatprep.subr.bf16.mxu0 %v3471
    %4481 = vmatpush2.bf16.msra.mxu0 %v3470
    %4482 = vmatprep.subr.bf16.mxu0 %v3467
    %4483 = vmatpush2.bf16.msra.mxu0 %v3466
    %4484 = vmatprep.subr.bf16.mxu0 %v3463
    %4485 = vmatpush2.bf16.msra.mxu0 %v3462
    %4486 = vmatprep.mubr.bf16.mxu0 %v1345
    %4487 = vmatmul.mubr.bf16.gmra.mxu0 %v1344
    %v4488 = vpop.f32.mrf.mxu0
    %v4489 = vadd.f32 %v1877, %v4488
    %v4490 = vpop.f32.mrf.mxu0
    %v4491 = vadd.f32 %v1881, %v4490
    %v4492 = vpop.f32.mrf.mxu0
    %v4493 = vpop.f32.mrf.mxu0
    %4494 = vdwg.mxu0
    %4495 = vmatprep.subr.bf16.mxu0 %v3523
    %4496 = vmatpush1.bf16.msra.mxu0 %v3522
    %4497 = vmatprep.subr.bf16.mxu0 %v3519
    %4498 = vmatpush1.bf16.msra.mxu0 %v3518
    %4499 = vmatprep.subr.bf16.mxu0 %v3515
    %4500 = vmatpush1.bf16.msra.mxu0 %v3514
    %4501 = vmatprep.subr.bf16.mxu0 %v3511
    %4502 = vmatpush1.bf16.msra.mxu0 %v3510
    %4503 = vmatprep.subr.bf16.mxu0 %v3507
    %4504 = vmatpush1.bf16.msra.mxu0 %v3506
    %4505 = vmatprep.subr.bf16.mxu0 %v3503
    %4506 = vmatpush1.bf16.msra.mxu0 %v3502
    %4507 = vmatprep.subr.bf16.mxu0 %v3499
    %4508 = vmatpush1.bf16.msra.mxu0 %v3498
    %4509 = vmatprep.subr.bf16.mxu0 %v3495
    %4510 = vmatpush1.bf16.msra.mxu0 %v3494
    %4511 = vmatprep.subr.bf16.mxu0 %v3555
    %4512 = vmatpush2.bf16.msra.mxu0 %v3554
    %4513 = vmatprep.subr.bf16.mxu0 %v3551
    %4514 = vmatpush2.bf16.msra.mxu0 %v3550
    %4515 = vmatprep.subr.bf16.mxu0 %v3547
    %4516 = vmatpush2.bf16.msra.mxu0 %v3546
    %4517 = vmatprep.subr.bf16.mxu0 %v3543
    %4518 = vmatpush2.bf16.msra.mxu0 %v3542
    %4519 = vmatprep.subr.bf16.mxu0 %v3539
    %4520 = vmatpush2.bf16.msra.mxu0 %v3538
    %4521 = vmatprep.subr.bf16.mxu0 %v3535
    %4522 = vmatpush2.bf16.msra.mxu0 %v3534
    %4523 = vmatprep.subr.bf16.mxu0 %v3531
    %4524 = vmatpush2.bf16.msra.mxu0 %v3530
    %4525 = vmatprep.subr.bf16.mxu0 %v3527
    %4526 = vmatpush2.bf16.msra.mxu0 %v3526
    %4527 = vmatprep.mubr.bf16.mxu0 %v1347
    %4528 = vmatmul.mubr.bf16.gmra.mxu0 %v1346
    %v4529 = vpop.f32.mrf.mxu0
    %v4530 = vadd.f32 %v4489, %v4529
    %v4531 = vpop.f32.mrf.mxu0
    %v4532 = vadd.f32 %v4491, %v4531
    %v4533 = vpop.f32.mrf.mxu0
    %v4534 = vpop.f32.mrf.mxu0
    %4535 = vdwg.mxu0
    %4536 = vmatprep.subr.bf16.mxu0 %v3587
    %4537 = vmatpush1.bf16.msra.mxu0 %v3586
    %4538 = vmatprep.subr.bf16.mxu0 %v3583
    %4539 = vmatpush1.bf16.msra.mxu0 %v3582
    %4540 = vmatprep.subr.bf16.mxu0 %v3579
    %4541 = vmatpush1.bf16.msra.mxu0 %v3578
    %4542 = vmatprep.subr.bf16.mxu0 %v3575
    %4543 = vmatpush1.bf16.msra.mxu0 %v3574
    %4544 = vmatprep.subr.bf16.mxu0 %v3571
    %4545 = vmatpush1.bf16.msra.mxu0 %v3570
    %4546 = vmatprep.subr.bf16.mxu0 %v3567
    %4547 = vmatpush1.bf16.msra.mxu0 %v3566
    %4548 = vmatprep.subr.bf16.mxu0 %v3563
    %4549 = vmatpush1.bf16.msra.mxu0 %v3562
    %4550 = vmatprep.subr.bf16.mxu0 %v3559
    %4551 = vmatpush1.bf16.msra.mxu0 %v3558
    %4552 = vmatprep.subr.bf16.mxu0 %v3619
    %4553 = vmatpush2.bf16.msra.mxu0 %v3618
    %4554 = vmatprep.subr.bf16.mxu0 %v3615
    %4555 = vmatpush2.bf16.msra.mxu0 %v3614
    %4556 = vmatprep.subr.bf16.mxu0 %v3611
    %4557 = vmatpush2.bf16.msra.mxu0 %v3610
    %4558 = vmatprep.subr.bf16.mxu0 %v3607
    %4559 = vmatpush2.bf16.msra.mxu0 %v3606
    %4560 = vmatprep.subr.bf16.mxu0 %v3603
    %4561 = vmatpush2.bf16.msra.mxu0 %v3602
    %4562 = vmatprep.subr.bf16.mxu0 %v3599
    %4563 = vmatpush2.bf16.msra.mxu0 %v3598
    %4564 = vmatprep.subr.bf16.mxu0 %v3595
    %4565 = vmatpush2.bf16.msra.mxu0 %v3594
    %4566 = vmatprep.subr.bf16.mxu0 %v3591
    %4567 = vmatpush2.bf16.msra.mxu0 %v3590
    %4568 = vmatprep.mubr.bf16.mxu0 %v1349
    %4569 = vmatmul.mubr.bf16.gmra.mxu0 %v1348
    %v4570 = vpop.f32.mrf.mxu0
    %v4571 = vadd.f32 %v4530, %v4570
    %v4572 = vpop.f32.mrf.mxu0
    %v4573 = vadd.f32 %v4532, %v4572
    %v4574 = vpop.f32.mrf.mxu0
    %v4575 = vpop.f32.mrf.mxu0
    %4576 = vdwg.mxu0
    %4577 = vmatprep.subr.bf16.mxu0 %v3651
    %4578 = vmatpush1.bf16.msra.mxu0 %v3650
    %4579 = vmatprep.subr.bf16.mxu0 %v3647
    %4580 = vmatpush1.bf16.msra.mxu0 %v3646
    %4581 = vmatprep.subr.bf16.mxu0 %v3643
    %4582 = vmatpush1.bf16.msra.mxu0 %v3642
    %4583 = vmatprep.subr.bf16.mxu0 %v3639
    %4584 = vmatpush1.bf16.msra.mxu0 %v3638
    %4585 = vmatprep.subr.bf16.mxu0 %v3635
    %4586 = vmatpush1.bf16.msra.mxu0 %v3634
    %4587 = vmatprep.subr.bf16.mxu0 %v3631
    %4588 = vmatpush1.bf16.msra.mxu0 %v3630
    %4589 = vmatprep.subr.bf16.mxu0 %v3627
    %4590 = vmatpush1.bf16.msra.mxu0 %v3626
    %4591 = vmatprep.subr.bf16.mxu0 %v3623
    %4592 = vmatpush1.bf16.msra.mxu0 %v3622
    %4593 = vmatprep.subr.bf16.mxu0 %v3683
    %4594 = vmatpush2.bf16.msra.mxu0 %v3682
    %4595 = vmatprep.subr.bf16.mxu0 %v3679
    %4596 = vmatpush2.bf16.msra.mxu0 %v3678
    %4597 = vmatprep.subr.bf16.mxu0 %v3675
    %4598 = vmatpush2.bf16.msra.mxu0 %v3674
    %4599 = vmatprep.subr.bf16.mxu0 %v3671
    %4600 = vmatpush2.bf16.msra.mxu0 %v3670
    %4601 = vmatprep.subr.bf16.mxu0 %v3667
    %4602 = vmatpush2.bf16.msra.mxu0 %v3666
    %4603 = vmatprep.subr.bf16.mxu0 %v3663
    %4604 = vmatpush2.bf16.msra.mxu0 %v3662
    %4605 = vmatprep.subr.bf16.mxu0 %v3659
    %4606 = vmatpush2.bf16.msra.mxu0 %v3658
    %4607 = vmatprep.subr.bf16.mxu0 %v3655
    %4608 = vmatpush2.bf16.msra.mxu0 %v3654
    %4609 = vmatprep.mubr.bf16.mxu0 %v1351
    %4610 = vmatmul.mubr.bf16.gmra.mxu0 %v1350
    %v4611 = vpop.f32.mrf.mxu0
    %v4612 = vadd.f32 %v4571, %v4611
    %v4613 = vpop.f32.mrf.mxu0
    %v4614 = vadd.f32 %v4573, %v4613
    %v4615 = vpop.f32.mrf.mxu0
    %v4616 = vpop.f32.mrf.mxu0
    %4617 = vdwg.mxu0
    %4618 = vmatprep.subr.bf16.mxu0 %v3715
    %4619 = vmatpush1.bf16.msra.mxu0 %v3714
    %4620 = vmatprep.subr.bf16.mxu0 %v3711
    %4621 = vmatpush1.bf16.msra.mxu0 %v3710
    %4622 = vmatprep.subr.bf16.mxu0 %v3707
    %4623 = vmatpush1.bf16.msra.mxu0 %v3706
    %4624 = vmatprep.subr.bf16.mxu0 %v3703
    %4625 = vmatpush1.bf16.msra.mxu0 %v3702
    %4626 = vmatprep.subr.bf16.mxu0 %v3699
    %4627 = vmatpush1.bf16.msra.mxu0 %v3698
    %4628 = vmatprep.subr.bf16.mxu0 %v3695
    %4629 = vmatpush1.bf16.msra.mxu0 %v3694
    %4630 = vmatprep.subr.bf16.mxu0 %v3691
    %4631 = vmatpush1.bf16.msra.mxu0 %v3690
    %4632 = vmatprep.subr.bf16.mxu0 %v3687
    %4633 = vmatpush1.bf16.msra.mxu0 %v3686
    %4634 = vmatprep.subr.bf16.mxu0 %v3747
    %4635 = vmatpush2.bf16.msra.mxu0 %v3746
    %4636 = vmatprep.subr.bf16.mxu0 %v3743
    %4637 = vmatpush2.bf16.msra.mxu0 %v3742
    %4638 = vmatprep.subr.bf16.mxu0 %v3739
    %4639 = vmatpush2.bf16.msra.mxu0 %v3738
    %4640 = vmatprep.subr.bf16.mxu0 %v3735
    %4641 = vmatpush2.bf16.msra.mxu0 %v3734
    %4642 = vmatprep.subr.bf16.mxu0 %v3731
    %4643 = vmatpush2.bf16.msra.mxu0 %v3730
    %4644 = vmatprep.subr.bf16.mxu0 %v3727
    %4645 = vmatpush2.bf16.msra.mxu0 %v3726
    %4646 = vmatprep.subr.bf16.mxu0 %v3723
    %4647 = vmatpush2.bf16.msra.mxu0 %v3722
    %4648 = vmatprep.subr.bf16.mxu0 %v3719
    %4649 = vmatpush2.bf16.msra.mxu0 %v3718
    %4650 = vmatprep.mubr.bf16.mxu0 %v1353
    %4651 = vmatmul.mubr.bf16.gmra.mxu0 %v1352
    %v4652 = vpop.f32.mrf.mxu0
    %v4653 = vadd.f32 %v4612, %v4652
    %v4654 = vpop.f32.mrf.mxu0
    %v4655 = vadd.f32 %v4614, %v4654
    %v4656 = vpop.f32.mrf.mxu0
    %v4657 = vpop.f32.mrf.mxu0
    %4658 = vdwg.mxu0
    %4659 = vmatprep.subr.bf16.mxu0 %v3779
    %4660 = vmatpush1.bf16.msra.mxu0 %v3778
    %4661 = vmatprep.subr.bf16.mxu0 %v3775
    %4662 = vmatpush1.bf16.msra.mxu0 %v3774
    %4663 = vmatprep.subr.bf16.mxu0 %v3771
    %4664 = vmatpush1.bf16.msra.mxu0 %v3770
    %4665 = vmatprep.subr.bf16.mxu0 %v3767
    %4666 = vmatpush1.bf16.msra.mxu0 %v3766
    %4667 = vmatprep.subr.bf16.mxu0 %v3763
    %4668 = vmatpush1.bf16.msra.mxu0 %v3762
    %4669 = vmatprep.subr.bf16.mxu0 %v3759
    %4670 = vmatpush1.bf16.msra.mxu0 %v3758
    %4671 = vmatprep.subr.bf16.mxu0 %v3755
    %4672 = vmatpush1.bf16.msra.mxu0 %v3754
    %4673 = vmatprep.subr.bf16.mxu0 %v3751
    %4674 = vmatpush1.bf16.msra.mxu0 %v3750
    %4675 = vmatprep.subr.bf16.mxu0 %v3811
    %4676 = vmatpush2.bf16.msra.mxu0 %v3810
    %4677 = vmatprep.subr.bf16.mxu0 %v3807
    %4678 = vmatpush2.bf16.msra.mxu0 %v3806
    %4679 = vmatprep.subr.bf16.mxu0 %v3803
    %4680 = vmatpush2.bf16.msra.mxu0 %v3802
    %4681 = vmatprep.subr.bf16.mxu0 %v3799
    %4682 = vmatpush2.bf16.msra.mxu0 %v3798
    %4683 = vmatprep.subr.bf16.mxu0 %v3795
    %4684 = vmatpush2.bf16.msra.mxu0 %v3794
    %4685 = vmatprep.subr.bf16.mxu0 %v3791
    %4686 = vmatpush2.bf16.msra.mxu0 %v3790
    %4687 = vmatprep.subr.bf16.mxu0 %v3787
    %4688 = vmatpush2.bf16.msra.mxu0 %v3786
    %4689 = vmatprep.subr.bf16.mxu0 %v3783
    %4690 = vmatpush2.bf16.msra.mxu0 %v3782
    %4691 = vmatprep.mubr.bf16.mxu0 %v1355
    %4692 = vmatmul.mubr.bf16.gmra.mxu0 %v1354
    %v4693 = vpop.f32.mrf.mxu0
    %v4694 = vadd.f32 %v4653, %v4693
    %v4695 = vpop.f32.mrf.mxu0
    %v4696 = vadd.f32 %v4655, %v4695
    %v4697 = vpop.f32.mrf.mxu0
    %v4698 = vpop.f32.mrf.mxu0
    %4699 = vdwg.mxu0
    %4700 = vmatprep.subr.bf16.mxu0 %v3843
    %4701 = vmatpush1.bf16.msra.mxu0 %v3842
    %4702 = vmatprep.subr.bf16.mxu0 %v3839
    %4703 = vmatpush1.bf16.msra.mxu0 %v3838
    %4704 = vmatprep.subr.bf16.mxu0 %v3835
    %4705 = vmatpush1.bf16.msra.mxu0 %v3834
    %4706 = vmatprep.subr.bf16.mxu0 %v3831
    %4707 = vmatpush1.bf16.msra.mxu0 %v3830
    %4708 = vmatprep.subr.bf16.mxu0 %v3827
    %4709 = vmatpush1.bf16.msra.mxu0 %v3826
    %4710 = vmatprep.subr.bf16.mxu0 %v3823
    %4711 = vmatpush1.bf16.msra.mxu0 %v3822
    %4712 = vmatprep.subr.bf16.mxu0 %v3819
    %4713 = vmatpush1.bf16.msra.mxu0 %v3818
    %4714 = vmatprep.subr.bf16.mxu0 %v3815
    %4715 = vmatpush1.bf16.msra.mxu0 %v3814
    %4716 = vmatprep.subr.bf16.mxu0 %v3875
    %4717 = vmatpush2.bf16.msra.mxu0 %v3874
    %4718 = vmatprep.subr.bf16.mxu0 %v3871
    %4719 = vmatpush2.bf16.msra.mxu0 %v3870
    %4720 = vmatprep.subr.bf16.mxu0 %v3867
    %4721 = vmatpush2.bf16.msra.mxu0 %v3866
    %4722 = vmatprep.subr.bf16.mxu0 %v3863
    %4723 = vmatpush2.bf16.msra.mxu0 %v3862
    %4724 = vmatprep.subr.bf16.mxu0 %v3859
    %4725 = vmatpush2.bf16.msra.mxu0 %v3858
    %4726 = vmatprep.subr.bf16.mxu0 %v3855
    %4727 = vmatpush2.bf16.msra.mxu0 %v3854
    %4728 = vmatprep.subr.bf16.mxu0 %v3851
    %4729 = vmatpush2.bf16.msra.mxu0 %v3850
    %4730 = vmatprep.subr.bf16.mxu0 %v3847
    %4731 = vmatpush2.bf16.msra.mxu0 %v3846
    %4732 = vmatprep.mubr.bf16.mxu0 %v1357
    %4733 = vmatmul.mubr.bf16.gmra.mxu0 %v1356
    %v4734 = vpop.f32.mrf.mxu0
    %v4735 = vadd.f32 %v4694, %v4734
    %v4736 = vpop.f32.mrf.mxu0
    %v4737 = vadd.f32 %v4696, %v4736
    %v4738 = vpop.f32.mrf.mxu0
    %v4739 = vpop.f32.mrf.mxu0
    %4740 = vdwg.mxu0
    %4741 = vmatprep.subr.bf16.mxu0 %v3907
    %4742 = vmatpush1.bf16.msra.mxu0 %v3906
    %4743 = vmatprep.subr.bf16.mxu0 %v3903
    %4744 = vmatpush1.bf16.msra.mxu0 %v3902
    %4745 = vmatprep.subr.bf16.mxu0 %v3899
    %4746 = vmatpush1.bf16.msra.mxu0 %v3898
    %4747 = vmatprep.subr.bf16.mxu0 %v3895
    %4748 = vmatpush1.bf16.msra.mxu0 %v3894
    %4749 = vmatprep.subr.bf16.mxu0 %v3891
    %4750 = vmatpush1.bf16.msra.mxu0 %v3890
    %4751 = vmatprep.subr.bf16.mxu0 %v3887
    %4752 = vmatpush1.bf16.msra.mxu0 %v3886
    %4753 = vmatprep.subr.bf16.mxu0 %v3883
    %4754 = vmatpush1.bf16.msra.mxu0 %v3882
    %4755 = vmatprep.subr.bf16.mxu0 %v3879
    %4756 = vmatpush1.bf16.msra.mxu0 %v3878
    %4757 = vmatprep.subr.bf16.mxu0 %v3939
    %4758 = vmatpush2.bf16.msra.mxu0 %v3938
    %4759 = vmatprep.subr.bf16.mxu0 %v3935
    %4760 = vmatpush2.bf16.msra.mxu0 %v3934
    %4761 = vmatprep.subr.bf16.mxu0 %v3931
    %4762 = vmatpush2.bf16.msra.mxu0 %v3930
    %4763 = vmatprep.subr.bf16.mxu0 %v3927
    %4764 = vmatpush2.bf16.msra.mxu0 %v3926
    %4765 = vmatprep.subr.bf16.mxu0 %v3923
    %4766 = vmatpush2.bf16.msra.mxu0 %v3922
    %4767 = vmatprep.subr.bf16.mxu0 %v3919
    %4768 = vmatpush2.bf16.msra.mxu0 %v3918
    %4769 = vmatprep.subr.bf16.mxu0 %v3915
    %4770 = vmatpush2.bf16.msra.mxu0 %v3914
    %4771 = vmatprep.subr.bf16.mxu0 %v3911
    %4772 = vmatpush2.bf16.msra.mxu0 %v3910
    %4773 = vmatprep.mubr.bf16.mxu0 %v1359
    %4774 = vmatmul.mubr.bf16.gmra.mxu0 %v1358
    %v4775 = vpop.f32.mrf.mxu0
    %v4776 = vadd.f32 %v4735, %v4775
    %v4777 = vpop.f32.mrf.mxu0
    %v4778 = vadd.f32 %v4737, %v4777
    %v4779 = vpop.f32.mrf.mxu0
    %v4780 = vpop.f32.mrf.mxu0
    %4781 = vdwg.mxu0
    %4782 = vmatprep.subr.bf16.mxu0 %v3461
    %4783 = vmatpush1.bf16.msra.mxu0 %v3460
    %4784 = vmatprep.subr.bf16.mxu0 %v3457
    %4785 = vmatpush1.bf16.msra.mxu0 %v3456
    %4786 = vmatprep.subr.bf16.mxu0 %v3453
    %4787 = vmatpush1.bf16.msra.mxu0 %v3452
    %4788 = vmatprep.subr.bf16.mxu0 %v3449
    %4789 = vmatpush1.bf16.msra.mxu0 %v3448
    %4790 = vmatprep.subr.bf16.mxu0 %v3445
    %4791 = vmatpush1.bf16.msra.mxu0 %v3444
    %4792 = vmatprep.subr.bf16.mxu0 %v3441
    %4793 = vmatpush1.bf16.msra.mxu0 %v3440
    %4794 = vmatprep.subr.bf16.mxu0 %v3437
    %4795 = vmatpush1.bf16.msra.mxu0 %v3436
    %4796 = vmatprep.subr.bf16.mxu0 %v3433
    %4797 = vmatpush1.bf16.msra.mxu0 %v3432
    %4798 = vmatprep.subr.bf16.mxu0 %v3493
    %4799 = vmatpush2.bf16.msra.mxu0 %v3492
    %4800 = vmatprep.subr.bf16.mxu0 %v3489
    %4801 = vmatpush2.bf16.msra.mxu0 %v3488
    %4802 = vmatprep.subr.bf16.mxu0 %v3485
    %4803 = vmatpush2.bf16.msra.mxu0 %v3484
    %4804 = vmatprep.subr.bf16.mxu0 %v3481
    %4805 = vmatpush2.bf16.msra.mxu0 %v3480
    %4806 = vmatprep.subr.bf16.mxu0 %v3477
    %4807 = vmatpush2.bf16.msra.mxu0 %v3476
    %4808 = vmatprep.subr.bf16.mxu0 %v3473
    %4809 = vmatpush2.bf16.msra.mxu0 %v3472
    %4810 = vmatprep.subr.bf16.mxu0 %v3469
    %4811 = vmatpush2.bf16.msra.mxu0 %v3468
    %4812 = vmatprep.subr.bf16.mxu0 %v3465
    %4813 = vmatpush2.bf16.msra.mxu0 %v3464
    %4814 = vmatprep.mubr.bf16.mxu0 %v1345
    %4815 = vmatmul.mubr.bf16.gmra.mxu0 %v1344
    %v4816 = vpop.f32.mrf.mxu0
    %v4817 = vadd.f32 %v1885, %v4816
    %v4818 = vpop.f32.mrf.mxu0
    %v4819 = vadd.f32 %v1889, %v4818
    %v4820 = vpop.f32.mrf.mxu0
    %v4821 = vpop.f32.mrf.mxu0
    %4822 = vdwg.mxu0
    %4823 = vmatprep.subr.bf16.mxu0 %v3525
    %4824 = vmatpush1.bf16.msra.mxu0 %v3524
    %4825 = vmatprep.subr.bf16.mxu0 %v3521
    %4826 = vmatpush1.bf16.msra.mxu0 %v3520
    %4827 = vmatprep.subr.bf16.mxu0 %v3517
    %4828 = vmatpush1.bf16.msra.mxu0 %v3516
    %4829 = vmatprep.subr.bf16.mxu0 %v3513
    %4830 = vmatpush1.bf16.msra.mxu0 %v3512
    %4831 = vmatprep.subr.bf16.mxu0 %v3509
    %4832 = vmatpush1.bf16.msra.mxu0 %v3508
    %4833 = vmatprep.subr.bf16.mxu0 %v3505
    %4834 = vmatpush1.bf16.msra.mxu0 %v3504
    %4835 = vmatprep.subr.bf16.mxu0 %v3501
    %4836 = vmatpush1.bf16.msra.mxu0 %v3500
    %4837 = vmatprep.subr.bf16.mxu0 %v3497
    %4838 = vmatpush1.bf16.msra.mxu0 %v3496
    %4839 = vmatprep.subr.bf16.mxu0 %v3557
    %4840 = vmatpush2.bf16.msra.mxu0 %v3556
    %4841 = vmatprep.subr.bf16.mxu0 %v3553
    %4842 = vmatpush2.bf16.msra.mxu0 %v3552
    %4843 = vmatprep.subr.bf16.mxu0 %v3549
    %4844 = vmatpush2.bf16.msra.mxu0 %v3548
    %4845 = vmatprep.subr.bf16.mxu0 %v3545
    %4846 = vmatpush2.bf16.msra.mxu0 %v3544
    %4847 = vmatprep.subr.bf16.mxu0 %v3541
    %4848 = vmatpush2.bf16.msra.mxu0 %v3540
    %4849 = vmatprep.subr.bf16.mxu0 %v3537
    %4850 = vmatpush2.bf16.msra.mxu0 %v3536
    %4851 = vmatprep.subr.bf16.mxu0 %v3533
    %4852 = vmatpush2.bf16.msra.mxu0 %v3532
    %4853 = vmatprep.subr.bf16.mxu0 %v3529
    %4854 = vmatpush2.bf16.msra.mxu0 %v3528
    %4855 = vmatprep.mubr.bf16.mxu0 %v1347
    %4856 = vmatmul.mubr.bf16.gmra.mxu0 %v1346
    %v4857 = vpop.f32.mrf.mxu0
    %v4858 = vadd.f32 %v4817, %v4857
    %v4859 = vpop.f32.mrf.mxu0
    %v4860 = vadd.f32 %v4819, %v4859
    %v4861 = vpop.f32.mrf.mxu0
    %v4862 = vpop.f32.mrf.mxu0
    %4863 = vdwg.mxu0
    %4864 = vmatprep.subr.bf16.mxu0 %v3589
    %4865 = vmatpush1.bf16.msra.mxu0 %v3588
    %4866 = vmatprep.subr.bf16.mxu0 %v3585
    %4867 = vmatpush1.bf16.msra.mxu0 %v3584
    %4868 = vmatprep.subr.bf16.mxu0 %v3581
    %4869 = vmatpush1.bf16.msra.mxu0 %v3580
    %4870 = vmatprep.subr.bf16.mxu0 %v3577
    %4871 = vmatpush1.bf16.msra.mxu0 %v3576
    %4872 = vmatprep.subr.bf16.mxu0 %v3573
    %4873 = vmatpush1.bf16.msra.mxu0 %v3572
    %4874 = vmatprep.subr.bf16.mxu0 %v3569
    %4875 = vmatpush1.bf16.msra.mxu0 %v3568
    %4876 = vmatprep.subr.bf16.mxu0 %v3565
    %4877 = vmatpush1.bf16.msra.mxu0 %v3564
    %4878 = vmatprep.subr.bf16.mxu0 %v3561
    %4879 = vmatpush1.bf16.msra.mxu0 %v3560
    %4880 = vmatprep.subr.bf16.mxu0 %v3621
    %4881 = vmatpush2.bf16.msra.mxu0 %v3620
    %4882 = vmatprep.subr.bf16.mxu0 %v3617
    %4883 = vmatpush2.bf16.msra.mxu0 %v3616
    %4884 = vmatprep.subr.bf16.mxu0 %v3613
    %4885 = vmatpush2.bf16.msra.mxu0 %v3612
    %4886 = vmatprep.subr.bf16.mxu0 %v3609
    %4887 = vmatpush2.bf16.msra.mxu0 %v3608
    %4888 = vmatprep.subr.bf16.mxu0 %v3605
    %4889 = vmatpush2.bf16.msra.mxu0 %v3604
    %4890 = vmatprep.subr.bf16.mxu0 %v3601
    %4891 = vmatpush2.bf16.msra.mxu0 %v3600
    %4892 = vmatprep.subr.bf16.mxu0 %v3597
    %4893 = vmatpush2.bf16.msra.mxu0 %v3596
    %4894 = vmatprep.subr.bf16.mxu0 %v3593
    %4895 = vmatpush2.bf16.msra.mxu0 %v3592
    %4896 = vmatprep.mubr.bf16.mxu0 %v1349
    %4897 = vmatmul.mubr.bf16.gmra.mxu0 %v1348
    %v4898 = vpop.f32.mrf.mxu0
    %v4899 = vadd.f32 %v4858, %v4898
    %v4900 = vpop.f32.mrf.mxu0
    %v4901 = vadd.f32 %v4860, %v4900
    %v4902 = vpop.f32.mrf.mxu0
    %v4903 = vpop.f32.mrf.mxu0
    %4904 = vdwg.mxu0
    %4905 = vmatprep.subr.bf16.mxu0 %v3653
    %4906 = vmatpush1.bf16.msra.mxu0 %v3652
    %4907 = vmatprep.subr.bf16.mxu0 %v3649
    %4908 = vmatpush1.bf16.msra.mxu0 %v3648
    %4909 = vmatprep.subr.bf16.mxu0 %v3645
    %4910 = vmatpush1.bf16.msra.mxu0 %v3644
    %4911 = vmatprep.subr.bf16.mxu0 %v3641
    %4912 = vmatpush1.bf16.msra.mxu0 %v3640
    %4913 = vmatprep.subr.bf16.mxu0 %v3637
    %4914 = vmatpush1.bf16.msra.mxu0 %v3636
    %4915 = vmatprep.subr.bf16.mxu0 %v3633
    %4916 = vmatpush1.bf16.msra.mxu0 %v3632
    %4917 = vmatprep.subr.bf16.mxu0 %v3629
    %4918 = vmatpush1.bf16.msra.mxu0 %v3628
    %4919 = vmatprep.subr.bf16.mxu0 %v3625
    %4920 = vmatpush1.bf16.msra.mxu0 %v3624
    %4921 = vmatprep.subr.bf16.mxu0 %v3685
    %4922 = vmatpush2.bf16.msra.mxu0 %v3684
    %4923 = vmatprep.subr.bf16.mxu0 %v3681
    %4924 = vmatpush2.bf16.msra.mxu0 %v3680
    %4925 = vmatprep.subr.bf16.mxu0 %v3677
    %4926 = vmatpush2.bf16.msra.mxu0 %v3676
    %4927 = vmatprep.subr.bf16.mxu0 %v3673
    %4928 = vmatpush2.bf16.msra.mxu0 %v3672
    %4929 = vmatprep.subr.bf16.mxu0 %v3669
    %4930 = vmatpush2.bf16.msra.mxu0 %v3668
    %4931 = vmatprep.subr.bf16.mxu0 %v3665
    %4932 = vmatpush2.bf16.msra.mxu0 %v3664
    %4933 = vmatprep.subr.bf16.mxu0 %v3661
    %4934 = vmatpush2.bf16.msra.mxu0 %v3660
    %4935 = vmatprep.subr.bf16.mxu0 %v3657
    %4936 = vmatpush2.bf16.msra.mxu0 %v3656
    %4937 = vmatprep.mubr.bf16.mxu0 %v1351
    %4938 = vmatmul.mubr.bf16.gmra.mxu0 %v1350
    %v4939 = vpop.f32.mrf.mxu0
    %v4940 = vadd.f32 %v4899, %v4939
    %v4941 = vpop.f32.mrf.mxu0
    %v4942 = vadd.f32 %v4901, %v4941
    %v4943 = vpop.f32.mrf.mxu0
    %v4944 = vpop.f32.mrf.mxu0
    %4945 = vdwg.mxu0
    %4946 = vmatprep.subr.bf16.mxu0 %v3717
    %4947 = vmatpush1.bf16.msra.mxu0 %v3716
    %4948 = vmatprep.subr.bf16.mxu0 %v3713
    %4949 = vmatpush1.bf16.msra.mxu0 %v3712
    %4950 = vmatprep.subr.bf16.mxu0 %v3709
    %4951 = vmatpush1.bf16.msra.mxu0 %v3708
    %4952 = vmatprep.subr.bf16.mxu0 %v3705
    %4953 = vmatpush1.bf16.msra.mxu0 %v3704
    %4954 = vmatprep.subr.bf16.mxu0 %v3701
    %4955 = vmatpush1.bf16.msra.mxu0 %v3700
    %4956 = vmatprep.subr.bf16.mxu0 %v3697
    %4957 = vmatpush1.bf16.msra.mxu0 %v3696
    %4958 = vmatprep.subr.bf16.mxu0 %v3693
    %4959 = vmatpush1.bf16.msra.mxu0 %v3692
    %4960 = vmatprep.subr.bf16.mxu0 %v3689
    %4961 = vmatpush1.bf16.msra.mxu0 %v3688
    %4962 = vmatprep.subr.bf16.mxu0 %v3749
    %4963 = vmatpush2.bf16.msra.mxu0 %v3748
    %4964 = vmatprep.subr.bf16.mxu0 %v3745
    %4965 = vmatpush2.bf16.msra.mxu0 %v3744
    %4966 = vmatprep.subr.bf16.mxu0 %v3741
    %4967 = vmatpush2.bf16.msra.mxu0 %v3740
    %4968 = vmatprep.subr.bf16.mxu0 %v3737
    %4969 = vmatpush2.bf16.msra.mxu0 %v3736
    %4970 = vmatprep.subr.bf16.mxu0 %v3733
    %4971 = vmatpush2.bf16.msra.mxu0 %v3732
    %4972 = vmatprep.subr.bf16.mxu0 %v3729
    %4973 = vmatpush2.bf16.msra.mxu0 %v3728
    %4974 = vmatprep.subr.bf16.mxu0 %v3725
    %4975 = vmatpush2.bf16.msra.mxu0 %v3724
    %4976 = vmatprep.subr.bf16.mxu0 %v3721
    %4977 = vmatpush2.bf16.msra.mxu0 %v3720
    %4978 = vmatprep.mubr.bf16.mxu0 %v1353
    %4979 = vmatmul.mubr.bf16.gmra.mxu0 %v1352
    %v4980 = vpop.f32.mrf.mxu0
    %v4981 = vadd.f32 %v4940, %v4980
    %v4982 = vpop.f32.mrf.mxu0
    %v4983 = vadd.f32 %v4942, %v4982
    %v4984 = vpop.f32.mrf.mxu0
    %v4985 = vpop.f32.mrf.mxu0
    %4986 = vdwg.mxu0
    %4987 = vmatprep.subr.bf16.mxu0 %v3781
    %4988 = vmatpush1.bf16.msra.mxu0 %v3780
    %4989 = vmatprep.subr.bf16.mxu0 %v3777
    %4990 = vmatpush1.bf16.msra.mxu0 %v3776
    %4991 = vmatprep.subr.bf16.mxu0 %v3773
    %4992 = vmatpush1.bf16.msra.mxu0 %v3772
    %4993 = vmatprep.subr.bf16.mxu0 %v3769
    %4994 = vmatpush1.bf16.msra.mxu0 %v3768
    %4995 = vmatprep.subr.bf16.mxu0 %v3765
    %4996 = vmatpush1.bf16.msra.mxu0 %v3764
    %4997 = vmatprep.subr.bf16.mxu0 %v3761
    %4998 = vmatpush1.bf16.msra.mxu0 %v3760
    %4999 = vmatprep.subr.bf16.mxu0 %v3757
    %5000 = vmatpush1.bf16.msra.mxu0 %v3756
    %5001 = vmatprep.subr.bf16.mxu0 %v3753
    %5002 = vmatpush1.bf16.msra.mxu0 %v3752
    %5003 = vmatprep.subr.bf16.mxu0 %v3813
    %5004 = vmatpush2.bf16.msra.mxu0 %v3812
    %5005 = vmatprep.subr.bf16.mxu0 %v3809
    %5006 = vmatpush2.bf16.msra.mxu0 %v3808
    %5007 = vmatprep.subr.bf16.mxu0 %v3805
    %5008 = vmatpush2.bf16.msra.mxu0 %v3804
    %5009 = vmatprep.subr.bf16.mxu0 %v3801
    %5010 = vmatpush2.bf16.msra.mxu0 %v3800
    %5011 = vmatprep.subr.bf16.mxu0 %v3797
    %5012 = vmatpush2.bf16.msra.mxu0 %v3796
    %5013 = vmatprep.subr.bf16.mxu0 %v3793
    %5014 = vmatpush2.bf16.msra.mxu0 %v3792
    %5015 = vmatprep.subr.bf16.mxu0 %v3789
    %5016 = vmatpush2.bf16.msra.mxu0 %v3788
    %5017 = vmatprep.subr.bf16.mxu0 %v3785
    %5018 = vmatpush2.bf16.msra.mxu0 %v3784
    %5019 = vmatprep.mubr.bf16.mxu0 %v1355
    %5020 = vmatmul.mubr.bf16.gmra.mxu0 %v1354
    %v5021 = vpop.f32.mrf.mxu0
    %v5022 = vadd.f32 %v4981, %v5021
    %v5023 = vpop.f32.mrf.mxu0
    %v5024 = vadd.f32 %v4983, %v5023
    %v5025 = vpop.f32.mrf.mxu0
    %v5026 = vpop.f32.mrf.mxu0
    %5027 = vdwg.mxu0
    %5028 = vmatprep.subr.bf16.mxu0 %v3845
    %5029 = vmatpush1.bf16.msra.mxu0 %v3844
    %5030 = vmatprep.subr.bf16.mxu0 %v3841
    %5031 = vmatpush1.bf16.msra.mxu0 %v3840
    %5032 = vmatprep.subr.bf16.mxu0 %v3837
    %5033 = vmatpush1.bf16.msra.mxu0 %v3836
    %5034 = vmatprep.subr.bf16.mxu0 %v3833
    %5035 = vmatpush1.bf16.msra.mxu0 %v3832
    %5036 = vmatprep.subr.bf16.mxu0 %v3829
    %5037 = vmatpush1.bf16.msra.mxu0 %v3828
    %5038 = vmatprep.subr.bf16.mxu0 %v3825
    %5039 = vmatpush1.bf16.msra.mxu0 %v3824
    %5040 = vmatprep.subr.bf16.mxu0 %v3821
    %5041 = vmatpush1.bf16.msra.mxu0 %v3820
    %5042 = vmatprep.subr.bf16.mxu0 %v3817
    %5043 = vmatpush1.bf16.msra.mxu0 %v3816
    %5044 = vmatprep.subr.bf16.mxu0 %v3877
    %5045 = vmatpush2.bf16.msra.mxu0 %v3876
    %5046 = vmatprep.subr.bf16.mxu0 %v3873
    %5047 = vmatpush2.bf16.msra.mxu0 %v3872
    %5048 = vmatprep.subr.bf16.mxu0 %v3869
    %5049 = vmatpush2.bf16.msra.mxu0 %v3868
    %5050 = vmatprep.subr.bf16.mxu0 %v3865
    %5051 = vmatpush2.bf16.msra.mxu0 %v3864
    %5052 = vmatprep.subr.bf16.mxu0 %v3861
    %5053 = vmatpush2.bf16.msra.mxu0 %v3860
    %5054 = vmatprep.subr.bf16.mxu0 %v3857
    %5055 = vmatpush2.bf16.msra.mxu0 %v3856
    %5056 = vmatprep.subr.bf16.mxu0 %v3853
    %5057 = vmatpush2.bf16.msra.mxu0 %v3852
    %5058 = vmatprep.subr.bf16.mxu0 %v3849
    %5059 = vmatpush2.bf16.msra.mxu0 %v3848
    %5060 = vmatprep.mubr.bf16.mxu0 %v1357
    %5061 = vmatmul.mubr.bf16.gmra.mxu0 %v1356
    %v5062 = vpop.f32.mrf.mxu0
    %v5063 = vadd.f32 %v5022, %v5062
    %v5064 = vpop.f32.mrf.mxu0
    %v5065 = vadd.f32 %v5024, %v5064
    %v5066 = vpop.f32.mrf.mxu0
    %v5067 = vpop.f32.mrf.mxu0
    %5068 = vdwg.mxu0
    %5069 = vmatprep.subr.bf16.mxu0 %v3909
    %5070 = vmatpush1.bf16.msra.mxu0 %v3908
    %5071 = vmatprep.subr.bf16.mxu0 %v3905
    %5072 = vmatpush1.bf16.msra.mxu0 %v3904
    %5073 = vmatprep.subr.bf16.mxu0 %v3901
    %5074 = vmatpush1.bf16.msra.mxu0 %v3900
    %5075 = vmatprep.subr.bf16.mxu0 %v3897
    %5076 = vmatpush1.bf16.msra.mxu0 %v3896
    %5077 = vmatprep.subr.bf16.mxu0 %v3893
    %5078 = vmatpush1.bf16.msra.mxu0 %v3892
    %5079 = vmatprep.subr.bf16.mxu0 %v3889
    %5080 = vmatpush1.bf16.msra.mxu0 %v3888
    %5081 = vmatprep.subr.bf16.mxu0 %v3885
    %5082 = vmatpush1.bf16.msra.mxu0 %v3884
    %5083 = vmatprep.subr.bf16.mxu0 %v3881
    %5084 = vmatpush1.bf16.msra.mxu0 %v3880
    %5085 = vmatprep.subr.bf16.mxu0 %v3941
    %5086 = vmatpush2.bf16.msra.mxu0 %v3940
    %5087 = vmatprep.subr.bf16.mxu0 %v3937
    %5088 = vmatpush2.bf16.msra.mxu0 %v3936
    %5089 = vmatprep.subr.bf16.mxu0 %v3933
    %5090 = vmatpush2.bf16.msra.mxu0 %v3932
    %5091 = vmatprep.subr.bf16.mxu0 %v3929
    %5092 = vmatpush2.bf16.msra.mxu0 %v3928
    %5093 = vmatprep.subr.bf16.mxu0 %v3925
    %5094 = vmatpush2.bf16.msra.mxu0 %v3924
    %5095 = vmatprep.subr.bf16.mxu0 %v3921
    %5096 = vmatpush2.bf16.msra.mxu0 %v3920
    %5097 = vmatprep.subr.bf16.mxu0 %v3917
    %5098 = vmatpush2.bf16.msra.mxu0 %v3916
    %5099 = vmatprep.subr.bf16.mxu0 %v3913
    %5100 = vmatpush2.bf16.msra.mxu0 %v3912
    %5101 = vmatprep.mubr.bf16.mxu0 %v1359
    %5102 = vmatmul.mubr.bf16.gmra.mxu0 %v1358
    %v5103 = vpop.f32.mrf.mxu0
    %v5104 = vadd.f32 %v5063, %v5103
    %v5105 = vpop.f32.mrf.mxu0
    %v5106 = vadd.f32 %v5065, %v5105
    %v5107 = vpop.f32.mrf.mxu0
    %v5108 = vpop.f32.mrf.mxu0
    %5109 = vdwg.mxu0
    %v5110 = vmax.f32 %v4776, 0.0
    %v5111 = vmax.f32 %v4778, 0.0
    %v5112 = vmax.f32 %v5104, 0.0
    %v5113 = vmax.f32 %v5106, 0.0
    %v5114 = vpack.c.bf16 %v5110, %v5110
    %v5115 = vpack.c.bf16 %v5111, %v5111
    %v5116 = vpack.c.bf16 %v5112, %v5112
    %v5117 = vpack.c.bf16 %v5113, %v5113
    %v5118 = vld [vmem:[#allocation11] sm:$0xff]
    %v5119 = vld [vmem:[#allocation11 + $0x8] sm:$0xff]
    %v5120 = vld [vmem:[#allocation11 + $0x10] sm:$0xff]
    %v5121 = vld [vmem:[#allocation11 + $0x18] sm:$0xff]
    %v5122 = vld [vmem:[#allocation11 + $0x20] sm:$0xff]
    %v5123 = vld [vmem:[#allocation11 + $0x28] sm:$0xff]
    %v5124 = vld [vmem:[#allocation11 + $0x30] sm:$0xff]
    %v5125 = vld [vmem:[#allocation11 + $0x38] sm:$0xff]
    %v5126 = vld [vmem:[#allocation11 + $0x40] sm:$0xff]
    %v5127 = vld [vmem:[#allocation11 + $0x48] sm:$0xff]
    %v5128 = vld [vmem:[#allocation11 + $0x50] sm:$0xff]
    %v5129 = vld [vmem:[#allocation11 + $0x58] sm:$0xff]
    %v5130 = vld [vmem:[#allocation11 + $0x60] sm:$0xff]
    %v5131 = vld [vmem:[#allocation11 + $0x68] sm:$0xff]
    %v5132 = vld [vmem:[#allocation11 + $0x70] sm:$0xff]
    %v5133 = vld [vmem:[#allocation11 + $0x78] sm:$0xff]
    %v5134 = vld [vmem:[#allocation11 + $0x80] sm:$0xff]
    %v5135 = vld [vmem:[#allocation11 + $0x88] sm:$0xff]
    %v5136 = vld [vmem:[#allocation11 + $0x90] sm:$0xff]
    %v5137 = vld [vmem:[#allocation11 + $0x98] sm:$0xff]
    %v5138 = vld [vmem:[#allocation11 + $0xa0] sm:$0xff]
    %v5139 = vld [vmem:[#allocation11 + $0xa8] sm:$0xff]
    %v5140 = vld [vmem:[#allocation11 + $0xb0] sm:$0xff]
    %v5141 = vld [vmem:[#allocation11 + $0xb8] sm:$0xff]
    %v5142 = vld [vmem:[#allocation11 + $0xc0] sm:$0xff]
    %v5143 = vld [vmem:[#allocation11 + $0xc8] sm:$0xff]
    %v5144 = vld [vmem:[#allocation11 + $0xd0] sm:$0xff]
    %v5145 = vld [vmem:[#allocation11 + $0xd8] sm:$0xff]
    %v5146 = vld [vmem:[#allocation11 + $0xe0] sm:$0xff]
    %v5147 = vld [vmem:[#allocation11 + $0xe8] sm:$0xff]
    %v5148 = vld [vmem:[#allocation11 + $0xf0] sm:$0xff]
    %v5149 = vld [vmem:[#allocation11 + $0xf8] sm:$0xff]
    %v5150 = vld [vmem:[#allocation11 + $0x100] sm:$0xff]
    %v5151 = vld [vmem:[#allocation11 + $0x108] sm:$0xff]
    %v5152 = vld [vmem:[#allocation11 + $0x110] sm:$0xff]
    %v5153 = vld [vmem:[#allocation11 + $0x118] sm:$0xff]
    %v5154 = vld [vmem:[#allocation11 + $0x120] sm:$0xff]
    %v5155 = vld [vmem:[#allocation11 + $0x128] sm:$0xff]
    %v5156 = vld [vmem:[#allocation11 + $0x130] sm:$0xff]
    %v5157 = vld [vmem:[#allocation11 + $0x138] sm:$0xff]
    %v5158 = vld [vmem:[#allocation11 + $0x140] sm:$0xff]
    %v5159 = vld [vmem:[#allocation11 + $0x148] sm:$0xff]
    %v5160 = vld [vmem:[#allocation11 + $0x150] sm:$0xff]
    %v5161 = vld [vmem:[#allocation11 + $0x158] sm:$0xff]
    %v5162 = vld [vmem:[#allocation11 + $0x160] sm:$0xff]
    %v5163 = vld [vmem:[#allocation11 + $0x168] sm:$0xff]
    %v5164 = vld [vmem:[#allocation11 + $0x170] sm:$0xff]
    %v5165 = vld [vmem:[#allocation11 + $0x178] sm:$0xff]
    %v5166 = vld [vmem:[#allocation11 + $0x180] sm:$0xff]
    %v5167 = vld [vmem:[#allocation11 + $0x188] sm:$0xff]
    %v5168 = vld [vmem:[#allocation11 + $0x190] sm:$0xff]
    %v5169 = vld [vmem:[#allocation11 + $0x198] sm:$0xff]
    %v5170 = vld [vmem:[#allocation11 + $0x1a0] sm:$0xff]
    %v5171 = vld [vmem:[#allocation11 + $0x1a8] sm:$0xff]
    %v5172 = vld [vmem:[#allocation11 + $0x1b0] sm:$0xff]
    %v5173 = vld [vmem:[#allocation11 + $0x1b8] sm:$0xff]
    %v5174 = vld [vmem:[#allocation11 + $0x1c0] sm:$0xff]
    %v5175 = vld [vmem:[#allocation11 + $0x1c8] sm:$0xff]
    %v5176 = vld [vmem:[#allocation11 + $0x1d0] sm:$0xff]
    %v5177 = vld [vmem:[#allocation11 + $0x1d8] sm:$0xff]
    %v5178 = vld [vmem:[#allocation11 + $0x1e0] sm:$0xff]
    %v5179 = vld [vmem:[#allocation11 + $0x1e8] sm:$0xff]
    %v5180 = vld [vmem:[#allocation11 + $0x1f0] sm:$0xff]
    %v5181 = vld [vmem:[#allocation11 + $0x1f8] sm:$0xff]
    %v5182 = vld [vmem:[#allocation11 + $0x200] sm:$0xff]
    %v5183 = vld [vmem:[#allocation11 + $0x208] sm:$0xff]
    %v5184 = vld [vmem:[#allocation11 + $0x210] sm:$0xff]
    %v5185 = vld [vmem:[#allocation11 + $0x218] sm:$0xff]
    %v5186 = vld [vmem:[#allocation11 + $0x220] sm:$0xff]
    %v5187 = vld [vmem:[#allocation11 + $0x228] sm:$0xff]
    %v5188 = vld [vmem:[#allocation11 + $0x230] sm:$0xff]
    %v5189 = vld [vmem:[#allocation11 + $0x238] sm:$0xff]
    %v5190 = vld [vmem:[#allocation11 + $0x240] sm:$0xff]
    %v5191 = vld [vmem:[#allocation11 + $0x248] sm:$0xff]
    %v5192 = vld [vmem:[#allocation11 + $0x250] sm:$0xff]
    %v5193 = vld [vmem:[#allocation11 + $0x258] sm:$0xff]
    %v5194 = vld [vmem:[#allocation11 + $0x260] sm:$0xff]
    %v5195 = vld [vmem:[#allocation11 + $0x268] sm:$0xff]
    %v5196 = vld [vmem:[#allocation11 + $0x270] sm:$0xff]
    %v5197 = vld [vmem:[#allocation11 + $0x278] sm:$0xff]
    %v5198 = vld [vmem:[#allocation11 + $0x280] sm:$0xff]
    %v5199 = vld [vmem:[#allocation11 + $0x288] sm:$0xff]
    %v5200 = vld [vmem:[#allocation11 + $0x290] sm:$0xff]
    %v5201 = vld [vmem:[#allocation11 + $0x298] sm:$0xff]
    %v5202 = vld [vmem:[#allocation11 + $0x2a0] sm:$0xff]
    %v5203 = vld [vmem:[#allocation11 + $0x2a8] sm:$0xff]
    %v5204 = vld [vmem:[#allocation11 + $0x2b0] sm:$0xff]
    %v5205 = vld [vmem:[#allocation11 + $0x2b8] sm:$0xff]
    %v5206 = vld [vmem:[#allocation11 + $0x2c0] sm:$0xff]
    %v5207 = vld [vmem:[#allocation11 + $0x2c8] sm:$0xff]
    %v5208 = vld [vmem:[#allocation11 + $0x2d0] sm:$0xff]
    %v5209 = vld [vmem:[#allocation11 + $0x2d8] sm:$0xff]
    %v5210 = vld [vmem:[#allocation11 + $0x2e0] sm:$0xff]
    %v5211 = vld [vmem:[#allocation11 + $0x2e8] sm:$0xff]
    %v5212 = vld [vmem:[#allocation11 + $0x2f0] sm:$0xff]
    %v5213 = vld [vmem:[#allocation11 + $0x2f8] sm:$0xff]
    %v5214 = vld [vmem:[#allocation11 + $0x300] sm:$0xff]
    %v5215 = vld [vmem:[#allocation11 + $0x308] sm:$0xff]
    %v5216 = vld [vmem:[#allocation11 + $0x310] sm:$0xff]
    %v5217 = vld [vmem:[#allocation11 + $0x318] sm:$0xff]
    %v5218 = vld [vmem:[#allocation11 + $0x320] sm:$0xff]
    %v5219 = vld [vmem:[#allocation11 + $0x328] sm:$0xff]
    %v5220 = vld [vmem:[#allocation11 + $0x330] sm:$0xff]
    %v5221 = vld [vmem:[#allocation11 + $0x338] sm:$0xff]
    %v5222 = vld [vmem:[#allocation11 + $0x340] sm:$0xff]
    %v5223 = vld [vmem:[#allocation11 + $0x348] sm:$0xff]
    %v5224 = vld [vmem:[#allocation11 + $0x350] sm:$0xff]
    %v5225 = vld [vmem:[#allocation11 + $0x358] sm:$0xff]
    %v5226 = vld [vmem:[#allocation11 + $0x360] sm:$0xff]
    %v5227 = vld [vmem:[#allocation11 + $0x368] sm:$0xff]
    %v5228 = vld [vmem:[#allocation11 + $0x370] sm:$0xff]
    %v5229 = vld [vmem:[#allocation11 + $0x378] sm:$0xff]
    %v5230 = vld [vmem:[#allocation11 + $0x380] sm:$0xff]
    %v5231 = vld [vmem:[#allocation11 + $0x388] sm:$0xff]
    %v5232 = vld [vmem:[#allocation11 + $0x390] sm:$0xff]
    %v5233 = vld [vmem:[#allocation11 + $0x398] sm:$0xff]
    %v5234 = vld [vmem:[#allocation11 + $0x3a0] sm:$0xff]
    %v5235 = vld [vmem:[#allocation11 + $0x3a8] sm:$0xff]
    %v5236 = vld [vmem:[#allocation11 + $0x3b0] sm:$0xff]
    %v5237 = vld [vmem:[#allocation11 + $0x3b8] sm:$0xff]
    %v5238 = vld [vmem:[#allocation11 + $0x3c0] sm:$0xff]
    %v5239 = vld [vmem:[#allocation11 + $0x3c8] sm:$0xff]
    %v5240 = vld [vmem:[#allocation11 + $0x3d0] sm:$0xff]
    %v5241 = vld [vmem:[#allocation11 + $0x3d8] sm:$0xff]
    %v5242 = vld [vmem:[#allocation11 + $0x3e0] sm:$0xff]
    %v5243 = vld [vmem:[#allocation11 + $0x3e8] sm:$0xff]
    %v5244 = vld [vmem:[#allocation11 + $0x3f0] sm:$0xff]
    %v5245 = vld [vmem:[#allocation11 + $0x3f8] sm:$0xff]
    %v5246 = vld [vmem:[#allocation13] sm:$0xf]
    %v5248 = vlaneseq
    %v5249 = vshrl.u32 %v5248, 7
    %v5250 = vsub.s32 0, %v5249
    %v5251 = vrot.slane %v5246, %v5250
    %v5252 = vlaneseq
    %v5253 = vshrl.u32 %v5252, 7
    %v5254 = vsub.s32 1, %v5253
    %v5255 = vrot.slane %v5246, %v5254
    %v5256 = vlaneseq
    %v5257 = vshrl.u32 %v5256, 7
    %v5258 = vsub.s32 2, %v5257
    %v5259 = vrot.slane %v5246, %v5258
    %v5260 = vlaneseq
    %v5261 = vshrl.u32 %v5260, 7
    %v5262 = vsub.s32 3, %v5261
    %v5263 = vrot.slane %v5246, %v5262
    %v5396 = vunpack.c.l.b16 %v5118
    %v5397 = vunpack.c.h.b16 %v5118
    %v5398 = vunpack.c.l.b16 %v5119
    %v5399 = vunpack.c.h.b16 %v5119
    %v5400 = vunpack.c.l.b16 %v5120
    %v5401 = vunpack.c.h.b16 %v5120
    %v5402 = vunpack.c.l.b16 %v5121
    %v5403 = vunpack.c.h.b16 %v5121
    %v5404 = vunpack.c.l.b16 %v5122
    %v5405 = vunpack.c.h.b16 %v5122
    %v5406 = vunpack.c.l.b16 %v5123
    %v5407 = vunpack.c.h.b16 %v5123
    %v5408 = vunpack.c.l.b16 %v5124
    %v5409 = vunpack.c.h.b16 %v5124
    %v5410 = vunpack.c.l.b16 %v5125
    %v5411 = vunpack.c.h.b16 %v5125
    %v5412 = vunpack.c.l.b16 %v5126
    %v5413 = vunpack.c.h.b16 %v5126
    %v5414 = vunpack.c.l.b16 %v5127
    %v5415 = vunpack.c.h.b16 %v5127
    %v5416 = vunpack.c.l.b16 %v5128
    %v5417 = vunpack.c.h.b16 %v5128
    %v5418 = vunpack.c.l.b16 %v5129
    %v5419 = vunpack.c.h.b16 %v5129
    %v5420 = vunpack.c.l.b16 %v5130
    %v5421 = vunpack.c.h.b16 %v5130
    %v5422 = vunpack.c.l.b16 %v5131
    %v5423 = vunpack.c.h.b16 %v5131
    %v5424 = vunpack.c.l.b16 %v5132
    %v5425 = vunpack.c.h.b16 %v5132
    %v5426 = vunpack.c.l.b16 %v5133
    %v5427 = vunpack.c.h.b16 %v5133
    %v5428 = vunpack.c.l.b16 %v5134
    %v5429 = vunpack.c.h.b16 %v5134
    %v5430 = vunpack.c.l.b16 %v5135
    %v5431 = vunpack.c.h.b16 %v5135
    %v5432 = vunpack.c.l.b16 %v5136
    %v5433 = vunpack.c.h.b16 %v5136
    %v5434 = vunpack.c.l.b16 %v5137
    %v5435 = vunpack.c.h.b16 %v5137
    %v5436 = vunpack.c.l.b16 %v5138
    %v5437 = vunpack.c.h.b16 %v5138
    %v5438 = vunpack.c.l.b16 %v5139
    %v5439 = vunpack.c.h.b16 %v5139
    %v5440 = vunpack.c.l.b16 %v5140
    %v5441 = vunpack.c.h.b16 %v5140
    %v5442 = vunpack.c.l.b16 %v5141
    %v5443 = vunpack.c.h.b16 %v5141
    %v5444 = vunpack.c.l.b16 %v5142
    %v5445 = vunpack.c.h.b16 %v5142
    %v5446 = vunpack.c.l.b16 %v5143
    %v5447 = vunpack.c.h.b16 %v5143
    %v5448 = vunpack.c.l.b16 %v5144
    %v5449 = vunpack.c.h.b16 %v5144
    %v5450 = vunpack.c.l.b16 %v5145
    %v5451 = vunpack.c.h.b16 %v5145
    %v5452 = vunpack.c.l.b16 %v5146
    %v5453 = vunpack.c.h.b16 %v5146
    %v5454 = vunpack.c.l.b16 %v5147
    %v5455 = vunpack.c.h.b16 %v5147
    %v5456 = vunpack.c.l.b16 %v5148
    %v5457 = vunpack.c.h.b16 %v5148
    %v5458 = vunpack.c.l.b16 %v5149
    %v5459 = vunpack.c.h.b16 %v5149
    %v5460 = vunpack.c.l.b16 %v5150
    %v5461 = vunpack.c.h.b16 %v5150
    %v5462 = vunpack.c.l.b16 %v5151
    %v5463 = vunpack.c.h.b16 %v5151
    %v5464 = vunpack.c.l.b16 %v5152
    %v5465 = vunpack.c.h.b16 %v5152
    %v5466 = vunpack.c.l.b16 %v5153
    %v5467 = vunpack.c.h.b16 %v5153
    %v5468 = vunpack.c.l.b16 %v5154
    %v5469 = vunpack.c.h.b16 %v5154
    %v5470 = vunpack.c.l.b16 %v5155
    %v5471 = vunpack.c.h.b16 %v5155
    %v5472 = vunpack.c.l.b16 %v5156
    %v5473 = vunpack.c.h.b16 %v5156
    %v5474 = vunpack.c.l.b16 %v5157
    %v5475 = vunpack.c.h.b16 %v5157
    %v5476 = vunpack.c.l.b16 %v5158
    %v5477 = vunpack.c.h.b16 %v5158
    %v5478 = vunpack.c.l.b16 %v5159
    %v5479 = vunpack.c.h.b16 %v5159
    %v5480 = vunpack.c.l.b16 %v5160
    %v5481 = vunpack.c.h.b16 %v5160
    %v5482 = vunpack.c.l.b16 %v5161
    %v5483 = vunpack.c.h.b16 %v5161
    %v5484 = vunpack.c.l.b16 %v5162
    %v5485 = vunpack.c.h.b16 %v5162
    %v5486 = vunpack.c.l.b16 %v5163
    %v5487 = vunpack.c.h.b16 %v5163
    %v5488 = vunpack.c.l.b16 %v5164
    %v5489 = vunpack.c.h.b16 %v5164
    %v5490 = vunpack.c.l.b16 %v5165
    %v5491 = vunpack.c.h.b16 %v5165
    %v5492 = vunpack.c.l.b16 %v5166
    %v5493 = vunpack.c.h.b16 %v5166
    %v5494 = vunpack.c.l.b16 %v5167
    %v5495 = vunpack.c.h.b16 %v5167
    %v5496 = vunpack.c.l.b16 %v5168
    %v5497 = vunpack.c.h.b16 %v5168
    %v5498 = vunpack.c.l.b16 %v5169
    %v5499 = vunpack.c.h.b16 %v5169
    %v5500 = vunpack.c.l.b16 %v5170
    %v5501 = vunpack.c.h.b16 %v5170
    %v5502 = vunpack.c.l.b16 %v5171
    %v5503 = vunpack.c.h.b16 %v5171
    %v5504 = vunpack.c.l.b16 %v5172
    %v5505 = vunpack.c.h.b16 %v5172
    %v5506 = vunpack.c.l.b16 %v5173
    %v5507 = vunpack.c.h.b16 %v5173
    %v5508 = vunpack.c.l.b16 %v5174
    %v5509 = vunpack.c.h.b16 %v5174
    %v5510 = vunpack.c.l.b16 %v5175
    %v5511 = vunpack.c.h.b16 %v5175
    %v5512 = vunpack.c.l.b16 %v5176
    %v5513 = vunpack.c.h.b16 %v5176
    %v5514 = vunpack.c.l.b16 %v5177
    %v5515 = vunpack.c.h.b16 %v5177
    %v5516 = vunpack.c.l.b16 %v5178
    %v5517 = vunpack.c.h.b16 %v5178
    %v5518 = vunpack.c.l.b16 %v5179
    %v5519 = vunpack.c.h.b16 %v5179
    %v5520 = vunpack.c.l.b16 %v5180
    %v5521 = vunpack.c.h.b16 %v5180
    %v5522 = vunpack.c.l.b16 %v5181
    %v5523 = vunpack.c.h.b16 %v5181
    %v5524 = vunpack.c.l.b16 %v5182
    %v5525 = vunpack.c.h.b16 %v5182
    %v5526 = vunpack.c.l.b16 %v5183
    %v5527 = vunpack.c.h.b16 %v5183
    %v5528 = vunpack.c.l.b16 %v5184
    %v5529 = vunpack.c.h.b16 %v5184
    %v5530 = vunpack.c.l.b16 %v5185
    %v5531 = vunpack.c.h.b16 %v5185
    %v5532 = vunpack.c.l.b16 %v5186
    %v5533 = vunpack.c.h.b16 %v5186
    %v5534 = vunpack.c.l.b16 %v5187
    %v5535 = vunpack.c.h.b16 %v5187
    %v5536 = vunpack.c.l.b16 %v5188
    %v5537 = vunpack.c.h.b16 %v5188
    %v5538 = vunpack.c.l.b16 %v5189
    %v5539 = vunpack.c.h.b16 %v5189
    %v5540 = vunpack.c.l.b16 %v5190
    %v5541 = vunpack.c.h.b16 %v5190
    %v5542 = vunpack.c.l.b16 %v5191
    %v5543 = vunpack.c.h.b16 %v5191
    %v5544 = vunpack.c.l.b16 %v5192
    %v5545 = vunpack.c.h.b16 %v5192
    %v5546 = vunpack.c.l.b16 %v5193
    %v5547 = vunpack.c.h.b16 %v5193
    %v5548 = vunpack.c.l.b16 %v5194
    %v5549 = vunpack.c.h.b16 %v5194
    %v5550 = vunpack.c.l.b16 %v5195
    %v5551 = vunpack.c.h.b16 %v5195
    %v5552 = vunpack.c.l.b16 %v5196
    %v5553 = vunpack.c.h.b16 %v5196
    %v5554 = vunpack.c.l.b16 %v5197
    %v5555 = vunpack.c.h.b16 %v5197
    %v5556 = vunpack.c.l.b16 %v5198
    %v5557 = vunpack.c.h.b16 %v5198
    %v5558 = vunpack.c.l.b16 %v5199
    %v5559 = vunpack.c.h.b16 %v5199
    %v5560 = vunpack.c.l.b16 %v5200
    %v5561 = vunpack.c.h.b16 %v5200
    %v5562 = vunpack.c.l.b16 %v5201
    %v5563 = vunpack.c.h.b16 %v5201
    %v5564 = vunpack.c.l.b16 %v5202
    %v5565 = vunpack.c.h.b16 %v5202
    %v5566 = vunpack.c.l.b16 %v5203
    %v5567 = vunpack.c.h.b16 %v5203
    %v5568 = vunpack.c.l.b16 %v5204
    %v5569 = vunpack.c.h.b16 %v5204
    %v5570 = vunpack.c.l.b16 %v5205
    %v5571 = vunpack.c.h.b16 %v5205
    %v5572 = vunpack.c.l.b16 %v5206
    %v5573 = vunpack.c.h.b16 %v5206
    %v5574 = vunpack.c.l.b16 %v5207
    %v5575 = vunpack.c.h.b16 %v5207
    %v5576 = vunpack.c.l.b16 %v5208
    %v5577 = vunpack.c.h.b16 %v5208
    %v5578 = vunpack.c.l.b16 %v5209
    %v5579 = vunpack.c.h.b16 %v5209
    %v5580 = vunpack.c.l.b16 %v5210
    %v5581 = vunpack.c.h.b16 %v5210
    %v5582 = vunpack.c.l.b16 %v5211
    %v5583 = vunpack.c.h.b16 %v5211
    %v5584 = vunpack.c.l.b16 %v5212
    %v5585 = vunpack.c.h.b16 %v5212
    %v5586 = vunpack.c.l.b16 %v5213
    %v5587 = vunpack.c.h.b16 %v5213
    %v5588 = vunpack.c.l.b16 %v5214
    %v5589 = vunpack.c.h.b16 %v5214
    %v5590 = vunpack.c.l.b16 %v5215
    %v5591 = vunpack.c.h.b16 %v5215
    %v5592 = vunpack.c.l.b16 %v5216
    %v5593 = vunpack.c.h.b16 %v5216
    %v5594 = vunpack.c.l.b16 %v5217
    %v5595 = vunpack.c.h.b16 %v5217
    %v5596 = vunpack.c.l.b16 %v5218
    %v5597 = vunpack.c.h.b16 %v5218
    %v5598 = vunpack.c.l.b16 %v5219
    %v5599 = vunpack.c.h.b16 %v5219
    %v5600 = vunpack.c.l.b16 %v5220
    %v5601 = vunpack.c.h.b16 %v5220
    %v5602 = vunpack.c.l.b16 %v5221
    %v5603 = vunpack.c.h.b16 %v5221
    %v5604 = vunpack.c.l.b16 %v5222
    %v5605 = vunpack.c.h.b16 %v5222
    %v5606 = vunpack.c.l.b16 %v5223
    %v5607 = vunpack.c.h.b16 %v5223
    %v5608 = vunpack.c.l.b16 %v5224
    %v5609 = vunpack.c.h.b16 %v5224
    %v5610 = vunpack.c.l.b16 %v5225
    %v5611 = vunpack.c.h.b16 %v5225
    %v5612 = vunpack.c.l.b16 %v5226
    %v5613 = vunpack.c.h.b16 %v5226
    %v5614 = vunpack.c.l.b16 %v5227
    %v5615 = vunpack.c.h.b16 %v5227
    %v5616 = vunpack.c.l.b16 %v5228
    %v5617 = vunpack.c.h.b16 %v5228
    %v5618 = vunpack.c.l.b16 %v5229
    %v5619 = vunpack.c.h.b16 %v5229
    %v5620 = vunpack.c.l.b16 %v5230
    %v5621 = vunpack.c.h.b16 %v5230
    %v5622 = vunpack.c.l.b16 %v5231
    %v5623 = vunpack.c.h.b16 %v5231
    %v5624 = vunpack.c.l.b16 %v5232
    %v5625 = vunpack.c.h.b16 %v5232
    %v5626 = vunpack.c.l.b16 %v5233
    %v5627 = vunpack.c.h.b16 %v5233
    %v5628 = vunpack.c.l.b16 %v5234
    %v5629 = vunpack.c.h.b16 %v5234
    %v5630 = vunpack.c.l.b16 %v5235
    %v5631 = vunpack.c.h.b16 %v5235
    %v5632 = vunpack.c.l.b16 %v5236
    %v5633 = vunpack.c.h.b16 %v5236
    %v5634 = vunpack.c.l.b16 %v5237
    %v5635 = vunpack.c.h.b16 %v5237
    %v5636 = vunpack.c.l.b16 %v5238
    %v5637 = vunpack.c.h.b16 %v5238
    %v5638 = vunpack.c.l.b16 %v5239
    %v5639 = vunpack.c.h.b16 %v5239
    %v5640 = vunpack.c.l.b16 %v5240
    %v5641 = vunpack.c.h.b16 %v5240
    %v5642 = vunpack.c.l.b16 %v5241
    %v5643 = vunpack.c.h.b16 %v5241
    %v5644 = vunpack.c.l.b16 %v5242
    %v5645 = vunpack.c.h.b16 %v5242
    %v5646 = vunpack.c.l.b16 %v5243
    %v5647 = vunpack.c.h.b16 %v5243
    %v5648 = vunpack.c.l.b16 %v5244
    %v5649 = vunpack.c.h.b16 %v5244
    %v5650 = vunpack.c.l.b16 %v5245
    %v5651 = vunpack.c.h.b16 %v5245
    %v5652 = vpack.c.b16 %v5400, %v5396
    %v5653 = vpack.c.b16 %v5401, %v5397
    %v5654 = vpack.c.b16 %v5402, %v5398
    %v5655 = vpack.c.b16 %v5403, %v5399
    %v5656 = vpack.c.b16 %v5408, %v5404
    %v5657 = vpack.c.b16 %v5409, %v5405
    %v5658 = vpack.c.b16 %v5410, %v5406
    %v5659 = vpack.c.b16 %v5411, %v5407
    %v5660 = vpack.c.b16 %v5416, %v5412
    %v5661 = vpack.c.b16 %v5417, %v5413
    %v5662 = vpack.c.b16 %v5418, %v5414
    %v5663 = vpack.c.b16 %v5419, %v5415
    %v5664 = vpack.c.b16 %v5424, %v5420
    %v5665 = vpack.c.b16 %v5425, %v5421
    %v5666 = vpack.c.b16 %v5426, %v5422
    %v5667 = vpack.c.b16 %v5427, %v5423
    %v5668 = vpack.c.b16 %v5432, %v5428
    %v5669 = vpack.c.b16 %v5433, %v5429
    %v5670 = vpack.c.b16 %v5434, %v5430
    %v5671 = vpack.c.b16 %v5435, %v5431
    %v5672 = vpack.c.b16 %v5440, %v5436
    %v5673 = vpack.c.b16 %v5441, %v5437
    %v5674 = vpack.c.b16 %v5442, %v5438
    %v5675 = vpack.c.b16 %v5443, %v5439
    %v5676 = vpack.c.b16 %v5448, %v5444
    %v5677 = vpack.c.b16 %v5449, %v5445
    %v5678 = vpack.c.b16 %v5450, %v5446
    %v5679 = vpack.c.b16 %v5451, %v5447
    %v5680 = vpack.c.b16 %v5456, %v5452
    %v5681 = vpack.c.b16 %v5457, %v5453
    %v5682 = vpack.c.b16 %v5458, %v5454
    %v5683 = vpack.c.b16 %v5459, %v5455
    %v5684 = vpack.c.b16 %v5464, %v5460
    %v5685 = vpack.c.b16 %v5465, %v5461
    %v5686 = vpack.c.b16 %v5466, %v5462
    %v5687 = vpack.c.b16 %v5467, %v5463
    %v5688 = vpack.c.b16 %v5472, %v5468
    %v5689 = vpack.c.b16 %v5473, %v5469
    %v5690 = vpack.c.b16 %v5474, %v5470
    %v5691 = vpack.c.b16 %v5475, %v5471
    %v5692 = vpack.c.b16 %v5480, %v5476
    %v5693 = vpack.c.b16 %v5481, %v5477
    %v5694 = vpack.c.b16 %v5482, %v5478
    %v5695 = vpack.c.b16 %v5483, %v5479
    %v5696 = vpack.c.b16 %v5488, %v5484
    %v5697 = vpack.c.b16 %v5489, %v5485
    %v5698 = vpack.c.b16 %v5490, %v5486
    %v5699 = vpack.c.b16 %v5491, %v5487
    %v5700 = vpack.c.b16 %v5496, %v5492
    %v5701 = vpack.c.b16 %v5497, %v5493
    %v5702 = vpack.c.b16 %v5498, %v5494
    %v5703 = vpack.c.b16 %v5499, %v5495
    %v5704 = vpack.c.b16 %v5504, %v5500
    %v5705 = vpack.c.b16 %v5505, %v5501
    %v5706 = vpack.c.b16 %v5506, %v5502
    %v5707 = vpack.c.b16 %v5507, %v5503
    %v5708 = vpack.c.b16 %v5512, %v5508
    %v5709 = vpack.c.b16 %v5513, %v5509
    %v5710 = vpack.c.b16 %v5514, %v5510
    %v5711 = vpack.c.b16 %v5515, %v5511
    %v5712 = vpack.c.b16 %v5520, %v5516
    %v5713 = vpack.c.b16 %v5521, %v5517
    %v5714 = vpack.c.b16 %v5522, %v5518
    %v5715 = vpack.c.b16 %v5523, %v5519
    %v5716 = vpack.c.b16 %v5528, %v5524
    %v5717 = vpack.c.b16 %v5529, %v5525
    %v5718 = vpack.c.b16 %v5530, %v5526
    %v5719 = vpack.c.b16 %v5531, %v5527
    %v5720 = vpack.c.b16 %v5536, %v5532
    %v5721 = vpack.c.b16 %v5537, %v5533
    %v5722 = vpack.c.b16 %v5538, %v5534
    %v5723 = vpack.c.b16 %v5539, %v5535
    %v5724 = vpack.c.b16 %v5544, %v5540
    %v5725 = vpack.c.b16 %v5545, %v5541
    %v5726 = vpack.c.b16 %v5546, %v5542
    %v5727 = vpack.c.b16 %v5547, %v5543
    %v5728 = vpack.c.b16 %v5552, %v5548
    %v5729 = vpack.c.b16 %v5553, %v5549
    %v5730 = vpack.c.b16 %v5554, %v5550
    %v5731 = vpack.c.b16 %v5555, %v5551
    %v5732 = vpack.c.b16 %v5560, %v5556
    %v5733 = vpack.c.b16 %v5561, %v5557
    %v5734 = vpack.c.b16 %v5562, %v5558
    %v5735 = vpack.c.b16 %v5563, %v5559
    %v5736 = vpack.c.b16 %v5568, %v5564
    %v5737 = vpack.c.b16 %v5569, %v5565
    %v5738 = vpack.c.b16 %v5570, %v5566
    %v5739 = vpack.c.b16 %v5571, %v5567
    %v5740 = vpack.c.b16 %v5576, %v5572
    %v5741 = vpack.c.b16 %v5577, %v5573
    %v5742 = vpack.c.b16 %v5578, %v5574
    %v5743 = vpack.c.b16 %v5579, %v5575
    %v5744 = vpack.c.b16 %v5584, %v5580
    %v5745 = vpack.c.b16 %v5585, %v5581
    %v5746 = vpack.c.b16 %v5586, %v5582
    %v5747 = vpack.c.b16 %v5587, %v5583
    %v5748 = vpack.c.b16 %v5592, %v5588
    %v5749 = vpack.c.b16 %v5593, %v5589
    %v5750 = vpack.c.b16 %v5594, %v5590
    %v5751 = vpack.c.b16 %v5595, %v5591
    %v5752 = vpack.c.b16 %v5600, %v5596
    %v5753 = vpack.c.b16 %v5601, %v5597
    %v5754 = vpack.c.b16 %v5602, %v5598
    %v5755 = vpack.c.b16 %v5603, %v5599
    %v5756 = vpack.c.b16 %v5608, %v5604
    %v5757 = vpack.c.b16 %v5609, %v5605
    %v5758 = vpack.c.b16 %v5610, %v5606
    %v5759 = vpack.c.b16 %v5611, %v5607
    %v5760 = vpack.c.b16 %v5616, %v5612
    %v5761 = vpack.c.b16 %v5617, %v5613
    %v5762 = vpack.c.b16 %v5618, %v5614
    %v5763 = vpack.c.b16 %v5619, %v5615
    %v5764 = vpack.c.b16 %v5624, %v5620
    %v5765 = vpack.c.b16 %v5625, %v5621
    %v5766 = vpack.c.b16 %v5626, %v5622
    %v5767 = vpack.c.b16 %v5627, %v5623
    %v5768 = vpack.c.b16 %v5632, %v5628
    %v5769 = vpack.c.b16 %v5633, %v5629
    %v5770 = vpack.c.b16 %v5634, %v5630
    %v5771 = vpack.c.b16 %v5635, %v5631
    %v5772 = vpack.c.b16 %v5640, %v5636
    %v5773 = vpack.c.b16 %v5641, %v5637
    %v5774 = vpack.c.b16 %v5642, %v5638
    %v5775 = vpack.c.b16 %v5643, %v5639
    %v5776 = vpack.c.b16 %v5648, %v5644
    %v5777 = vpack.c.b16 %v5649, %v5645
    %v5778 = vpack.c.b16 %v5650, %v5646
    %v5779 = vpack.c.b16 %v5651, %v5647
    %5908 = vmatprep.subr.bf16.mxu0 %v5681
    %5909 = vmatpush1.bf16.msra.mxu0 %v5680
    %5910 = vmatprep.subr.bf16.mxu0 %v5677
    %5911 = vmatpush1.bf16.msra.mxu0 %v5676
    %5912 = vmatprep.subr.bf16.mxu0 %v5673
    %5913 = vmatpush1.bf16.msra.mxu0 %v5672
    %5914 = vmatprep.subr.bf16.mxu0 %v5669
    %5915 = vmatpush1.bf16.msra.mxu0 %v5668
    %5916 = vmatprep.subr.bf16.mxu0 %v5665
    %5917 = vmatpush1.bf16.msra.mxu0 %v5664
    %5918 = vmatprep.subr.bf16.mxu0 %v5661
    %5919 = vmatpush1.bf16.msra.mxu0 %v5660
    %5920 = vmatprep.subr.bf16.mxu0 %v5657
    %5921 = vmatpush1.bf16.msra.mxu0 %v5656
    %5922 = vmatprep.subr.bf16.mxu0 %v5653
    %5923 = vmatpush1.bf16.msra.mxu0 %v5652
    %5924 = vmatprep.subr.bf16.mxu0 %v5713
    %5925 = vmatpush2.bf16.msra.mxu0 %v5712
    %5926 = vmatprep.subr.bf16.mxu0 %v5709
    %5927 = vmatpush2.bf16.msra.mxu0 %v5708
    %5928 = vmatprep.subr.bf16.mxu0 %v5705
    %5929 = vmatpush2.bf16.msra.mxu0 %v5704
    %5930 = vmatprep.subr.bf16.mxu0 %v5701
    %5931 = vmatpush2.bf16.msra.mxu0 %v5700
    %5932 = vmatprep.subr.bf16.mxu0 %v5697
    %5933 = vmatpush2.bf16.msra.mxu0 %v5696
    %5934 = vmatprep.subr.bf16.mxu0 %v5693
    %5935 = vmatpush2.bf16.msra.mxu0 %v5692
    %5936 = vmatprep.subr.bf16.mxu0 %v5689
    %5937 = vmatpush2.bf16.msra.mxu0 %v5688
    %5938 = vmatprep.subr.bf16.mxu0 %v5685
    %5939 = vmatpush2.bf16.msra.mxu0 %v5684
    %5940 = vmatprep.mubr.bf16.mxu0 %v5115
    %5941 = vmatmul.mubr.bf16.gmra.mxu0 %v5114
    %v5942 = vpop.f32.mrf.mxu0
    %v5943 = vadd.f32 %v5251, %v5942
    %v5944 = vpop.f32.mrf.mxu0
    %v5945 = vadd.f32 %v5255, %v5944
    %v5946 = vpop.f32.mrf.mxu0
    %v5947 = vpop.f32.mrf.mxu0
    %5948 = vdwg.mxu0
    %5949 = vmatprep.subr.bf16.mxu0 %v5745
    %5950 = vmatpush1.bf16.msra.mxu0 %v5744
    %5951 = vmatprep.subr.bf16.mxu0 %v5741
    %5952 = vmatpush1.bf16.msra.mxu0 %v5740
    %5953 = vmatprep.subr.bf16.mxu0 %v5737
    %5954 = vmatpush1.bf16.msra.mxu0 %v5736
    %5955 = vmatprep.subr.bf16.mxu0 %v5733
    %5956 = vmatpush1.bf16.msra.mxu0 %v5732
    %5957 = vmatprep.subr.bf16.mxu0 %v5729
    %5958 = vmatpush1.bf16.msra.mxu0 %v5728
    %5959 = vmatprep.subr.bf16.mxu0 %v5725
    %5960 = vmatpush1.bf16.msra.mxu0 %v5724
    %5961 = vmatprep.subr.bf16.mxu0 %v5721
    %5962 = vmatpush1.bf16.msra.mxu0 %v5720
    %5963 = vmatprep.subr.bf16.mxu0 %v5717
    %5964 = vmatpush1.bf16.msra.mxu0 %v5716
    %5965 = vmatprep.subr.bf16.mxu0 %v5777
    %5966 = vmatpush2.bf16.msra.mxu0 %v5776
    %5967 = vmatprep.subr.bf16.mxu0 %v5773
    %5968 = vmatpush2.bf16.msra.mxu0 %v5772
    %5969 = vmatprep.subr.bf16.mxu0 %v5769
    %5970 = vmatpush2.bf16.msra.mxu0 %v5768
    %5971 = vmatprep.subr.bf16.mxu0 %v5765
    %5972 = vmatpush2.bf16.msra.mxu0 %v5764
    %5973 = vmatprep.subr.bf16.mxu0 %v5761
    %5974 = vmatpush2.bf16.msra.mxu0 %v5760
    %5975 = vmatprep.subr.bf16.mxu0 %v5757
    %5976 = vmatpush2.bf16.msra.mxu0 %v5756
    %5977 = vmatprep.subr.bf16.mxu0 %v5753
    %5978 = vmatpush2.bf16.msra.mxu0 %v5752
    %5979 = vmatprep.subr.bf16.mxu0 %v5749
    %5980 = vmatpush2.bf16.msra.mxu0 %v5748
    %5981 = vmatprep.mubr.bf16.mxu0 %v5117
    %5982 = vmatmul.mubr.bf16.gmra.mxu0 %v5116
    %v5983 = vpop.f32.mrf.mxu0
    %v5984 = vadd.f32 %v5943, %v5983
    %v5985 = vpop.f32.mrf.mxu0
    %v5986 = vadd.f32 %v5945, %v5985
    %v5987 = vpop.f32.mrf.mxu0
    %v5988 = vpop.f32.mrf.mxu0
    %5989 = vdwg.mxu0
    %5990 = vmatprep.subr.bf16.mxu0 %v5683
    %5991 = vmatpush1.bf16.msra.mxu0 %v5682
    %5992 = vmatprep.subr.bf16.mxu0 %v5679
    %5993 = vmatpush1.bf16.msra.mxu0 %v5678
    %5994 = vmatprep.subr.bf16.mxu0 %v5675
    %5995 = vmatpush1.bf16.msra.mxu0 %v5674
    %5996 = vmatprep.subr.bf16.mxu0 %v5671
    %5997 = vmatpush1.bf16.msra.mxu0 %v5670
    %5998 = vmatprep.subr.bf16.mxu0 %v5667
    %5999 = vmatpush1.bf16.msra.mxu0 %v5666
    %6000 = vmatprep.subr.bf16.mxu0 %v5663
    %6001 = vmatpush1.bf16.msra.mxu0 %v5662
    %6002 = vmatprep.subr.bf16.mxu0 %v5659
    %6003 = vmatpush1.bf16.msra.mxu0 %v5658
    %6004 = vmatprep.subr.bf16.mxu0 %v5655
    %6005 = vmatpush1.bf16.msra.mxu0 %v5654
    %6006 = vmatprep.subr.bf16.mxu0 %v5715
    %6007 = vmatpush2.bf16.msra.mxu0 %v5714
    %6008 = vmatprep.subr.bf16.mxu0 %v5711
    %6009 = vmatpush2.bf16.msra.mxu0 %v5710
    %6010 = vmatprep.subr.bf16.mxu0 %v5707
    %6011 = vmatpush2.bf16.msra.mxu0 %v5706
    %6012 = vmatprep.subr.bf16.mxu0 %v5703
    %6013 = vmatpush2.bf16.msra.mxu0 %v5702
    %6014 = vmatprep.subr.bf16.mxu0 %v5699
    %6015 = vmatpush2.bf16.msra.mxu0 %v5698
    %6016 = vmatprep.subr.bf16.mxu0 %v5695
    %6017 = vmatpush2.bf16.msra.mxu0 %v5694
    %6018 = vmatprep.subr.bf16.mxu0 %v5691
    %6019 = vmatpush2.bf16.msra.mxu0 %v5690
    %6020 = vmatprep.subr.bf16.mxu0 %v5687
    %6021 = vmatpush2.bf16.msra.mxu0 %v5686
    %6022 = vmatprep.mubr.bf16.mxu0 %v5115
    %6023 = vmatmul.mubr.bf16.gmra.mxu0 %v5114
    %v6024 = vpop.f32.mrf.mxu0
    %v6025 = vadd.f32 %v5259, %v6024
    %v6026 = vpop.f32.mrf.mxu0
    %v6027 = vadd.f32 %v5263, %v6026
    %v6028 = vpop.f32.mrf.mxu0
    %v6029 = vpop.f32.mrf.mxu0
    %6030 = vdwg.mxu0
    %6031 = vmatprep.subr.bf16.mxu0 %v5747
    %6032 = vmatpush1.bf16.msra.mxu0 %v5746
    %6033 = vmatprep.subr.bf16.mxu0 %v5743
    %6034 = vmatpush1.bf16.msra.mxu0 %v5742
    %6035 = vmatprep.subr.bf16.mxu0 %v5739
    %6036 = vmatpush1.bf16.msra.mxu0 %v5738
    %6037 = vmatprep.subr.bf16.mxu0 %v5735
    %6038 = vmatpush1.bf16.msra.mxu0 %v5734
    %6039 = vmatprep.subr.bf16.mxu0 %v5731
    %6040 = vmatpush1.bf16.msra.mxu0 %v5730
    %6041 = vmatprep.subr.bf16.mxu0 %v5727
    %6042 = vmatpush1.bf16.msra.mxu0 %v5726
    %6043 = vmatprep.subr.bf16.mxu0 %v5723
    %6044 = vmatpush1.bf16.msra.mxu0 %v5722
    %6045 = vmatprep.subr.bf16.mxu0 %v5719
    %6046 = vmatpush1.bf16.msra.mxu0 %v5718
    %6047 = vmatprep.subr.bf16.mxu0 %v5779
    %6048 = vmatpush2.bf16.msra.mxu0 %v5778
    %6049 = vmatprep.subr.bf16.mxu0 %v5775
    %6050 = vmatpush2.bf16.msra.mxu0 %v5774
    %6051 = vmatprep.subr.bf16.mxu0 %v5771
    %6052 = vmatpush2.bf16.msra.mxu0 %v5770
    %6053 = vmatprep.subr.bf16.mxu0 %v5767
    %6054 = vmatpush2.bf16.msra.mxu0 %v5766
    %6055 = vmatprep.subr.bf16.mxu0 %v5763
    %6056 = vmatpush2.bf16.msra.mxu0 %v5762
    %6057 = vmatprep.subr.bf16.mxu0 %v5759
    %6058 = vmatpush2.bf16.msra.mxu0 %v5758
    %6059 = vmatprep.subr.bf16.mxu0 %v5755
    %6060 = vmatpush2.bf16.msra.mxu0 %v5754
    %6061 = vmatprep.subr.bf16.mxu0 %v5751
    %6062 = vmatpush2.bf16.msra.mxu0 %v5750
    %6063 = vmatprep.mubr.bf16.mxu0 %v5117
    %6064 = vmatmul.mubr.bf16.gmra.mxu0 %v5116
    %v6065 = vpop.f32.mrf.mxu0
    %v6066 = vadd.f32 %v6025, %v6065
    %v6067 = vpop.f32.mrf.mxu0
    %v6068 = vadd.f32 %v6027, %v6067
    %v6069 = vpop.f32.mrf.mxu0
    %v6070 = vpop.f32.mrf.mxu0
    %6071 = vdwg.mxu0
    %v6072 = vmax.f32 %v5984, 0.0
    %v6073 = vmax.f32 %v5986, 0.0
    %v6074 = vmax.f32 %v6066, 0.0
    %v6075 = vmax.f32 %v6068, 0.0
    %v6076 = vpack.c.bf16 %v6072, %v6072
    %v6077 = vpack.c.bf16 %v6073, %v6073
    %v6078 = vpack.c.bf16 %v6074, %v6074
    %v6079 = vpack.c.bf16 %v6075, %v6075
    %v6080 = vld [vmem:[#allocation14] sm:$0xf]
    %v6081 = vld [vmem:[#allocation14 + $0x4] sm:$0xf]
    %v6082 = vld [vmem:[#allocation14 + $0x8] sm:$0xf]
    %v6083 = vld [vmem:[#allocation14 + $0xc] sm:$0xf]
    %v6084 = vld [vmem:[#allocation14 + $0x10] sm:$0xf]
    %v6085 = vld [vmem:[#allocation14 + $0x14] sm:$0xf]
    %v6086 = vld [vmem:[#allocation14 + $0x18] sm:$0xf]
    %v6087 = vld [vmem:[#allocation14 + $0x1c] sm:$0xf]
    %v6088 = vld [vmem:[#allocation14 + $0x20] sm:$0xf]
    %v6089 = vld [vmem:[#allocation14 + $0x24] sm:$0xf]
    %v6090 = vld [vmem:[#allocation14 + $0x28] sm:$0xf]
    %v6091 = vld [vmem:[#allocation14 + $0x2c] sm:$0xf]
    %v6092 = vld [vmem:[#allocation14 + $0x30] sm:$0xf]
    %v6093 = vld [vmem:[#allocation14 + $0x34] sm:$0xf]
    %v6094 = vld [vmem:[#allocation14 + $0x38] sm:$0xf]
    %v6095 = vld [vmem:[#allocation14 + $0x3c] sm:$0xf]
    %v6096 = vld [vmem:[#allocation14 + $0x40] sm:$0xf]
    %v6097 = vld [vmem:[#allocation14 + $0x44] sm:$0xf]
    %v6098 = vld [vmem:[#allocation14 + $0x48] sm:$0xf]
    %v6099 = vld [vmem:[#allocation14 + $0x4c] sm:$0xf]
    %v6100 = vld [vmem:[#allocation14 + $0x50] sm:$0xf]
    %v6101 = vld [vmem:[#allocation14 + $0x54] sm:$0xf]
    %v6102 = vld [vmem:[#allocation14 + $0x58] sm:$0xf]
    %v6103 = vld [vmem:[#allocation14 + $0x5c] sm:$0xf]
    %v6104 = vld [vmem:[#allocation14 + $0x60] sm:$0xf]
    %v6105 = vld [vmem:[#allocation14 + $0x64] sm:$0xf]
    %v6106 = vld [vmem:[#allocation14 + $0x68] sm:$0xf]
    %v6107 = vld [vmem:[#allocation14 + $0x6c] sm:$0xf]
    %v6108 = vld [vmem:[#allocation14 + $0x70] sm:$0xf]
    %v6109 = vld [vmem:[#allocation14 + $0x74] sm:$0xf]
    %v6110 = vld [vmem:[#allocation14 + $0x78] sm:$0xf]
    %v6111 = vld [vmem:[#allocation14 + $0x7c] sm:$0xf]
    %v6112 = vld [vmem:[#allocation14 + $0x80] sm:$0xf]
    %v6113 = vld [vmem:[#allocation14 + $0x84] sm:$0xf]
    %v6114 = vld [vmem:[#allocation14 + $0x88] sm:$0xf]
    %v6115 = vld [vmem:[#allocation14 + $0x8c] sm:$0xf]
    %v6116 = vld [vmem:[#allocation14 + $0x90] sm:$0xf]
    %v6117 = vld [vmem:[#allocation14 + $0x94] sm:$0xf]
    %v6118 = vld [vmem:[#allocation14 + $0x98] sm:$0xf]
    %v6119 = vld [vmem:[#allocation14 + $0x9c] sm:$0xf]
    %v6120 = vld [vmem:[#allocation14 + $0xa0] sm:$0xf]
    %v6121 = vld [vmem:[#allocation14 + $0xa4] sm:$0xf]
    %v6122 = vld [vmem:[#allocation14 + $0xa8] sm:$0xf]
    %v6123 = vld [vmem:[#allocation14 + $0xac] sm:$0xf]
    %v6124 = vld [vmem:[#allocation14 + $0xb0] sm:$0xf]
    %v6125 = vld [vmem:[#allocation14 + $0xb4] sm:$0xf]
    %v6126 = vld [vmem:[#allocation14 + $0xb8] sm:$0xf]
    %v6127 = vld [vmem:[#allocation14 + $0xbc] sm:$0xf]
    %v6128 = vld [vmem:[#allocation14 + $0xc0] sm:$0xf]
    %v6129 = vld [vmem:[#allocation14 + $0xc4] sm:$0xf]
    %v6130 = vld [vmem:[#allocation14 + $0xc8] sm:$0xf]
    %v6131 = vld [vmem:[#allocation14 + $0xcc] sm:$0xf]
    %v6132 = vld [vmem:[#allocation14 + $0xd0] sm:$0xf]
    %v6133 = vld [vmem:[#allocation14 + $0xd4] sm:$0xf]
    %v6134 = vld [vmem:[#allocation14 + $0xd8] sm:$0xf]
    %v6135 = vld [vmem:[#allocation14 + $0xdc] sm:$0xf]
    %v6136 = vld [vmem:[#allocation14 + $0xe0] sm:$0xf]
    %v6137 = vld [vmem:[#allocation14 + $0xe4] sm:$0xf]
    %v6138 = vld [vmem:[#allocation14 + $0xe8] sm:$0xf]
    %v6139 = vld [vmem:[#allocation14 + $0xec] sm:$0xf]
    %v6140 = vld [vmem:[#allocation14 + $0xf0] sm:$0xf]
    %v6141 = vld [vmem:[#allocation14 + $0xf4] sm:$0xf]
    %v6142 = vld [vmem:[#allocation14 + $0xf8] sm:$0xf]
    %v6143 = vld [vmem:[#allocation14 + $0xfc] sm:$0xf]
    %v6144 = vld [vmem:[#allocation16] sm:$0x1]
    %v6146 = vlaneseq
    %v6147 = vshrl.u32 %v6146, 7
    %v6148 = vsub.s32 0, %v6147
    %v6149 = vrot.slane %v6144, %v6148
    %v6215 = vunpack.c.l.b16 %v6080
    %v6216 = vunpack.c.l.b16 %v6081
    %v6217 = vunpack.c.l.b16 %v6082
    %v6218 = vunpack.c.l.b16 %v6083
    %v6219 = vunpack.c.l.b16 %v6084
    %v6220 = vunpack.c.l.b16 %v6085
    %v6221 = vunpack.c.l.b16 %v6086
    %v6222 = vunpack.c.l.b16 %v6087
    %v6223 = vunpack.c.l.b16 %v6088
    %v6224 = vunpack.c.l.b16 %v6089
    %v6225 = vunpack.c.l.b16 %v6090
    %v6226 = vunpack.c.l.b16 %v6091
    %v6227 = vunpack.c.l.b16 %v6092
    %v6228 = vunpack.c.l.b16 %v6093
    %v6229 = vunpack.c.l.b16 %v6094
    %v6230 = vunpack.c.l.b16 %v6095
    %v6231 = vunpack.c.l.b16 %v6096
    %v6232 = vunpack.c.l.b16 %v6097
    %v6233 = vunpack.c.l.b16 %v6098
    %v6234 = vunpack.c.l.b16 %v6099
    %v6235 = vunpack.c.l.b16 %v6100
    %v6236 = vunpack.c.l.b16 %v6101
    %v6237 = vunpack.c.l.b16 %v6102
    %v6238 = vunpack.c.l.b16 %v6103
    %v6239 = vunpack.c.l.b16 %v6104
    %v6240 = vunpack.c.l.b16 %v6105
    %v6241 = vunpack.c.l.b16 %v6106
    %v6242 = vunpack.c.l.b16 %v6107
    %v6243 = vunpack.c.l.b16 %v6108
    %v6244 = vunpack.c.l.b16 %v6109
    %v6245 = vunpack.c.l.b16 %v6110
    %v6246 = vunpack.c.l.b16 %v6111
    %v6247 = vunpack.c.l.b16 %v6112
    %v6248 = vunpack.c.l.b16 %v6113
    %v6249 = vunpack.c.l.b16 %v6114
    %v6250 = vunpack.c.l.b16 %v6115
    %v6251 = vunpack.c.l.b16 %v6116
    %v6252 = vunpack.c.l.b16 %v6117
    %v6253 = vunpack.c.l.b16 %v6118
    %v6254 = vunpack.c.l.b16 %v6119
    %v6255 = vunpack.c.l.b16 %v6120
    %v6256 = vunpack.c.l.b16 %v6121
    %v6257 = vunpack.c.l.b16 %v6122
    %v6258 = vunpack.c.l.b16 %v6123
    %v6259 = vunpack.c.l.b16 %v6124
    %v6260 = vunpack.c.l.b16 %v6125
    %v6261 = vunpack.c.l.b16 %v6126
    %v6262 = vunpack.c.l.b16 %v6127
    %v6263 = vunpack.c.l.b16 %v6128
    %v6264 = vunpack.c.l.b16 %v6129
    %v6265 = vunpack.c.l.b16 %v6130
    %v6266 = vunpack.c.l.b16 %v6131
    %v6267 = vunpack.c.l.b16 %v6132
    %v6268 = vunpack.c.l.b16 %v6133
    %v6269 = vunpack.c.l.b16 %v6134
    %v6270 = vunpack.c.l.b16 %v6135
    %v6271 = vunpack.c.l.b16 %v6136
    %v6272 = vunpack.c.l.b16 %v6137
    %v6273 = vunpack.c.l.b16 %v6138
    %v6274 = vunpack.c.l.b16 %v6139
    %v6275 = vunpack.c.l.b16 %v6140
    %v6276 = vunpack.c.l.b16 %v6141
    %v6277 = vunpack.c.l.b16 %v6142
    %v6278 = vunpack.c.l.b16 %v6143
    %v6279 = vpack.c.b16 %v6216, %v6215
    %v6280 = vpack.c.b16 %v6218, %v6217
    %v6281 = vpack.c.b16 %v6220, %v6219
    %v6282 = vpack.c.b16 %v6222, %v6221
    %v6283 = vpack.c.b16 %v6224, %v6223
    %v6284 = vpack.c.b16 %v6226, %v6225
    %v6285 = vpack.c.b16 %v6228, %v6227
    %v6286 = vpack.c.b16 %v6230, %v6229
    %v6287 = vpack.c.b16 %v6232, %v6231
    %v6288 = vpack.c.b16 %v6234, %v6233
    %v6289 = vpack.c.b16 %v6236, %v6235
    %v6290 = vpack.c.b16 %v6238, %v6237
    %v6291 = vpack.c.b16 %v6240, %v6239
    %v6292 = vpack.c.b16 %v6242, %v6241
    %v6293 = vpack.c.b16 %v6244, %v6243
    %v6294 = vpack.c.b16 %v6246, %v6245
    %v6295 = vpack.c.b16 %v6248, %v6247
    %v6296 = vpack.c.b16 %v6250, %v6249
    %v6297 = vpack.c.b16 %v6252, %v6251
    %v6298 = vpack.c.b16 %v6254, %v6253
    %v6299 = vpack.c.b16 %v6256, %v6255
    %v6300 = vpack.c.b16 %v6258, %v6257
    %v6301 = vpack.c.b16 %v6260, %v6259
    %v6302 = vpack.c.b16 %v6262, %v6261
    %v6303 = vpack.c.b16 %v6264, %v6263
    %v6304 = vpack.c.b16 %v6266, %v6265
    %v6305 = vpack.c.b16 %v6268, %v6267
    %v6306 = vpack.c.b16 %v6270, %v6269
    %v6307 = vpack.c.b16 %v6272, %v6271
    %v6308 = vpack.c.b16 %v6274, %v6273
    %v6309 = vpack.c.b16 %v6276, %v6275
    %v6310 = vpack.c.b16 %v6278, %v6277
    %6343 = vmatprep.subr.bf16.mxu0 0
    %6344 = vmatpush1.bf16.msra.mxu0 %v6286
    %6345 = vmatprep.subr.bf16.mxu0 0
    %6346 = vmatpush1.bf16.msra.mxu0 %v6285
    %6347 = vmatprep.subr.bf16.mxu0 0
    %6348 = vmatpush1.bf16.msra.mxu0 %v6284
    %6349 = vmatprep.subr.bf16.mxu0 0
    %6350 = vmatpush1.bf16.msra.mxu0 %v6283
    %6351 = vmatprep.subr.bf16.mxu0 0
    %6352 = vmatpush1.bf16.msra.mxu0 %v6282
    %6353 = vmatprep.subr.bf16.mxu0 0
    %6354 = vmatpush1.bf16.msra.mxu0 %v6281
    %6355 = vmatprep.subr.bf16.mxu0 0
    %6356 = vmatpush1.bf16.msra.mxu0 %v6280
    %6357 = vmatprep.subr.bf16.mxu0 0
    %6358 = vmatpush1.bf16.msra.mxu0 %v6279
    %6359 = vmatprep.subr.bf16.mxu0 0
    %6360 = vmatpush2.bf16.msra.mxu0 %v6294
    %6361 = vmatprep.subr.bf16.mxu0 0
    %6362 = vmatpush2.bf16.msra.mxu0 %v6293
    %6363 = vmatprep.subr.bf16.mxu0 0
    %6364 = vmatpush2.bf16.msra.mxu0 %v6292
    %6365 = vmatprep.subr.bf16.mxu0 0
    %6366 = vmatpush2.bf16.msra.mxu0 %v6291
    %6367 = vmatprep.subr.bf16.mxu0 0
    %6368 = vmatpush2.bf16.msra.mxu0 %v6290
    %6369 = vmatprep.subr.bf16.mxu0 0
    %6370 = vmatpush2.bf16.msra.mxu0 %v6289
    %6371 = vmatprep.subr.bf16.mxu0 0
    %6372 = vmatpush2.bf16.msra.mxu0 %v6288
    %6373 = vmatprep.subr.bf16.mxu0 0
    %6374 = vmatpush2.bf16.msra.mxu0 %v6287
    %6375 = vmatprep.mubr.bf16.mxu0 %v6077
    %6376 = vmatmul.mubr.bf16.gmra.mxu0 %v6076
    %v6377 = vpop.f32.mrf.mxu0
    %v6378 = vadd.f32 %v6149, %v6377
    %v6379 = vpop.f32.mrf.mxu0
    %v6380 = vpop.f32.mrf.mxu0
    %v6381 = vpop.f32.mrf.mxu0
    %6382 = vdwg.mxu0
    %6383 = vmatprep.subr.bf16.mxu0 0
    %6384 = vmatpush1.bf16.msra.mxu0 %v6302
    %6385 = vmatprep.subr.bf16.mxu0 0
    %6386 = vmatpush1.bf16.msra.mxu0 %v6301
    %6387 = vmatprep.subr.bf16.mxu0 0
    %6388 = vmatpush1.bf16.msra.mxu0 %v6300
    %6389 = vmatprep.subr.bf16.mxu0 0
    %6390 = vmatpush1.bf16.msra.mxu0 %v6299
    %6391 = vmatprep.subr.bf16.mxu0 0
    %6392 = vmatpush1.bf16.msra.mxu0 %v6298
    %6393 = vmatprep.subr.bf16.mxu0 0
    %6394 = vmatpush1.bf16.msra.mxu0 %v6297
    %6395 = vmatprep.subr.bf16.mxu0 0
    %6396 = vmatpush1.bf16.msra.mxu0 %v6296
    %6397 = vmatprep.subr.bf16.mxu0 0
    %6398 = vmatpush1.bf16.msra.mxu0 %v6295
    %6399 = vmatprep.subr.bf16.mxu0 0
    %6400 = vmatpush2.bf16.msra.mxu0 %v6310
    %6401 = vmatprep.subr.bf16.mxu0 0
    %6402 = vmatpush2.bf16.msra.mxu0 %v6309
    %6403 = vmatprep.subr.bf16.mxu0 0
    %6404 = vmatpush2.bf16.msra.mxu0 %v6308
    %6405 = vmatprep.subr.bf16.mxu0 0
    %6406 = vmatpush2.bf16.msra.mxu0 %v6307
    %6407 = vmatprep.subr.bf16.mxu0 0
    %6408 = vmatpush2.bf16.msra.mxu0 %v6306
    %6409 = vmatprep.subr.bf16.mxu0 0
    %6410 = vmatpush2.bf16.msra.mxu0 %v6305
    %6411 = vmatprep.subr.bf16.mxu0 0
    %6412 = vmatpush2.bf16.msra.mxu0 %v6304
    %6413 = vmatprep.subr.bf16.mxu0 0
    %6414 = vmatpush2.bf16.msra.mxu0 %v6303
    %6415 = vmatprep.mubr.bf16.mxu0 %v6079
    %6416 = vmatmul.mubr.bf16.gmra.mxu0 %v6078
    %v6417 = vpop.f32.mrf.mxu0
    %v6418 = vadd.f32 %v6378, %v6417
    %v6419 = vpop.f32.mrf.mxu0
    %v6420 = vpop.f32.mrf.mxu0
    %v6421 = vpop.f32.mrf.mxu0
    %6422 = vdwg.mxu0
    %6423 = vst [vmem:[#allocation17] sm:$0xff] %v6418
    // Predicated region
    $region74: #{tpu_custom_call.1} parent=1 // pred_check
      _
    $region75: #{tpu_custom_call.1} parent=1 // pred_check_branch
      %6425 = sbr.rel (0) target = $region77
    $region76: #{tpu_custom_call.1} parent=1 // pred_region
      %s6427 = ssub.s32 128, 128
      %6428 = vsyncadd [#allocation4], %s6427
      %s6430 = sshll.u32 [#allocation17], 4
      %s6431 = int_to_ptr.vmem [resolvable:$true] %s6430
      %6433 = dma.vmem_to_hbm [thread:$0]  %s6431, 128, %s9, [#allocation4]
    $region77: #{tpu_custom_call.1} parent=1 // pred_fallthru
      _
    // Predicated region
    $region78: #{tpu_custom_call.1} parent=1 // pred_check
      _
    $region79: #{tpu_custom_call.1} parent=1 // pred_check_branch
      %6435 = sbr.rel (0) target = $region81
    $region80: #{tpu_custom_call.1} parent=1 // pred_region
      %6436 = dma.done [#allocation4], 128
    $region81: #{tpu_custom_call.1} parent=1 // pred_fallthru
      _
    %6437 = vsyncpa [#allocation3], 1
    %6438 = vsyncpa [#allocation6], 1
    %6439 = vsyncpa [#allocation9], 1
    %6440 = vsyncpa [#allocation12], 1
    %6441 = vsyncpa [#allocation15], 1
    %6442 = vsyncpa [#allocation4], 1

</llo_original>
